<compile_context>
chip_gen: v7x
topology: tpu7x:2x2x1
jax: 0.10.0
libtpu: 0.0.40
codegen_flags: <defaults>
</compile_context>

<pallas_src>
import jax
import jax.numpy as jnp
import numpy as np
from jax.experimental import pallas as pl
from jax.experimental.pallas import tpu as pltpu

LN_EPS = 1e-5

# Row indices inside the packed (16, hidden) "hidden-width vector" slab.
B1 = 0                       # self.linear bias
E_BSA = 1                    # encoder fused self-attn bias  (bv @ Wo + bo)
E_LN1G, E_LN1B = 2, 3
E_BF2 = 4                    # encoder linear2 bias
E_LN2G, E_LN2B = 5, 6
D_BSA = 7                    # decoder fused self-attn bias
D_LN1G, D_LN1B = 8, 9
D_BCA = 10                   # decoder fused cross-attn bias
D_LN2G, D_LN2B = 11, 12
D_BF2 = 13                   # decoder linear2 bias
D_LN3G, D_LN3B = 14, 15
N_HVEC = 16


def flow_transformer_kernel(x_ref, w1_ref, hvec_ref, ffb_ref,
                            e_wsa_ref, e_wf1_ref, e_wf2_ref,
                            d_wsa_ref, d_wca_ref, d_wf1_ref, d_wf2_ref,
                            wout_ref, bout_ref, out_ref):
    """Input linear+ReLU, encoder layer, decoder layer, output linear+ReLU.

    Weights are bf16 and read at their point of use (short live ranges);
    accumulation, residual adds and layernorms are all f32.
    """

    def mm(a, w_ref):
        # bf16 x bf16 -> f32 accumulation on the MXU.
        return jnp.dot(a.astype(jnp.bfloat16), w_ref[...],
                       preferred_element_type=jnp.float32)

    def hv(i):
        return hvec_ref[i:i + 1, :]          # (1, hidden), f32

    def ln(x, gi, bi):
        mu = jnp.mean(x, axis=-1, keepdims=True)
        xc = x - mu
        var = jnp.mean(xc * xc, axis=-1, keepdims=True)
        return xc * jax.lax.rsqrt(var + LN_EPS) * hv(gi) + hv(bi)

    x = x_ref[...]                            # (BM, in_flat) bf16

    # frame_linear = relu(Linear(frame_flat))
    h = jnp.maximum(mm(x, w1_ref) + hv(B1), 0.0)

    # ---- TransformerEncoderLayer (post-LN); seq_len == 1 => softmax == 1 ----
    sa = mm(h, e_wsa_ref) + hv(E_BSA)                       # fused Wv @ Wo
    h2 = ln(h + sa, E_LN1G, E_LN1B)
    ff = mm(jnp.maximum(mm(h2, e_wf1_ref) + ffb_ref[0:1, :], 0.0),
            e_wf2_ref) + hv(E_BF2)
    enc = ln(h2 + ff, E_LN2G, E_LN2B)

    # ---- TransformerDecoderLayer (post-LN) ----
    sa = mm(h, d_wsa_ref) + hv(D_BSA)                       # fused self-attn
    t2 = ln(h + sa, D_LN1G, D_LN1B)
    ca = mm(enc, d_wca_ref) + hv(D_BCA)                     # fused cross-attn
    t3 = ln(t2 + ca, D_LN2G, D_LN2B)
    ff = mm(jnp.maximum(mm(t3, d_wf1_ref) + ffb_ref[1:2, :], 0.0),
            d_wf2_ref) + hv(D_BF2)
    dec = ln(t3 + ff, D_LN3G, D_LN3B)

    # prediction = relu(output_linear(decoder_output))
    out_ref[...] = jnp.maximum(mm(dec, wout_ref) + bout_ref[...], 0.0)


def init_params(key, in_flat, out_flat, hidden, ff_dim):
    """Deterministic synthetic parameters, mirroring the PyTorch module structure.

    PyTorch Linear computes y = x @ W.T + b; we store W.T directly as (in, out).
    """
    ks = iter(jax.random.split(key, 64))
    scale = 0.05

    def w(shape):
        return (scale * jax.random.normal(next(ks), shape)).astype(jnp.float32)

    def b(n):
        return (scale * jax.random.normal(next(ks), (1, n))).astype(jnp.float32)

    def ln(n):
        return jnp.ones((1, n), jnp.float32), jnp.zeros((1, n), jnp.float32)

    p = {}
    p["w1"], p["b1"] = w((in_flat, hidden)), b(hidden)                  # self.linear
    # encoder layer
    p["e_wv"], p["e_bv"] = w((hidden, hidden)), b(hidden)               # self_attn V proj
    p["e_wo"], p["e_bo"] = w((hidden, hidden)), b(hidden)               # self_attn out proj
    p["e_ln1g"], p["e_ln1b"] = ln(hidden)
    p["e_wf1"], p["e_bf1"] = w((hidden, ff_dim)), b(ff_dim)             # linear1
    p["e_wf2"], p["e_bf2"] = w((ff_dim, hidden)), b(hidden)             # linear2
    p["e_ln2g"], p["e_ln2b"] = ln(hidden)
    # decoder layer
    p["d_wvs"], p["d_bvs"] = w((hidden, hidden)), b(hidden)             # self_attn V proj
    p["d_wos"], p["d_bos"] = w((hidden, hidden)), b(hidden)             # self_attn out proj
    p["d_ln1g"], p["d_ln1b"] = ln(hidden)
    p["d_wvc"], p["d_bvc"] = w((hidden, hidden)), b(hidden)             # cross_attn V proj
    p["d_woc"], p["d_boc"] = w((hidden, hidden)), b(hidden)             # cross_attn out proj
    p["d_ln2g"], p["d_ln2b"] = ln(hidden)
    p["d_wf1"], p["d_bf1"] = w((hidden, ff_dim)), b(ff_dim)             # linear1
    p["d_wf2"], p["d_bf2"] = w((ff_dim, hidden)), b(hidden)             # linear2
    p["d_ln3g"], p["d_ln3b"] = ln(hidden)
    p["wout"], p["bout"] = w((hidden, out_flat)), b(out_flat)           # self.output_linear
    return p


def prepare_kernel_params(p):
    """Offline algebraic fusion + dtype/packing prep (done once, outside the kernel).

    * Attention V-proj / out-proj pairs have no nonlinearity in between, so
      (x @ Wv + bv) @ Wo + bo == x @ (Wv @ Wo) + (bv @ Wo + bo).
    * All (1, hidden) vectors are packed into one (16, hidden) slab; the two
      (1, ff_dim) biases into one (2, ff_dim) slab.
    * Weight matrices are cast to bf16 (MXU-native input); biases/LN stay f32.
    """
    def fuse(wv, bv, wo, bo):
        return (wv @ wo).astype(jnp.bfloat16), bv @ wo + bo

    e_wsa, e_bsa = fuse(p["e_wv"], p["e_bv"], p["e_wo"], p["e_bo"])
    d_wsa, d_bsa = fuse(p["d_wvs"], p["d_bvs"], p["d_wos"], p["d_bos"])
    d_wca, d_bca = fuse(p["d_wvc"], p["d_bvc"], p["d_woc"], p["d_boc"])

    rows = [None] * N_HVEC
    rows[B1] = p["b1"]
    rows[E_BSA] = e_bsa
    rows[E_LN1G], rows[E_LN1B] = p["e_ln1g"], p["e_ln1b"]
    rows[E_BF2] = p["e_bf2"]
    rows[E_LN2G], rows[E_LN2B] = p["e_ln2g"], p["e_ln2b"]
    rows[D_BSA] = d_bsa
    rows[D_LN1G], rows[D_LN1B] = p["d_ln1g"], p["d_ln1b"]
    rows[D_BCA] = d_bca
    rows[D_LN2G], rows[D_LN2B] = p["d_ln2g"], p["d_ln2b"]
    rows[D_BF2] = p["d_bf2"]
    rows[D_LN3G], rows[D_LN3B] = p["d_ln3g"], p["d_ln3b"]
    hvec = jnp.concatenate(rows, axis=0).astype(jnp.float32)            # (16, hidden)

    ffb = jnp.concatenate([p["e_bf1"], p["d_bf1"]], axis=0).astype(jnp.float32)  # (2, ff_dim)

    bf16 = lambda a: a.astype(jnp.bfloat16)
    return (bf16(p["w1"]), hvec, ffb,
            e_wsa, bf16(p["e_wf1"]), bf16(p["e_wf2"]),
            d_wsa, d_wca, bf16(p["d_wf1"]), bf16(p["d_wf2"]),
            bf16(p["wout"]), p["bout"].astype(jnp.float32))


def flow_transformer_forward(frame, kparams, output_size, *, batch_tile=8):
    # NOTE: validity of the attention simplification is conditional on the original
    # module's layout (seq_len is always 1 via unsqueeze(0)) and on eval-mode dropout.
    (w1, hvec, ffb, e_wsa, e_wf1, e_wf2,
     d_wsa, d_wca, d_wf1, d_wf2, wout, bout) = kparams

    B = frame.shape[0]
    in_flat, hidden = w1.shape
    ff_dim = e_wf1.shape[1]
    out_flat = wout.shape[1]
    assert out_flat == output_size[0] * output_size[1] * output_size[2]

    x = frame.reshape(B, -1).astype(jnp.bfloat16)
    assert x.shape[1] == in_flat

    # Pad batch to a multiple of the (sublane-aligned) batch tile.
    Bp = ((B + batch_tile - 1) // batch_tile) * batch_tile
    if Bp != B:
        x = jnp.pad(x, ((0, Bp - B), (0, 0)))
    grid = (Bp // batch_tile,)

    def resident(arr):
        # Full-array block, same block index every grid step (stays in VMEM).
        return pl.BlockSpec(arr.shape, lambda i: (0, 0))

    flops = 2 * Bp * (in_flat * hidden + 3 * hidden * hidden
                      + 4 * hidden * ff_dim + hidden * out_flat)
    bytes_accessed = (x.size * x.dtype.itemsize
                      + sum(a.size * a.dtype.itemsize for a in kparams)
                      + Bp * out_flat * 4)

    out = pl.pallas_call(
        flow_transformer_kernel,
        out_shape=jax.ShapeDtypeStruct((Bp, out_flat), jnp.float32),
        grid=grid,
        in_specs=[pl.BlockSpec((batch_tile, in_flat), lambda i: (i, 0))]
                 + [resident(a) for a in kparams],
        out_specs=pl.BlockSpec((batch_tile, out_flat), lambda i: (i, 0)),
        compiler_params=pltpu.CompilerParams(
            dimension_semantics=("parallel",),          # shards batch tiles over 2 TCs on v7x
            vmem_limit_bytes=32 * 1024 * 1024),
        cost_estimate=pl.CostEstimate(
            flops=flops, transcendentals=5 * Bp, bytes_accessed=bytes_accessed),
    )(x, *kparams)

    out = out[:B]
    return out.reshape(-1, output_size[0], output_size[1], output_size[2])


# ----------------------------- references ------------------------------------


def reference_forward_f32(frame, p, output_size):
    """Pure-f32, un-fused mirror of the PyTorch forward (the spec)."""
    def ln(x, g, b):
        mu = jnp.mean(x, axis=-1, keepdims=True)
        xc = x - mu
        var = jnp.mean(xc * xc, axis=-1, keepdims=True)
        return xc / jnp.sqrt(var + LN_EPS) * g + b

    B = frame.shape[0]
    x = frame.reshape(B, -1).astype(jnp.float32)
    h = jnp.maximum(x @ p["w1"] + p["b1"], 0.0)

    sa = (h @ p["e_wv"] + p["e_bv"]) @ p["e_wo"] + p["e_bo"]
    h2 = ln(h + sa, p["e_ln1g"], p["e_ln1b"])
    ff = jnp.maximum(h2 @ p["e_wf1"] + p["e_bf1"], 0.0) @ p["e_wf2"] + p["e_bf2"]
    enc = ln(h2 + ff, p["e_ln2g"], p["e_ln2b"])

    sa = (h @ p["d_wvs"] + p["d_bvs"]) @ p["d_wos"] + p["d_bos"]
    t2 = ln(h + sa, p["d_ln1g"], p["d_ln1b"])
    ca = (enc @ p["d_wvc"] + p["d_bvc"]) @ p["d_woc"] + p["d_boc"]
    t3 = ln(t2 + ca, p["d_ln2g"], p["d_ln2b"])
    ff = jnp.maximum(t3 @ p["d_wf1"] + p["d_bf1"], 0.0) @ p["d_wf2"] + p["d_bf2"]
    dec = ln(t3 + ff, p["d_ln3g"], p["d_ln3b"])

    out = jnp.maximum(dec @ p["wout"] + p["bout"], 0.0)
    return out.reshape(-1, output_size[0], output_size[1], output_size[2])


def reference_forward_mixed(frame, kparams, output_size):
    """Pure-JAX mirror of the kernel's mixed-precision math (bf16 matmul inputs, f32 acc)."""
    (w1, hvec, ffb, e_wsa, e_wf1, e_wf2,
     d_wsa, d_wca, d_wf1, d_wf2, wout, bout) = kparams

    def mm(a, w):
        return jnp.dot(a.astype(jnp.bfloat16), w, preferred_element_type=jnp.float32)

    def hv(i):
        return hvec[i:i + 1, :]

    def ln(x, gi, bi):
        mu = jnp.mean(x, axis=-1, keepdims=True)
        xc = x - mu
        var = jnp.mean(xc * xc, axis=-1, keepdims=True)
        return xc * jax.lax.rsqrt(var + LN_EPS) * hv(gi) + hv(bi)

    B = frame.shape[0]
    x = frame.reshape(B, -1).astype(jnp.bfloat16)
    h = jnp.maximum(mm(x, w1) + hv(B1), 0.0)

    sa = mm(h, e_wsa) + hv(E_BSA)
    h2 = ln(h + sa, E_LN1G, E_LN1B)
    ff = mm(jnp.maximum(mm(h2, e_wf1) + ffb[0:1, :], 0.0), e_wf2) + hv(E_BF2)
    enc = ln(h2 + ff, E_LN2G, E_LN2B)

    sa = mm(h, d_wsa) + hv(D_BSA)
    t2 = ln(h + sa, D_LN1G, D_LN1B)
    ca = mm(enc, d_wca) + hv(D_BCA)
    t3 = ln(t2 + ca, D_LN2G, D_LN2B)
    ff = mm(jnp.maximum(mm(t3, d_wf1) + ffb[1:2, :], 0.0), d_wf2) + hv(D_BF2)
    dec = ln(t3 + ff, D_LN3G, D_LN3B)

    out = jnp.maximum(mm(dec, wout) + bout, 0.0)
    return out.reshape(-1, output_size[0], output_size[1], output_size[2])


if __name__ == "__main__":
    # Small shapes consistent with the module.
    input_size = (4, 16, 16)     # (C, H, W)  -> in_flat  = 1024
    output_size = (4, 16, 16)    # (C, H, W)  -> out_flat = 1024
    batch = 2
    hidden_dim = 32              # d_model (divisible by num_heads=8)
    ff_dim = 2048                # PyTorch TransformerEncoder/DecoderLayer default

    in_flat = input_size[0] * input_size[1] * input_size[2]
    out_flat = output_size[0] * output_size[1] * output_size[2]

    key = jax.random.PRNGKey(0)
    k_x, k_p = jax.random.split(key)
    frame = jax.random.normal(k_x, (batch,) + input_size, dtype=jnp.float32)

    raw_params = init_params(k_p, in_flat, out_flat, hidden_dim, ff_dim)
    kparams = prepare_kernel_params(raw_params)

    pred = flow_transformer_forward(frame, kparams, output_size)
    pred = jax.block_until_ready(pred)
    assert pred.shape == (batch,) + output_size, pred.shape

    # 1) tight check against a pure-JAX mirror of the kernel's mixed-precision math.
    ref_mixed = reference_forward_mixed(frame, kparams, output_size)
    np.testing.assert_allclose(np.asarray(pred), np.asarray(ref_mixed),
                               rtol=1e-4, atol=1e-4)

    # 2) check against the full-f32, un-fused PyTorch-equivalent math
    #    (differences come only from bf16 weight/activation quantization).
    ref_f32 = reference_forward_f32(frame, raw_params, output_size)
    np.testing.assert_allclose(np.asarray(pred), np.asarray(ref_f32),
                               rtol=5e-2, atol=5e-2)

    print("KERNEL_OK")
</pallas_src>

<mosaic_0001>
module attributes {stable_mosaic.version = 11 : i64} {
  func.func @flow_transformer_kernel(%arg0: i32, %arg1: memref<8x1024xbf16, #tpu.memory_space<vmem>>, %arg2: memref<1024x32xbf16, #tpu.memory_space<vmem>>, %arg3: memref<16x32xf32, #tpu.memory_space<vmem>>, %arg4: memref<2x2048xf32, #tpu.memory_space<vmem>>, %arg5: memref<32x32xbf16, #tpu.memory_space<vmem>>, %arg6: memref<32x2048xbf16, #tpu.memory_space<vmem>>, %arg7: memref<2048x32xbf16, #tpu.memory_space<vmem>>, %arg8: memref<32x32xbf16, #tpu.memory_space<vmem>>, %arg9: memref<32x32xbf16, #tpu.memory_space<vmem>>, %arg10: memref<32x2048xbf16, #tpu.memory_space<vmem>>, %arg11: memref<2048x32xbf16, #tpu.memory_space<vmem>>, %arg12: memref<32x1024xbf16, #tpu.memory_space<vmem>>, %arg13: memref<1x1024xf32, #tpu.memory_space<vmem>>, %arg14: memref<8x1024xf32, #tpu.memory_space<vmem>>) attributes {dimension_semantics = [#tpu.dimension_semantics<parallel>], iteration_bounds = array<i64: 1>, scalar_prefetch = 0 : i64, scratch_operands = 0 : i64, tpu.core_type = #tpu.core_type<tc>, window_params = [{transform_indices = @transform_0, window_bounds = array<i64: 8, 1024>}, {pipeline_mode = #tpu.pipeline_mode<synchronous>, transform_indices = @transform_1, window_bounds = array<i64: 1024, 32>}, {pipeline_mode = #tpu.pipeline_mode<synchronous>, transform_indices = @transform_2, window_bounds = array<i64: 16, 32>}, {pipeline_mode = #tpu.pipeline_mode<synchronous>, transform_indices = @transform_3, window_bounds = array<i64: 2, 2048>}, {pipeline_mode = #tpu.pipeline_mode<synchronous>, transform_indices = @transform_4, window_bounds = array<i64: 32, 32>}, {pipeline_mode = #tpu.pipeline_mode<synchronous>, transform_indices = @transform_5, window_bounds = array<i64: 32, 2048>}, {pipeline_mode = #tpu.pipeline_mode<synchronous>, transform_indices = @transform_6, window_bounds = array<i64: 2048, 32>}, {pipeline_mode = #tpu.pipeline_mode<synchronous>, transform_indices = @transform_7, window_bounds = array<i64: 32, 32>}, {pipeline_mode = #tpu.pipeline_mode<synchronous>, transform_indices = @transform_8, window_bounds = array<i64: 32, 32>}, {pipeline_mode = #tpu.pipeline_mode<synchronous>, transform_indices = @transform_9, window_bounds = array<i64: 32, 2048>}, {pipeline_mode = #tpu.pipeline_mode<synchronous>, transform_indices = @transform_10, window_bounds = array<i64: 2048, 32>}, {pipeline_mode = #tpu.pipeline_mode<synchronous>, transform_indices = @transform_11, window_bounds = array<i64: 32, 1024>}, {pipeline_mode = #tpu.pipeline_mode<synchronous>, transform_indices = @transform_12, window_bounds = array<i64: 1, 1024>}, {transform_indices = @transform_13, window_bounds = array<i64: 8, 1024>}]} {
    %c0 = arith.constant 0 : index
    %c0_0 = arith.constant 0 : index
    %0 = vector.load %arg1[%c0, %c0_0] : memref<8x1024xbf16, #tpu.memory_space<vmem>>, vector<8x1024xbf16>
    %c0_1 = arith.constant 0 : index
    %c0_2 = arith.constant 0 : index
    %1 = vector.load %arg2[%c0_1, %c0_2] : memref<1024x32xbf16, #tpu.memory_space<vmem>>, vector<1024x32xbf16>
    %cst = arith.constant dense<0.000000e+00> : vector<8x32xf32>
    %2 = tpu.matmul %0, %1, %cst {dimension_numbers = #tpu.dot_dimension_numbers<[1], [0], [0], [1], [0, 0, 1, 1], [], []>} : vector<8x1024xbf16>, vector<1024x32xbf16>, vector<8x32xf32> -> vector<8x32xf32>
    %c0_3 = arith.constant 0 : index
    %c0_4 = arith.constant 0 : index
    %3 = vector.load %arg3[%c0_3, %c0_4] : memref<16x32xf32, #tpu.memory_space<vmem>>, vector<1x32xf32>
    %4 = vector.broadcast %3 : vector<1x32xf32> to vector<8x32xf32>
    %5 = arith.addf %2, %4 : vector<8x32xf32>
    %cst_5 = arith.constant 0.000000e+00 : f32
    %6 = vector.broadcast %cst_5 : f32 to vector<8x32xf32>
    %7 = arith.maximumf %5, %6 : vector<8x32xf32>
    %8 = arith.truncf %7 : vector<8x32xf32> to vector<8x32xbf16>
    %c0_6 = arith.constant 0 : index
    %c0_7 = arith.constant 0 : index
    %9 = vector.load %arg5[%c0_6, %c0_7] : memref<32x32xbf16, #tpu.memory_space<vmem>>, vector<32x32xbf16>
    %cst_8 = arith.constant dense<0.000000e+00> : vector<8x32xf32>
    %10 = tpu.matmul %8, %9, %cst_8 {dimension_numbers = #tpu.dot_dimension_numbers<[1], [0], [0], [1], [0, 0, 1, 1], [], []>} : vector<8x32xbf16>, vector<32x32xbf16>, vector<8x32xf32> -> vector<8x32xf32>
    %c1 = arith.constant 1 : index
    %c0_9 = arith.constant 0 : index
    %11 = vector.load %arg3[%c1, %c0_9] : memref<16x32xf32, #tpu.memory_space<vmem>>, vector<1x32xf32>
    %12 = vector.broadcast %11 : vector<1x32xf32> to vector<8x32xf32>
    %13 = arith.addf %10, %12 : vector<8x32xf32>
    %14 = arith.addf %7, %13 : vector<8x32xf32>
    %cst_10 = arith.constant dense<0.000000e+00> : vector<8xf32>
    %15 = vector.multi_reduction <add>, %14, %cst_10 [1] : vector<8x32xf32> to vector<8xf32>
    %16 = vector.shape_cast %15 : vector<8xf32> to vector<8x1xf32>
    %cst_11 = arith.constant 3.200000e+01 : f32
    %17 = vector.broadcast %cst_11 : f32 to vector<8x1xf32>
    %18 = arith.divf %16, %17 : vector<8x1xf32>
    %19 = vector.broadcast %18 : vector<8x1xf32> to vector<8x32xf32>
    %20 = arith.subf %14, %19 : vector<8x32xf32>
    %21 = arith.mulf %20, %20 : vector<8x32xf32>
    %cst_12 = arith.constant dense<0.000000e+00> : vector<8xf32>
    %22 = vector.multi_reduction <add>, %21, %cst_12 [1] : vector<8x32xf32> to vector<8xf32>
    %23 = vector.shape_cast %22 : vector<8xf32> to vector<8x1xf32>
    %cst_13 = arith.constant 3.200000e+01 : f32
    %24 = vector.broadcast %cst_13 : f32 to vector<8x1xf32>
    %25 = arith.divf %23, %24 : vector<8x1xf32>
    %cst_14 = arith.constant 9.99999974E-6 : f32
    %26 = vector.broadcast %cst_14 : f32 to vector<8x1xf32>
    %27 = arith.addf %25, %26 : vector<8x1xf32>
    %28 = math.rsqrt %27 : vector<8x1xf32>
    %29 = vector.broadcast %28 : vector<8x1xf32> to vector<8x32xf32>
    %30 = arith.mulf %20, %29 : vector<8x32xf32>
    %c2 = arith.constant 2 : index
    %c0_15 = arith.constant 0 : index
    %31 = vector.load %arg3[%c2, %c0_15] : memref<16x32xf32, #tpu.memory_space<vmem>>, vector<1x32xf32>
    %32 = vector.broadcast %31 : vector<1x32xf32> to vector<8x32xf32>
    %33 = arith.mulf %30, %32 : vector<8x32xf32>
    %c3 = arith.constant 3 : index
    %c0_16 = arith.constant 0 : index
    %34 = vector.load %arg3[%c3, %c0_16] : memref<16x32xf32, #tpu.memory_space<vmem>>, vector<1x32xf32>
    %35 = vector.broadcast %34 : vector<1x32xf32> to vector<8x32xf32>
    %36 = arith.addf %33, %35 : vector<8x32xf32>
    %37 = arith.truncf %36 : vector<8x32xf32> to vector<8x32xbf16>
    %c0_17 = arith.constant 0 : index
    %c0_18 = arith.constant 0 : index
    %38 = vector.load %arg6[%c0_17, %c0_18] : memref<32x2048xbf16, #tpu.memory_space<vmem>>, vector<32x2048xbf16>
    %cst_19 = arith.constant dense<0.000000e+00> : vector<8x2048xf32>
    %39 = tpu.matmul %37, %38, %cst_19 {dimension_numbers = #tpu.dot_dimension_numbers<[1], [0], [0], [1], [0, 0, 1, 1], [], []>} : vector<8x32xbf16>, vector<32x2048xbf16>, vector<8x2048xf32> -> vector<8x2048xf32>
    %c0_20 = arith.constant 0 : index
    %c0_21 = arith.constant 0 : index
    %40 = vector.load %arg4[%c0_20, %c0_21] : memref<2x2048xf32, #tpu.memory_space<vmem>>, vector<1x2048xf32>
    %41 = vector.broadcast %40 : vector<1x2048xf32> to vector<8x2048xf32>
    %42 = arith.addf %39, %41 : vector<8x2048xf32>
    %cst_22 = arith.constant 0.000000e+00 : f32
    %43 = vector.broadcast %cst_22 : f32 to vector<8x2048xf32>
    %44 = arith.maximumf %42, %43 : vector<8x2048xf32>
    %45 = arith.truncf %44 : vector<8x2048xf32> to vector<8x2048xbf16>
    %c0_23 = arith.constant 0 : index
    %c0_24 = arith.constant 0 : index
    %46 = vector.load %arg7[%c0_23, %c0_24] : memref<2048x32xbf16, #tpu.memory_space<vmem>>, vector<2048x32xbf16>
    %cst_25 = arith.constant dense<0.000000e+00> : vector<8x32xf32>
    %47 = tpu.matmul %45, %46, %cst_25 {dimension_numbers = #tpu.dot_dimension_numbers<[1], [0], [0], [1], [0, 0, 1, 1], [], []>} : vector<8x2048xbf16>, vector<2048x32xbf16>, vector<8x32xf32> -> vector<8x32xf32>
    %c4 = arith.constant 4 : index
    %c0_26 = arith.constant 0 : index
    %48 = vector.load %arg3[%c4, %c0_26] : memref<16x32xf32, #tpu.memory_space<vmem>>, vector<1x32xf32>
    %49 = vector.broadcast %48 : vector<1x32xf32> to vector<8x32xf32>
    %50 = arith.addf %47, %49 : vector<8x32xf32>
    %51 = arith.addf %36, %50 : vector<8x32xf32>
    %cst_27 = arith.constant dense<0.000000e+00> : vector<8xf32>
    %52 = vector.multi_reduction <add>, %51, %cst_27 [1] : vector<8x32xf32> to vector<8xf32>
    %53 = vector.shape_cast %52 : vector<8xf32> to vector<8x1xf32>
    %cst_28 = arith.constant 3.200000e+01 : f32
    %54 = vector.broadcast %cst_28 : f32 to vector<8x1xf32>
    %55 = arith.divf %53, %54 : vector<8x1xf32>
    %56 = vector.broadcast %55 : vector<8x1xf32> to vector<8x32xf32>
    %57 = arith.subf %51, %56 : vector<8x32xf32>
    %58 = arith.mulf %57, %57 : vector<8x32xf32>
    %cst_29 = arith.constant dense<0.000000e+00> : vector<8xf32>
    %59 = vector.multi_reduction <add>, %58, %cst_29 [1] : vector<8x32xf32> to vector<8xf32>
    %60 = vector.shape_cast %59 : vector<8xf32> to vector<8x1xf32>
    %cst_30 = arith.constant 3.200000e+01 : f32
    %61 = vector.broadcast %cst_30 : f32 to vector<8x1xf32>
    %62 = arith.divf %60, %61 : vector<8x1xf32>
    %cst_31 = arith.constant 9.99999974E-6 : f32
    %63 = vector.broadcast %cst_31 : f32 to vector<8x1xf32>
    %64 = arith.addf %62, %63 : vector<8x1xf32>
    %65 = math.rsqrt %64 : vector<8x1xf32>
    %66 = vector.broadcast %65 : vector<8x1xf32> to vector<8x32xf32>
    %67 = arith.mulf %57, %66 : vector<8x32xf32>
    %c5 = arith.constant 5 : index
    %c0_32 = arith.constant 0 : index
    %68 = vector.load %arg3[%c5, %c0_32] : memref<16x32xf32, #tpu.memory_space<vmem>>, vector<1x32xf32>
    %69 = vector.broadcast %68 : vector<1x32xf32> to vector<8x32xf32>
    %70 = arith.mulf %67, %69 : vector<8x32xf32>
    %c6 = arith.constant 6 : index
    %c0_33 = arith.constant 0 : index
    %71 = vector.load %arg3[%c6, %c0_33] : memref<16x32xf32, #tpu.memory_space<vmem>>, vector<1x32xf32>
    %72 = vector.broadcast %71 : vector<1x32xf32> to vector<8x32xf32>
    %73 = arith.addf %70, %72 : vector<8x32xf32>
    %74 = arith.truncf %7 : vector<8x32xf32> to vector<8x32xbf16>
    %c0_34 = arith.constant 0 : index
    %c0_35 = arith.constant 0 : index
    %75 = vector.load %arg8[%c0_34, %c0_35] : memref<32x32xbf16, #tpu.memory_space<vmem>>, vector<32x32xbf16>
    %cst_36 = arith.constant dense<0.000000e+00> : vector<8x32xf32>
    %76 = tpu.matmul %74, %75, %cst_36 {dimension_numbers = #tpu.dot_dimension_numbers<[1], [0], [0], [1], [0, 0, 1, 1], [], []>} : vector<8x32xbf16>, vector<32x32xbf16>, vector<8x32xf32> -> vector<8x32xf32>
    %c7 = arith.constant 7 : index
    %c0_37 = arith.constant 0 : index
    %77 = vector.load %arg3[%c7, %c0_37] : memref<16x32xf32, #tpu.memory_space<vmem>>, vector<1x32xf32>
    %78 = vector.broadcast %77 : vector<1x32xf32> to vector<8x32xf32>
    %79 = arith.addf %76, %78 : vector<8x32xf32>
    %80 = arith.addf %7, %79 : vector<8x32xf32>
    %cst_38 = arith.constant dense<0.000000e+00> : vector<8xf32>
    %81 = vector.multi_reduction <add>, %80, %cst_38 [1] : vector<8x32xf32> to vector<8xf32>
    %82 = vector.shape_cast %81 : vector<8xf32> to vector<8x1xf32>
    %cst_39 = arith.constant 3.200000e+01 : f32
    %83 = vector.broadcast %cst_39 : f32 to vector<8x1xf32>
    %84 = arith.divf %82, %83 : vector<8x1xf32>
    %85 = vector.broadcast %84 : vector<8x1xf32> to vector<8x32xf32>
    %86 = arith.subf %80, %85 : vector<8x32xf32>
    %87 = arith.mulf %86, %86 : vector<8x32xf32>
    %cst_40 = arith.constant dense<0.000000e+00> : vector<8xf32>
    %88 = vector.multi_reduction <add>, %87, %cst_40 [1] : vector<8x32xf32> to vector<8xf32>
    %89 = vector.shape_cast %88 : vector<8xf32> to vector<8x1xf32>
    %cst_41 = arith.constant 3.200000e+01 : f32
    %90 = vector.broadcast %cst_41 : f32 to vector<8x1xf32>
    %91 = arith.divf %89, %90 : vector<8x1xf32>
    %cst_42 = arith.constant 9.99999974E-6 : f32
    %92 = vector.broadcast %cst_42 : f32 to vector<8x1xf32>
    %93 = arith.addf %91, %92 : vector<8x1xf32>
    %94 = math.rsqrt %93 : vector<8x1xf32>
    %95 = vector.broadcast %94 : vector<8x1xf32> to vector<8x32xf32>
    %96 = arith.mulf %86, %95 : vector<8x32xf32>
    %c8 = arith.constant 8 : index
    %c0_43 = arith.constant 0 : index
    %97 = vector.load %arg3[%c8, %c0_43] : memref<16x32xf32, #tpu.memory_space<vmem>>, vector<1x32xf32>
    %98 = vector.broadcast %97 : vector<1x32xf32> to vector<8x32xf32>
    %99 = arith.mulf %96, %98 : vector<8x32xf32>
    %c9 = arith.constant 9 : index
    %c0_44 = arith.constant 0 : index
    %100 = vector.load %arg3[%c9, %c0_44] : memref<16x32xf32, #tpu.memory_space<vmem>>, vector<1x32xf32>
    %101 = vector.broadcast %100 : vector<1x32xf32> to vector<8x32xf32>
    %102 = arith.addf %99, %101 : vector<8x32xf32>
    %103 = arith.truncf %73 : vector<8x32xf32> to vector<8x32xbf16>
    %c0_45 = arith.constant 0 : index
    %c0_46 = arith.constant 0 : index
    %104 = vector.load %arg9[%c0_45, %c0_46] : memref<32x32xbf16, #tpu.memory_space<vmem>>, vector<32x32xbf16>
    %cst_47 = arith.constant dense<0.000000e+00> : vector<8x32xf32>
    %105 = tpu.matmul %103, %104, %cst_47 {dimension_numbers = #tpu.dot_dimension_numbers<[1], [0], [0], [1], [0, 0, 1, 1], [], []>} : vector<8x32xbf16>, vector<32x32xbf16>, vector<8x32xf32> -> vector<8x32xf32>
    %c10 = arith.constant 10 : index
    %c0_48 = arith.constant 0 : index
    %106 = vector.load %arg3[%c10, %c0_48] : memref<16x32xf32, #tpu.memory_space<vmem>>, vector<1x32xf32>
    %107 = vector.broadcast %106 : vector<1x32xf32> to vector<8x32xf32>
    %108 = arith.addf %105, %107 : vector<8x32xf32>
    %109 = arith.addf %102, %108 : vector<8x32xf32>
    %cst_49 = arith.constant dense<0.000000e+00> : vector<8xf32>
    %110 = vector.multi_reduction <add>, %109, %cst_49 [1] : vector<8x32xf32> to vector<8xf32>
    %111 = vector.shape_cast %110 : vector<8xf32> to vector<8x1xf32>
    %cst_50 = arith.constant 3.200000e+01 : f32
    %112 = vector.broadcast %cst_50 : f32 to vector<8x1xf32>
    %113 = arith.divf %111, %112 : vector<8x1xf32>
    %114 = vector.broadcast %113 : vector<8x1xf32> to vector<8x32xf32>
    %115 = arith.subf %109, %114 : vector<8x32xf32>
    %116 = arith.mulf %115, %115 : vector<8x32xf32>
    %cst_51 = arith.constant dense<0.000000e+00> : vector<8xf32>
    %117 = vector.multi_reduction <add>, %116, %cst_51 [1] : vector<8x32xf32> to vector<8xf32>
    %118 = vector.shape_cast %117 : vector<8xf32> to vector<8x1xf32>
    %cst_52 = arith.constant 3.200000e+01 : f32
    %119 = vector.broadcast %cst_52 : f32 to vector<8x1xf32>
    %120 = arith.divf %118, %119 : vector<8x1xf32>
    %cst_53 = arith.constant 9.99999974E-6 : f32
    %121 = vector.broadcast %cst_53 : f32 to vector<8x1xf32>
    %122 = arith.addf %120, %121 : vector<8x1xf32>
    %123 = math.rsqrt %122 : vector<8x1xf32>
    %124 = vector.broadcast %123 : vector<8x1xf32> to vector<8x32xf32>
    %125 = arith.mulf %115, %124 : vector<8x32xf32>
    %c11 = arith.constant 11 : index
    %c0_54 = arith.constant 0 : index
    %126 = vector.load %arg3[%c11, %c0_54] : memref<16x32xf32, #tpu.memory_space<vmem>>, vector<1x32xf32>
    %127 = vector.broadcast %126 : vector<1x32xf32> to vector<8x32xf32>
    %128 = arith.mulf %125, %127 : vector<8x32xf32>
    %c12 = arith.constant 12 : index
    %c0_55 = arith.constant 0 : index
    %129 = vector.load %arg3[%c12, %c0_55] : memref<16x32xf32, #tpu.memory_space<vmem>>, vector<1x32xf32>
    %130 = vector.broadcast %129 : vector<1x32xf32> to vector<8x32xf32>
    %131 = arith.addf %128, %130 : vector<8x32xf32>
    %132 = arith.truncf %131 : vector<8x32xf32> to vector<8x32xbf16>
    %c0_56 = arith.constant 0 : index
    %c0_57 = arith.constant 0 : index
    %133 = vector.load %arg10[%c0_56, %c0_57] : memref<32x2048xbf16, #tpu.memory_space<vmem>>, vector<32x2048xbf16>
    %cst_58 = arith.constant dense<0.000000e+00> : vector<8x2048xf32>
    %134 = tpu.matmul %132, %133, %cst_58 {dimension_numbers = #tpu.dot_dimension_numbers<[1], [0], [0], [1], [0, 0, 1, 1], [], []>} : vector<8x32xbf16>, vector<32x2048xbf16>, vector<8x2048xf32> -> vector<8x2048xf32>
    %c1_59 = arith.constant 1 : index
    %c0_60 = arith.constant 0 : index
    %135 = vector.load %arg4[%c1_59, %c0_60] : memref<2x2048xf32, #tpu.memory_space<vmem>>, vector<1x2048xf32>
    %136 = vector.broadcast %135 : vector<1x2048xf32> to vector<8x2048xf32>
    %137 = arith.addf %134, %136 : vector<8x2048xf32>
    %cst_61 = arith.constant 0.000000e+00 : f32
    %138 = vector.broadcast %cst_61 : f32 to vector<8x2048xf32>
    %139 = arith.maximumf %137, %138 : vector<8x2048xf32>
    %140 = arith.truncf %139 : vector<8x2048xf32> to vector<8x2048xbf16>
    %c0_62 = arith.constant 0 : index
    %c0_63 = arith.constant 0 : index
    %141 = vector.load %arg11[%c0_62, %c0_63] : memref<2048x32xbf16, #tpu.memory_space<vmem>>, vector<2048x32xbf16>
    %cst_64 = arith.constant dense<0.000000e+00> : vector<8x32xf32>
    %142 = tpu.matmul %140, %141, %cst_64 {dimension_numbers = #tpu.dot_dimension_numbers<[1], [0], [0], [1], [0, 0, 1, 1], [], []>} : vector<8x2048xbf16>, vector<2048x32xbf16>, vector<8x32xf32> -> vector<8x32xf32>
    %c13 = arith.constant 13 : index
    %c0_65 = arith.constant 0 : index
    %143 = vector.load %arg3[%c13, %c0_65] : memref<16x32xf32, #tpu.memory_space<vmem>>, vector<1x32xf32>
    %144 = vector.broadcast %143 : vector<1x32xf32> to vector<8x32xf32>
    %145 = arith.addf %142, %144 : vector<8x32xf32>
    %146 = arith.addf %131, %145 : vector<8x32xf32>
    %cst_66 = arith.constant dense<0.000000e+00> : vector<8xf32>
    %147 = vector.multi_reduction <add>, %146, %cst_66 [1] : vector<8x32xf32> to vector<8xf32>
    %148 = vector.shape_cast %147 : vector<8xf32> to vector<8x1xf32>
    %cst_67 = arith.constant 3.200000e+01 : f32
    %149 = vector.broadcast %cst_67 : f32 to vector<8x1xf32>
    %150 = arith.divf %148, %149 : vector<8x1xf32>
    %151 = vector.broadcast %150 : vector<8x1xf32> to vector<8x32xf32>
    %152 = arith.subf %146, %151 : vector<8x32xf32>
    %153 = arith.mulf %152, %152 : vector<8x32xf32>
    %cst_68 = arith.constant dense<0.000000e+00> : vector<8xf32>
    %154 = vector.multi_reduction <add>, %153, %cst_68 [1] : vector<8x32xf32> to vector<8xf32>
    %155 = vector.shape_cast %154 : vector<8xf32> to vector<8x1xf32>
    %cst_69 = arith.constant 3.200000e+01 : f32
    %156 = vector.broadcast %cst_69 : f32 to vector<8x1xf32>
    %157 = arith.divf %155, %156 : vector<8x1xf32>
    %cst_70 = arith.constant 9.99999974E-6 : f32
    %158 = vector.broadcast %cst_70 : f32 to vector<8x1xf32>
    %159 = arith.addf %157, %158 : vector<8x1xf32>
    %160 = math.rsqrt %159 : vector<8x1xf32>
    %161 = vector.broadcast %160 : vector<8x1xf32> to vector<8x32xf32>
    %162 = arith.mulf %152, %161 : vector<8x32xf32>
    %c14 = arith.constant 14 : index
    %c0_71 = arith.constant 0 : index
    %163 = vector.load %arg3[%c14, %c0_71] : memref<16x32xf32, #tpu.memory_space<vmem>>, vector<1x32xf32>
    %164 = vector.broadcast %163 : vector<1x32xf32> to vector<8x32xf32>
    %165 = arith.mulf %162, %164 : vector<8x32xf32>
    %c15 = arith.constant 15 : index
    %c0_72 = arith.constant 0 : index
    %166 = vector.load %arg3[%c15, %c0_72] : memref<16x32xf32, #tpu.memory_space<vmem>>, vector<1x32xf32>
    %167 = vector.broadcast %166 : vector<1x32xf32> to vector<8x32xf32>
    %168 = arith.addf %165, %167 : vector<8x32xf32>
    %169 = arith.truncf %168 : vector<8x32xf32> to vector<8x32xbf16>
    %c0_73 = arith.constant 0 : index
    %c0_74 = arith.constant 0 : index
    %170 = vector.load %arg12[%c0_73, %c0_74] : memref<32x1024xbf16, #tpu.memory_space<vmem>>, vector<32x1024xbf16>
    %cst_75 = arith.constant dense<0.000000e+00> : vector<8x1024xf32>
    %171 = tpu.matmul %169, %170, %cst_75 {dimension_numbers = #tpu.dot_dimension_numbers<[1], [0], [0], [1], [0, 0, 1, 1], [], []>} : vector<8x32xbf16>, vector<32x1024xbf16>, vector<8x1024xf32> -> vector<8x1024xf32>
    %c0_76 = arith.constant 0 : index
    %c0_77 = arith.constant 0 : index
    %172 = vector.load %arg13[%c0_76, %c0_77] : memref<1x1024xf32, #tpu.memory_space<vmem>>, vector<1x1024xf32>
    %173 = vector.broadcast %172 : vector<1x1024xf32> to vector<8x1024xf32>
    %174 = arith.addf %171, %173 : vector<8x1024xf32>
    %cst_78 = arith.constant 0.000000e+00 : f32
    %175 = vector.broadcast %cst_78 : f32 to vector<8x1024xf32>
    %176 = arith.maximumf %174, %175 : vector<8x1024xf32>
    %c0_79 = arith.constant 0 : index
    %c0_80 = arith.constant 0 : index
    %177 = vector.load %arg14[%c0_79, %c0_80] : memref<8x1024xf32, #tpu.memory_space<vmem>>, vector<8x1024xf32>
    tpu.vector_store %arg14[%c0_79, %c0_80], %176 {strides = array<i32>} : memref<8x1024xf32, #tpu.memory_space<vmem>>, vector<8x1024xf32>,
    return
  }
  func.func @transform_0(%arg0: i32) -> (i32, i32) {
    %c0_i32 = arith.constant 0 : i32
    %c0_i32_0 = arith.constant 0 : i32
    return %arg0, %c0_i32 : i32, i32
  }
  func.func @transform_1(%arg0: i32) -> (i32, i32) {
    %c0_i32 = arith.constant 0 : i32
    %c0_i32_0 = arith.constant 0 : i32
    %c0_i32_1 = arith.constant 0 : i32
    return %c0_i32, %c0_i32_0 : i32, i32
  }
  func.func @transform_2(%arg0: i32) -> (i32, i32) {
    %c0_i32 = arith.constant 0 : i32
    %c0_i32_0 = arith.constant 0 : i32
    %c0_i32_1 = arith.constant 0 : i32
    return %c0_i32, %c0_i32_0 : i32, i32
  }
  func.func @transform_3(%arg0: i32) -> (i32, i32) {
    %c0_i32 = arith.constant 0 : i32
    %c0_i32_0 = arith.constant 0 : i32
    %c0_i32_1 = arith.constant 0 : i32
    return %c0_i32, %c0_i32_0 : i32, i32
  }
  func.func @transform_4(%arg0: i32) -> (i32, i32) {
    %c0_i32 = arith.constant 0 : i32
    %c0_i32_0 = arith.constant 0 : i32
    %c0_i32_1 = arith.constant 0 : i32
    return %c0_i32, %c0_i32_0 : i32, i32
  }
  func.func @transform_5(%arg0: i32) -> (i32, i32) {
    %c0_i32 = arith.constant 0 : i32
    %c0_i32_0 = arith.constant 0 : i32
    %c0_i32_1 = arith.constant 0 : i32
    return %c0_i32, %c0_i32_0 : i32, i32
  }
  func.func @transform_6(%arg0: i32) -> (i32, i32) {
    %c0_i32 = arith.constant 0 : i32
    %c0_i32_0 = arith.constant 0 : i32
    %c0_i32_1 = arith.constant 0 : i32
    return %c0_i32, %c0_i32_0 : i32, i32
  }
  func.func @transform_7(%arg0: i32) -> (i32, i32) {
    %c0_i32 = arith.constant 0 : i32
    %c0_i32_0 = arith.constant 0 : i32
    %c0_i32_1 = arith.constant 0 : i32
    return %c0_i32, %c0_i32_0 : i32, i32
  }
  func.func @transform_8(%arg0: i32) -> (i32, i32) {
    %c0_i32 = arith.constant 0 : i32
    %c0_i32_0 = arith.constant 0 : i32
    %c0_i32_1 = arith.constant 0 : i32
    return %c0_i32, %c0_i32_0 : i32, i32
  }
  func.func @transform_9(%arg0: i32) -> (i32, i32) {
    %c0_i32 = arith.constant 0 : i32
    %c0_i32_0 = arith.constant 0 : i32
    %c0_i32_1 = arith.constant 0 : i32
    return %c0_i32, %c0_i32_0 : i32, i32
  }
  func.func @transform_10(%arg0: i32) -> (i32, i32) {
    %c0_i32 = arith.constant 0 : i32
    %c0_i32_0 = arith.constant 0 : i32
    %c0_i32_1 = arith.constant 0 : i32
    return %c0_i32, %c0_i32_0 : i32, i32
  }
  func.func @transform_11(%arg0: i32) -> (i32, i32) {
    %c0_i32 = arith.constant 0 : i32
    %c0_i32_0 = arith.constant 0 : i32
    %c0_i32_1 = arith.constant 0 : i32
    return %c0_i32, %c0_i32_0 : i32, i32
  }
  func.func @transform_12(%arg0: i32) -> (i32, i32) {
    %c0_i32 = arith.constant 0 : i32
    %c0_i32_0 = arith.constant 0 : i32
    %c0_i32_1 = arith.constant 0 : i32
    return %c0_i32, %c0_i32_0 : i32, i32
  }
  func.func @transform_13(%arg0: i32) -> (i32, i32) {
    %c0_i32 = arith.constant 0 : i32
    %c0_i32_0 = arith.constant 0 : i32
    return %arg0, %c0_i32 : i32, i32
  }
}

</mosaic_0001>

<llo_original>
// kernel: tpu_custom_call.1
$region0: #{tpu_custom_call.1}
  #allocation0 [shape = 'u32[]', space=smem, size = 0x4, offset = 0x4, fixed_abs, tag = 'smem constant byte address 0x4 - core index']
  #allocation1 [shape = 'u32[144,128]{1,0:T(1,128)}', space=vmem, size = 0x12000, scoped, tag = 'internal scratch']
  %s0 = inlined_call_operand.vmem [shape: bf16[8,1024], index: 0, kind: input, shape index: {}]
  %s1 = inlined_call_operand.vmem [shape: bf16[1024,32], index: 1, kind: input, shape index: {}]
  %s2 = inlined_call_operand.vmem [shape: f32[16,32], index: 2, kind: input, shape index: {}]
  %s3 = inlined_call_operand.vmem [shape: f32[2,2048], index: 3, kind: input, shape index: {}]
  %s4 = inlined_call_operand.vmem [shape: bf16[32,32], index: 4, kind: input, shape index: {}]
  %s5 = inlined_call_operand.vmem [shape: bf16[32,2048], index: 5, kind: input, shape index: {}]
  %s6 = inlined_call_operand.vmem [shape: bf16[2048,32], index: 6, kind: input, shape index: {}]
  %s7 = inlined_call_operand.vmem [shape: bf16[32,32], index: 7, kind: input, shape index: {}]
  %s8 = inlined_call_operand.vmem [shape: bf16[32,32], index: 8, kind: input, shape index: {}]
  %s9 = inlined_call_operand.vmem [shape: bf16[32,2048], index: 9, kind: input, shape index: {}]
  %s10 = inlined_call_operand.vmem [shape: bf16[2048,32], index: 10, kind: input, shape index: {}]
  %s11 = inlined_call_operand.vmem [shape: bf16[32,1024], index: 11, kind: input, shape index: {}]
  %s12 = inlined_call_operand.vmem [shape: f32[1,1024], index: 12, kind: input, shape index: {}]
  %s13 = inlined_call_operand.hbm [shape: f32[8,1024], index: 13, kind: output, shape index: {}]
  %s14 = sld [smem:[#allocation0]]
  $region62: #{tpu_custom_call.1} parent=0
    _
  %s16 = ssub.s32 1, %s14
  %s17 = scalar_select 0, %s16, %s14
  $region1: #{tpu_custom_call.1} parent=0
    #allocation2 [shape = 'u8[32768]{0}', space=vmem, size = 0x8000, scoped, tag = 'output window, operand 0, single buffered']
    #allocation3 [shape = 's32[1]{0}', space=sflag, size = 0x4, scoped, tag = 'scoped memory for tpu_custom_call.1']
    %18 = vsyncpa [#allocation3], 0
    // Predicated region
    $region2: #{tpu_custom_call.1} parent=1 // pred_check
      _
    $region3: #{tpu_custom_call.1} parent=1 // pred_check_branch
      %20 = sbr.rel (0) target = $region5
    $region4: #{tpu_custom_call.1} parent=1 // pred_region
      _
    $region5: #{tpu_custom_call.1} parent=1 // pred_fallthru
      _
    // Predicated region
    $region6: #{tpu_custom_call.1} parent=1 // pred_check
      _
    $region7: #{tpu_custom_call.1} parent=1 // pred_check_branch
      %22 = sbr.rel (0) target = $region9
    $region8: #{tpu_custom_call.1} parent=1 // pred_region
      _
    $region9: #{tpu_custom_call.1} parent=1 // pred_fallthru
      _
    // Predicated region
    $region10: #{tpu_custom_call.1} parent=1 // pred_check
      _
    $region11: #{tpu_custom_call.1} parent=1 // pred_check_branch
      %24 = sbr.rel (0) target = $region13
    $region12: #{tpu_custom_call.1} parent=1 // pred_region
      _
    $region13: #{tpu_custom_call.1} parent=1 // pred_fallthru
      _
    // Predicated region
    $region14: #{tpu_custom_call.1} parent=1 // pred_check
      _
    $region15: #{tpu_custom_call.1} parent=1 // pred_check_branch
      %26 = sbr.rel (0) target = $region17
    $region16: #{tpu_custom_call.1} parent=1 // pred_region
      _
    $region17: #{tpu_custom_call.1} parent=1 // pred_fallthru
      _
    // Predicated region
    $region18: #{tpu_custom_call.1} parent=1 // pred_check
      _
    $region19: #{tpu_custom_call.1} parent=1 // pred_check_branch
      %28 = sbr.rel (0) target = $region21
    $region20: #{tpu_custom_call.1} parent=1 // pred_region
      _
    $region21: #{tpu_custom_call.1} parent=1 // pred_fallthru
      _
    // Predicated region
    $region22: #{tpu_custom_call.1} parent=1 // pred_check
      _
    $region23: #{tpu_custom_call.1} parent=1 // pred_check_branch
      %30 = sbr.rel (0) target = $region25
    $region24: #{tpu_custom_call.1} parent=1 // pred_region
      _
    $region25: #{tpu_custom_call.1} parent=1 // pred_fallthru
      _
    // Predicated region
    $region26: #{tpu_custom_call.1} parent=1 // pred_check
      _
    $region27: #{tpu_custom_call.1} parent=1 // pred_check_branch
      %32 = sbr.rel (0) target = $region29
    $region28: #{tpu_custom_call.1} parent=1 // pred_region
      _
    $region29: #{tpu_custom_call.1} parent=1 // pred_fallthru
      _
    // Predicated region
    $region30: #{tpu_custom_call.1} parent=1 // pred_check
      _
    $region31: #{tpu_custom_call.1} parent=1 // pred_check_branch
      %34 = sbr.rel (0) target = $region33
    $region32: #{tpu_custom_call.1} parent=1 // pred_region
      _
    $region33: #{tpu_custom_call.1} parent=1 // pred_fallthru
      _
    // Predicated region
    $region34: #{tpu_custom_call.1} parent=1 // pred_check
      _
    $region35: #{tpu_custom_call.1} parent=1 // pred_check_branch
      %36 = sbr.rel (0) target = $region37
    $region36: #{tpu_custom_call.1} parent=1 // pred_region
      _
    $region37: #{tpu_custom_call.1} parent=1 // pred_fallthru
      _
    // Predicated region
    $region38: #{tpu_custom_call.1} parent=1 // pred_check
      _
    $region39: #{tpu_custom_call.1} parent=1 // pred_check_branch
      %38 = sbr.rel (0) target = $region41
    $region40: #{tpu_custom_call.1} parent=1 // pred_region
      _
    $region41: #{tpu_custom_call.1} parent=1 // pred_fallthru
      _
    // Predicated region
    $region42: #{tpu_custom_call.1} parent=1 // pred_check
      _
    $region43: #{tpu_custom_call.1} parent=1 // pred_check_branch
      %40 = sbr.rel (0) target = $region45
    $region44: #{tpu_custom_call.1} parent=1 // pred_region
      _
    $region45: #{tpu_custom_call.1} parent=1 // pred_fallthru
      _
    // Predicated region
    $region46: #{tpu_custom_call.1} parent=1 // pred_check
      _
    $region47: #{tpu_custom_call.1} parent=1 // pred_check_branch
      %42 = sbr.rel (0) target = $region49
    $region48: #{tpu_custom_call.1} parent=1 // pred_region
      _
    $region49: #{tpu_custom_call.1} parent=1 // pred_fallthru
      _
    // Predicated region
    $region50: #{tpu_custom_call.1} parent=1 // pred_check
      _
    $region51: #{tpu_custom_call.1} parent=1 // pred_check_branch
      %44 = sbr.rel (0) target = $region53
    $region52: #{tpu_custom_call.1} parent=1 // pred_region
      _
    $region53: #{tpu_custom_call.1} parent=1 // pred_fallthru
      _
    %v46 = vld [vmem:[%s0] sm:$0xff]
    %v47 = vld [vmem:[%s0 + $0x8] sm:$0xff]
    %v48 = vld [vmem:[%s0 + $0x10] sm:$0xff]
    %v49 = vld [vmem:[%s0 + $0x18] sm:$0xff]
    %v50 = vld [vmem:[%s1] sm:$0xf]
    %v51 = vld [vmem:[%s1 + $0x4] sm:$0xf]
    %v52 = vld [vmem:[%s1 + $0x8] sm:$0xf]
    %v53 = vld [vmem:[%s1 + $0xc] sm:$0xf]
    %v54 = vld [vmem:[%s1 + $0x10] sm:$0xf]
    %v55 = vld [vmem:[%s1 + $0x14] sm:$0xf]
    %v56 = vld [vmem:[%s1 + $0x18] sm:$0xf]
    %v57 = vld [vmem:[%s1 + $0x1c] sm:$0xf]
    %v58 = vld [vmem:[%s1 + $0x20] sm:$0xf]
    %v59 = vld [vmem:[%s1 + $0x24] sm:$0xf]
    %v60 = vld [vmem:[%s1 + $0x28] sm:$0xf]
    %v61 = vld [vmem:[%s1 + $0x2c] sm:$0xf]
    %v62 = vld [vmem:[%s1 + $0x30] sm:$0xf]
    %v63 = vld [vmem:[%s1 + $0x34] sm:$0xf]
    %v64 = vld [vmem:[%s1 + $0x38] sm:$0xf]
    %v65 = vld [vmem:[%s1 + $0x3c] sm:$0xf]
    %v66 = vld [vmem:[%s1 + $0x40] sm:$0xf]
    %v67 = vld [vmem:[%s1 + $0x44] sm:$0xf]
    %v68 = vld [vmem:[%s1 + $0x48] sm:$0xf]
    %v69 = vld [vmem:[%s1 + $0x4c] sm:$0xf]
    %v70 = vld [vmem:[%s1 + $0x50] sm:$0xf]
    %v71 = vld [vmem:[%s1 + $0x54] sm:$0xf]
    %v72 = vld [vmem:[%s1 + $0x58] sm:$0xf]
    %v73 = vld [vmem:[%s1 + $0x5c] sm:$0xf]
    %v74 = vld [vmem:[%s1 + $0x60] sm:$0xf]
    %v75 = vld [vmem:[%s1 + $0x64] sm:$0xf]
    %v76 = vld [vmem:[%s1 + $0x68] sm:$0xf]
    %v77 = vld [vmem:[%s1 + $0x6c] sm:$0xf]
    %v78 = vld [vmem:[%s1 + $0x70] sm:$0xf]
    %v79 = vld [vmem:[%s1 + $0x74] sm:$0xf]
    %v80 = vld [vmem:[%s1 + $0x78] sm:$0xf]
    %v81 = vld [vmem:[%s1 + $0x7c] sm:$0xf]
    %v82 = vld [vmem:[%s1 + $0x80] sm:$0xf]
    %v83 = vld [vmem:[%s1 + $0x84] sm:$0xf]
    %v84 = vld [vmem:[%s1 + $0x88] sm:$0xf]
    %v85 = vld [vmem:[%s1 + $0x8c] sm:$0xf]
    %v86 = vld [vmem:[%s1 + $0x90] sm:$0xf]
    %v87 = vld [vmem:[%s1 + $0x94] sm:$0xf]
    %v88 = vld [vmem:[%s1 + $0x98] sm:$0xf]
    %v89 = vld [vmem:[%s1 + $0x9c] sm:$0xf]
    %v90 = vld [vmem:[%s1 + $0xa0] sm:$0xf]
    %v91 = vld [vmem:[%s1 + $0xa4] sm:$0xf]
    %v92 = vld [vmem:[%s1 + $0xa8] sm:$0xf]
    %v93 = vld [vmem:[%s1 + $0xac] sm:$0xf]
    %v94 = vld [vmem:[%s1 + $0xb0] sm:$0xf]
    %v95 = vld [vmem:[%s1 + $0xb4] sm:$0xf]
    %v96 = vld [vmem:[%s1 + $0xb8] sm:$0xf]
    %v97 = vld [vmem:[%s1 + $0xbc] sm:$0xf]
    %v98 = vld [vmem:[%s1 + $0xc0] sm:$0xf]
    %v99 = vld [vmem:[%s1 + $0xc4] sm:$0xf]
    %v100 = vld [vmem:[%s1 + $0xc8] sm:$0xf]
    %v101 = vld [vmem:[%s1 + $0xcc] sm:$0xf]
    %v102 = vld [vmem:[%s1 + $0xd0] sm:$0xf]
    %v103 = vld [vmem:[%s1 + $0xd4] sm:$0xf]
    %v104 = vld [vmem:[%s1 + $0xd8] sm:$0xf]
    %v105 = vld [vmem:[%s1 + $0xdc] sm:$0xf]
    %v106 = vld [vmem:[%s1 + $0xe0] sm:$0xf]
    %v107 = vld [vmem:[%s1 + $0xe4] sm:$0xf]
    %v108 = vld [vmem:[%s1 + $0xe8] sm:$0xf]
    %v109 = vld [vmem:[%s1 + $0xec] sm:$0xf]
    %v110 = vld [vmem:[%s1 + $0xf0] sm:$0xf]
    %v111 = vld [vmem:[%s1 + $0xf4] sm:$0xf]
    %v112 = vld [vmem:[%s1 + $0xf8] sm:$0xf]
    %v113 = vld [vmem:[%s1 + $0xfc] sm:$0xf]
    %v114 = vld [vmem:[%s1 + $0x100] sm:$0xf]
    %v115 = vld [vmem:[%s1 + $0x104] sm:$0xf]
    %v116 = vld [vmem:[%s1 + $0x108] sm:$0xf]
    %v117 = vld [vmem:[%s1 + $0x10c] sm:$0xf]
    %v118 = vld [vmem:[%s1 + $0x110] sm:$0xf]
    %v119 = vld [vmem:[%s1 + $0x114] sm:$0xf]
    %v120 = vld [vmem:[%s1 + $0x118] sm:$0xf]
    %v121 = vld [vmem:[%s1 + $0x11c] sm:$0xf]
    %v122 = vld [vmem:[%s1 + $0x120] sm:$0xf]
    %v123 = vld [vmem:[%s1 + $0x124] sm:$0xf]
    %v124 = vld [vmem:[%s1 + $0x128] sm:$0xf]
    %v125 = vld [vmem:[%s1 + $0x12c] sm:$0xf]
    %v126 = vld [vmem:[%s1 + $0x130] sm:$0xf]
    %v127 = vld [vmem:[%s1 + $0x134] sm:$0xf]
    %v128 = vld [vmem:[%s1 + $0x138] sm:$0xf]
    %v129 = vld [vmem:[%s1 + $0x13c] sm:$0xf]
    %v130 = vld [vmem:[%s1 + $0x140] sm:$0xf]
    %v131 = vld [vmem:[%s1 + $0x144] sm:$0xf]
    %v132 = vld [vmem:[%s1 + $0x148] sm:$0xf]
    %v133 = vld [vmem:[%s1 + $0x14c] sm:$0xf]
    %v134 = vld [vmem:[%s1 + $0x150] sm:$0xf]
    %v135 = vld [vmem:[%s1 + $0x154] sm:$0xf]
    %v136 = vld [vmem:[%s1 + $0x158] sm:$0xf]
    %v137 = vld [vmem:[%s1 + $0x15c] sm:$0xf]
    %v138 = vld [vmem:[%s1 + $0x160] sm:$0xf]
    %v139 = vld [vmem:[%s1 + $0x164] sm:$0xf]
    %v140 = vld [vmem:[%s1 + $0x168] sm:$0xf]
    %v141 = vld [vmem:[%s1 + $0x16c] sm:$0xf]
    %v142 = vld [vmem:[%s1 + $0x170] sm:$0xf]
    %v143 = vld [vmem:[%s1 + $0x174] sm:$0xf]
    %v144 = vld [vmem:[%s1 + $0x178] sm:$0xf]
    %v145 = vld [vmem:[%s1 + $0x17c] sm:$0xf]
    %v146 = vld [vmem:[%s1 + $0x180] sm:$0xf]
    %v147 = vld [vmem:[%s1 + $0x184] sm:$0xf]
    %v148 = vld [vmem:[%s1 + $0x188] sm:$0xf]
    %v149 = vld [vmem:[%s1 + $0x18c] sm:$0xf]
    %v150 = vld [vmem:[%s1 + $0x190] sm:$0xf]
    %v151 = vld [vmem:[%s1 + $0x194] sm:$0xf]
    %v152 = vld [vmem:[%s1 + $0x198] sm:$0xf]
    %v153 = vld [vmem:[%s1 + $0x19c] sm:$0xf]
    %v154 = vld [vmem:[%s1 + $0x1a0] sm:$0xf]
    %v155 = vld [vmem:[%s1 + $0x1a4] sm:$0xf]
    %v156 = vld [vmem:[%s1 + $0x1a8] sm:$0xf]
    %v157 = vld [vmem:[%s1 + $0x1ac] sm:$0xf]
    %v158 = vld [vmem:[%s1 + $0x1b0] sm:$0xf]
    %v159 = vld [vmem:[%s1 + $0x1b4] sm:$0xf]
    %v160 = vld [vmem:[%s1 + $0x1b8] sm:$0xf]
    %v161 = vld [vmem:[%s1 + $0x1bc] sm:$0xf]
    %v162 = vld [vmem:[%s1 + $0x1c0] sm:$0xf]
    %v163 = vld [vmem:[%s1 + $0x1c4] sm:$0xf]
    %v164 = vld [vmem:[%s1 + $0x1c8] sm:$0xf]
    %v165 = vld [vmem:[%s1 + $0x1cc] sm:$0xf]
    %v166 = vld [vmem:[%s1 + $0x1d0] sm:$0xf]
    %v167 = vld [vmem:[%s1 + $0x1d4] sm:$0xf]
    %v168 = vld [vmem:[%s1 + $0x1d8] sm:$0xf]
    %v169 = vld [vmem:[%s1 + $0x1dc] sm:$0xf]
    %v170 = vld [vmem:[%s1 + $0x1e0] sm:$0xf]
    %v171 = vld [vmem:[%s1 + $0x1e4] sm:$0xf]
    %v172 = vld [vmem:[%s1 + $0x1e8] sm:$0xf]
    %v173 = vld [vmem:[%s1 + $0x1ec] sm:$0xf]
    %v174 = vld [vmem:[%s1 + $0x1f0] sm:$0xf]
    %v175 = vld [vmem:[%s1 + $0x1f4] sm:$0xf]
    %v176 = vld [vmem:[%s1 + $0x1f8] sm:$0xf]
    %v177 = vld [vmem:[%s1 + $0x1fc] sm:$0xf]
    %v178 = vld [vmem:[%s2] sm:$0x1]
    %v179 = vlaneseq
    %v180 = vshrl.u32 %v179, 7
    %v181 = vsub.s32 0, %v180
    %v182 = vrot.slane %v178, %v181
    %v187 = vunpack.c.l.b16 %v46
    %v188 = vunpack.c.h.b16 %v46
    %v189 = vunpack.c.l.b16 %v47
    %v190 = vunpack.c.h.b16 %v47
    %v191 = vunpack.c.l.b16 %v48
    %v192 = vunpack.c.h.b16 %v48
    %v193 = vunpack.c.l.b16 %v49
    %v194 = vunpack.c.h.b16 %v49
    %v195 = vpack.c.b16 %v187, %v187
    %v196 = vpack.c.b16 %v188, %v188
    %v197 = vpack.c.b16 %v189, %v189
    %v198 = vpack.c.b16 %v190, %v190
    %v199 = vpack.c.b16 %v191, %v191
    %v200 = vpack.c.b16 %v192, %v192
    %v201 = vpack.c.b16 %v193, %v193
    %v202 = vpack.c.b16 %v194, %v194
    %v339 = vunpack.c.l.b16 %v50
    %v340 = vunpack.c.l.b16 %v51
    %v341 = vunpack.c.l.b16 %v52
    %v342 = vunpack.c.l.b16 %v53
    %v343 = vunpack.c.l.b16 %v54
    %v344 = vunpack.c.l.b16 %v55
    %v345 = vunpack.c.l.b16 %v56
    %v346 = vunpack.c.l.b16 %v57
    %v347 = vunpack.c.l.b16 %v58
    %v348 = vunpack.c.l.b16 %v59
    %v349 = vunpack.c.l.b16 %v60
    %v350 = vunpack.c.l.b16 %v61
    %v351 = vunpack.c.l.b16 %v62
    %v352 = vunpack.c.l.b16 %v63
    %v353 = vunpack.c.l.b16 %v64
    %v354 = vunpack.c.l.b16 %v65
    %v355 = vunpack.c.l.b16 %v66
    %v356 = vunpack.c.l.b16 %v67
    %v357 = vunpack.c.l.b16 %v68
    %v358 = vunpack.c.l.b16 %v69
    %v359 = vunpack.c.l.b16 %v70
    %v360 = vunpack.c.l.b16 %v71
    %v361 = vunpack.c.l.b16 %v72
    %v362 = vunpack.c.l.b16 %v73
    %v363 = vunpack.c.l.b16 %v74
    %v364 = vunpack.c.l.b16 %v75
    %v365 = vunpack.c.l.b16 %v76
    %v366 = vunpack.c.l.b16 %v77
    %v367 = vunpack.c.l.b16 %v78
    %v368 = vunpack.c.l.b16 %v79
    %v369 = vunpack.c.l.b16 %v80
    %v370 = vunpack.c.l.b16 %v81
    %v371 = vunpack.c.l.b16 %v82
    %v372 = vunpack.c.l.b16 %v83
    %v373 = vunpack.c.l.b16 %v84
    %v374 = vunpack.c.l.b16 %v85
    %v375 = vunpack.c.l.b16 %v86
    %v376 = vunpack.c.l.b16 %v87
    %v377 = vunpack.c.l.b16 %v88
    %v378 = vunpack.c.l.b16 %v89
    %v379 = vunpack.c.l.b16 %v90
    %v380 = vunpack.c.l.b16 %v91
    %v381 = vunpack.c.l.b16 %v92
    %v382 = vunpack.c.l.b16 %v93
    %v383 = vunpack.c.l.b16 %v94
    %v384 = vunpack.c.l.b16 %v95
    %v385 = vunpack.c.l.b16 %v96
    %v386 = vunpack.c.l.b16 %v97
    %v387 = vunpack.c.l.b16 %v98
    %v388 = vunpack.c.l.b16 %v99
    %v389 = vunpack.c.l.b16 %v100
    %v390 = vunpack.c.l.b16 %v101
    %v391 = vunpack.c.l.b16 %v102
    %v392 = vunpack.c.l.b16 %v103
    %v393 = vunpack.c.l.b16 %v104
    %v394 = vunpack.c.l.b16 %v105
    %v395 = vunpack.c.l.b16 %v106
    %v396 = vunpack.c.l.b16 %v107
    %v397 = vunpack.c.l.b16 %v108
    %v398 = vunpack.c.l.b16 %v109
    %v399 = vunpack.c.l.b16 %v110
    %v400 = vunpack.c.l.b16 %v111
    %v401 = vunpack.c.l.b16 %v112
    %v402 = vunpack.c.l.b16 %v113
    %v403 = vunpack.c.l.b16 %v114
    %v404 = vunpack.c.l.b16 %v115
    %v405 = vunpack.c.l.b16 %v116
    %v406 = vunpack.c.l.b16 %v117
    %v407 = vunpack.c.l.b16 %v118
    %v408 = vunpack.c.l.b16 %v119
    %v409 = vunpack.c.l.b16 %v120
    %v410 = vunpack.c.l.b16 %v121
    %v411 = vunpack.c.l.b16 %v122
    %v412 = vunpack.c.l.b16 %v123
    %v413 = vunpack.c.l.b16 %v124
    %v414 = vunpack.c.l.b16 %v125
    %v415 = vunpack.c.l.b16 %v126
    %v416 = vunpack.c.l.b16 %v127
    %v417 = vunpack.c.l.b16 %v128
    %v418 = vunpack.c.l.b16 %v129
    %v419 = vunpack.c.l.b16 %v130
    %v420 = vunpack.c.l.b16 %v131
    %v421 = vunpack.c.l.b16 %v132
    %v422 = vunpack.c.l.b16 %v133
    %v423 = vunpack.c.l.b16 %v134
    %v424 = vunpack.c.l.b16 %v135
    %v425 = vunpack.c.l.b16 %v136
    %v426 = vunpack.c.l.b16 %v137
    %v427 = vunpack.c.l.b16 %v138
    %v428 = vunpack.c.l.b16 %v139
    %v429 = vunpack.c.l.b16 %v140
    %v430 = vunpack.c.l.b16 %v141
    %v431 = vunpack.c.l.b16 %v142
    %v432 = vunpack.c.l.b16 %v143
    %v433 = vunpack.c.l.b16 %v144
    %v434 = vunpack.c.l.b16 %v145
    %v435 = vunpack.c.l.b16 %v146
    %v436 = vunpack.c.l.b16 %v147
    %v437 = vunpack.c.l.b16 %v148
    %v438 = vunpack.c.l.b16 %v149
    %v439 = vunpack.c.l.b16 %v150
    %v440 = vunpack.c.l.b16 %v151
    %v441 = vunpack.c.l.b16 %v152
    %v442 = vunpack.c.l.b16 %v153
    %v443 = vunpack.c.l.b16 %v154
    %v444 = vunpack.c.l.b16 %v155
    %v445 = vunpack.c.l.b16 %v156
    %v446 = vunpack.c.l.b16 %v157
    %v447 = vunpack.c.l.b16 %v158
    %v448 = vunpack.c.l.b16 %v159
    %v449 = vunpack.c.l.b16 %v160
    %v450 = vunpack.c.l.b16 %v161
    %v451 = vunpack.c.l.b16 %v162
    %v452 = vunpack.c.l.b16 %v163
    %v453 = vunpack.c.l.b16 %v164
    %v454 = vunpack.c.l.b16 %v165
    %v455 = vunpack.c.l.b16 %v166
    %v456 = vunpack.c.l.b16 %v167
    %v457 = vunpack.c.l.b16 %v168
    %v458 = vunpack.c.l.b16 %v169
    %v459 = vunpack.c.l.b16 %v170
    %v460 = vunpack.c.l.b16 %v171
    %v461 = vunpack.c.l.b16 %v172
    %v462 = vunpack.c.l.b16 %v173
    %v463 = vunpack.c.l.b16 %v174
    %v464 = vunpack.c.l.b16 %v175
    %v465 = vunpack.c.l.b16 %v176
    %v466 = vunpack.c.l.b16 %v177
    %v467 = vpack.c.b16 %v340, %v339
    %v468 = vpack.c.b16 %v342, %v341
    %v469 = vpack.c.b16 %v344, %v343
    %v470 = vpack.c.b16 %v346, %v345
    %v471 = vpack.c.b16 %v348, %v347
    %v472 = vpack.c.b16 %v350, %v349
    %v473 = vpack.c.b16 %v352, %v351
    %v474 = vpack.c.b16 %v354, %v353
    %v475 = vpack.c.b16 %v356, %v355
    %v476 = vpack.c.b16 %v358, %v357
    %v477 = vpack.c.b16 %v360, %v359
    %v478 = vpack.c.b16 %v362, %v361
    %v479 = vpack.c.b16 %v364, %v363
    %v480 = vpack.c.b16 %v366, %v365
    %v481 = vpack.c.b16 %v368, %v367
    %v482 = vpack.c.b16 %v370, %v369
    %v483 = vpack.c.b16 %v372, %v371
    %v484 = vpack.c.b16 %v374, %v373
    %v485 = vpack.c.b16 %v376, %v375
    %v486 = vpack.c.b16 %v378, %v377
    %v487 = vpack.c.b16 %v380, %v379
    %v488 = vpack.c.b16 %v382, %v381
    %v489 = vpack.c.b16 %v384, %v383
    %v490 = vpack.c.b16 %v386, %v385
    %v491 = vpack.c.b16 %v388, %v387
    %v492 = vpack.c.b16 %v390, %v389
    %v493 = vpack.c.b16 %v392, %v391
    %v494 = vpack.c.b16 %v394, %v393
    %v495 = vpack.c.b16 %v396, %v395
    %v496 = vpack.c.b16 %v398, %v397
    %v497 = vpack.c.b16 %v400, %v399
    %v498 = vpack.c.b16 %v402, %v401
    %v499 = vpack.c.b16 %v404, %v403
    %v500 = vpack.c.b16 %v406, %v405
    %v501 = vpack.c.b16 %v408, %v407
    %v502 = vpack.c.b16 %v410, %v409
    %v503 = vpack.c.b16 %v412, %v411
    %v504 = vpack.c.b16 %v414, %v413
    %v505 = vpack.c.b16 %v416, %v415
    %v506 = vpack.c.b16 %v418, %v417
    %v507 = vpack.c.b16 %v420, %v419
    %v508 = vpack.c.b16 %v422, %v421
    %v509 = vpack.c.b16 %v424, %v423
    %v510 = vpack.c.b16 %v426, %v425
    %v511 = vpack.c.b16 %v428, %v427
    %v512 = vpack.c.b16 %v430, %v429
    %v513 = vpack.c.b16 %v432, %v431
    %v514 = vpack.c.b16 %v434, %v433
    %v515 = vpack.c.b16 %v436, %v435
    %v516 = vpack.c.b16 %v438, %v437
    %v517 = vpack.c.b16 %v440, %v439
    %v518 = vpack.c.b16 %v442, %v441
    %v519 = vpack.c.b16 %v444, %v443
    %v520 = vpack.c.b16 %v446, %v445
    %v521 = vpack.c.b16 %v448, %v447
    %v522 = vpack.c.b16 %v450, %v449
    %v523 = vpack.c.b16 %v452, %v451
    %v524 = vpack.c.b16 %v454, %v453
    %v525 = vpack.c.b16 %v456, %v455
    %v526 = vpack.c.b16 %v458, %v457
    %v527 = vpack.c.b16 %v460, %v459
    %v528 = vpack.c.b16 %v462, %v461
    %v529 = vpack.c.b16 %v464, %v463
    %v530 = vpack.c.b16 %v466, %v465
    %595 = vmatprep.subr.bf16.mxu0 0
    %596 = vmatpush1.bf16.msra.mxu0 %v467
    %597 = vmatprep.subr.bf16.mxu0 0
    %598 = vmatpush1.bf16.msra.mxu0 %v468
    %599 = vmatprep.subr.bf16.mxu0 0
    %600 = vmatpush1.bf16.msra.mxu0 %v469
    %601 = vmatprep.subr.bf16.mxu0 0
    %602 = vmatpush1.bf16.msra.mxu0 %v470
    %603 = vmatprep.subr.bf16.mxu0 0
    %604 = vmatpush1.bf16.msra.mxu0 %v471
    %605 = vmatprep.subr.bf16.mxu0 0
    %606 = vmatpush1.bf16.msra.mxu0 %v472
    %607 = vmatprep.subr.bf16.mxu0 0
    %608 = vmatpush1.bf16.msra.mxu0 %v473
    %609 = vmatprep.subr.bf16.mxu0 0
    %610 = vmatpush1.bf16.msra.mxu0 %v474
    %611 = vmatprep.subr.bf16.mxu0 0
    %612 = vmatpush1.bf16.msra.mxu0 %v475
    %613 = vmatprep.subr.bf16.mxu0 0
    %614 = vmatpush1.bf16.msra.mxu0 %v476
    %615 = vmatprep.subr.bf16.mxu0 0
    %616 = vmatpush1.bf16.msra.mxu0 %v477
    %617 = vmatprep.subr.bf16.mxu0 0
    %618 = vmatpush1.bf16.msra.mxu0 %v478
    %619 = vmatprep.subr.bf16.mxu0 0
    %620 = vmatpush1.bf16.msra.mxu0 %v479
    %621 = vmatprep.subr.bf16.mxu0 0
    %622 = vmatpush1.bf16.msra.mxu0 %v480
    %623 = vmatprep.subr.bf16.mxu0 0
    %624 = vmatpush1.bf16.msra.mxu0 %v481
    %625 = vmatprep.subr.bf16.mxu0 0
    %626 = vmatpush1.bf16.msra.mxu0 %v482
    %627 = vmatprep.mubr.bf16.mxu0 %v196
    %628 = vmatmul.mubr.bf16.gmra.mrb[0].mxu0 %v195
    %v629 = vpop.f32.mrb[0].mxu0
    %v630 = vadd.f32 %v182, %v629
    %v631 = vpop.f32.mrb[0].mxu0
    %v632 = vpop.f32.mrb[0].mxu0
    %v633 = vpop.f32.mrb[0].mxu0
    %634 = vdwg.mxu0
    %635 = vmatprep.subr.bf16.mxu0 0
    %636 = vmatpush1.bf16.msra.mxu0 %v483
    %637 = vmatprep.subr.bf16.mxu0 0
    %638 = vmatpush1.bf16.msra.mxu0 %v484
    %639 = vmatprep.subr.bf16.mxu0 0
    %640 = vmatpush1.bf16.msra.mxu0 %v485
    %641 = vmatprep.subr.bf16.mxu0 0
    %642 = vmatpush1.bf16.msra.mxu0 %v486
    %643 = vmatprep.subr.bf16.mxu0 0
    %644 = vmatpush1.bf16.msra.mxu0 %v487
    %645 = vmatprep.subr.bf16.mxu0 0
    %646 = vmatpush1.bf16.msra.mxu0 %v488
    %647 = vmatprep.subr.bf16.mxu0 0
    %648 = vmatpush1.bf16.msra.mxu0 %v489
    %649 = vmatprep.subr.bf16.mxu0 0
    %650 = vmatpush1.bf16.msra.mxu0 %v490
    %651 = vmatprep.subr.bf16.mxu0 0
    %652 = vmatpush1.bf16.msra.mxu0 %v491
    %653 = vmatprep.subr.bf16.mxu0 0
    %654 = vmatpush1.bf16.msra.mxu0 %v492
    %655 = vmatprep.subr.bf16.mxu0 0
    %656 = vmatpush1.bf16.msra.mxu0 %v493
    %657 = vmatprep.subr.bf16.mxu0 0
    %658 = vmatpush1.bf16.msra.mxu0 %v494
    %659 = vmatprep.subr.bf16.mxu0 0
    %660 = vmatpush1.bf16.msra.mxu0 %v495
    %661 = vmatprep.subr.bf16.mxu0 0
    %662 = vmatpush1.bf16.msra.mxu0 %v496
    %663 = vmatprep.subr.bf16.mxu0 0
    %664 = vmatpush1.bf16.msra.mxu0 %v497
    %665 = vmatprep.subr.bf16.mxu0 0
    %666 = vmatpush1.bf16.msra.mxu0 %v498
    %667 = vmatprep.mubr.bf16.mxu0 %v198
    %668 = vmatmul.mubr.bf16.gmra.mrb[0].mxu0 %v197
    %v669 = vpop.f32.mrb[0].mxu0
    %v670 = vadd.f32 %v630, %v669
    %v671 = vpop.f32.mrb[0].mxu0
    %v672 = vpop.f32.mrb[0].mxu0
    %v673 = vpop.f32.mrb[0].mxu0
    %674 = vdwg.mxu0
    %675 = vmatprep.subr.bf16.mxu0 0
    %676 = vmatpush1.bf16.msra.mxu0 %v499
    %677 = vmatprep.subr.bf16.mxu0 0
    %678 = vmatpush1.bf16.msra.mxu0 %v500
    %679 = vmatprep.subr.bf16.mxu0 0
    %680 = vmatpush1.bf16.msra.mxu0 %v501
    %681 = vmatprep.subr.bf16.mxu0 0
    %682 = vmatpush1.bf16.msra.mxu0 %v502
    %683 = vmatprep.subr.bf16.mxu0 0
    %684 = vmatpush1.bf16.msra.mxu0 %v503
    %685 = vmatprep.subr.bf16.mxu0 0
    %686 = vmatpush1.bf16.msra.mxu0 %v504
    %687 = vmatprep.subr.bf16.mxu0 0
    %688 = vmatpush1.bf16.msra.mxu0 %v505
    %689 = vmatprep.subr.bf16.mxu0 0
    %690 = vmatpush1.bf16.msra.mxu0 %v506
    %691 = vmatprep.subr.bf16.mxu0 0
    %692 = vmatpush1.bf16.msra.mxu0 %v507
    %693 = vmatprep.subr.bf16.mxu0 0
    %694 = vmatpush1.bf16.msra.mxu0 %v508
    %695 = vmatprep.subr.bf16.mxu0 0
    %696 = vmatpush1.bf16.msra.mxu0 %v509
    %697 = vmatprep.subr.bf16.mxu0 0
    %698 = vmatpush1.bf16.msra.mxu0 %v510
    %699 = vmatprep.subr.bf16.mxu0 0
    %700 = vmatpush1.bf16.msra.mxu0 %v511
    %701 = vmatprep.subr.bf16.mxu0 0
    %702 = vmatpush1.bf16.msra.mxu0 %v512
    %703 = vmatprep.subr.bf16.mxu0 0
    %704 = vmatpush1.bf16.msra.mxu0 %v513
    %705 = vmatprep.subr.bf16.mxu0 0
    %706 = vmatpush1.bf16.msra.mxu0 %v514
    %707 = vmatprep.mubr.bf16.mxu0 %v200
    %708 = vmatmul.mubr.bf16.gmra.mrb[0].mxu0 %v199
    %v709 = vpop.f32.mrb[0].mxu0
    %v710 = vadd.f32 %v670, %v709
    %v711 = vpop.f32.mrb[0].mxu0
    %v712 = vpop.f32.mrb[0].mxu0
    %v713 = vpop.f32.mrb[0].mxu0
    %714 = vdwg.mxu0
    %715 = vmatprep.subr.bf16.mxu0 0
    %716 = vmatpush1.bf16.msra.mxu0 %v515
    %717 = vmatprep.subr.bf16.mxu0 0
    %718 = vmatpush1.bf16.msra.mxu0 %v516
    %719 = vmatprep.subr.bf16.mxu0 0
    %720 = vmatpush1.bf16.msra.mxu0 %v517
    %721 = vmatprep.subr.bf16.mxu0 0
    %722 = vmatpush1.bf16.msra.mxu0 %v518
    %723 = vmatprep.subr.bf16.mxu0 0
    %724 = vmatpush1.bf16.msra.mxu0 %v519
    %725 = vmatprep.subr.bf16.mxu0 0
    %726 = vmatpush1.bf16.msra.mxu0 %v520
    %727 = vmatprep.subr.bf16.mxu0 0
    %728 = vmatpush1.bf16.msra.mxu0 %v521
    %729 = vmatprep.subr.bf16.mxu0 0
    %730 = vmatpush1.bf16.msra.mxu0 %v522
    %731 = vmatprep.subr.bf16.mxu0 0
    %732 = vmatpush1.bf16.msra.mxu0 %v523
    %733 = vmatprep.subr.bf16.mxu0 0
    %734 = vmatpush1.bf16.msra.mxu0 %v524
    %735 = vmatprep.subr.bf16.mxu0 0
    %736 = vmatpush1.bf16.msra.mxu0 %v525
    %737 = vmatprep.subr.bf16.mxu0 0
    %738 = vmatpush1.bf16.msra.mxu0 %v526
    %739 = vmatprep.subr.bf16.mxu0 0
    %740 = vmatpush1.bf16.msra.mxu0 %v527
    %741 = vmatprep.subr.bf16.mxu0 0
    %742 = vmatpush1.bf16.msra.mxu0 %v528
    %743 = vmatprep.subr.bf16.mxu0 0
    %744 = vmatpush1.bf16.msra.mxu0 %v529
    %745 = vmatprep.subr.bf16.mxu0 0
    %746 = vmatpush1.bf16.msra.mxu0 %v530
    %747 = vmatprep.mubr.bf16.mxu0 %v202
    %748 = vmatmul.mubr.bf16.gmra.mrb[0].mxu0 %v201
    %v749 = vpop.f32.mrb[0].mxu0
    %v750 = vadd.f32 %v710, %v749
    %v751 = vpop.f32.mrb[0].mxu0
    %v752 = vpop.f32.mrb[0].mxu0
    %v753 = vpop.f32.mrb[0].mxu0
    %754 = vdwg.mxu0
    %v755 = vmax.f32 %v750, 0.0
    %v756 = vpack.c.bf16 %v755, %v755
    %v757 = vld [vmem:[%s4] sm:$0xf]
    %v758 = vld [vmem:[%s4 + $0x4] sm:$0xf]
    %v759 = vld [vmem:[%s4 + $0x8] sm:$0xf]
    %v760 = vld [vmem:[%s4 + $0xc] sm:$0xf]
    %v761 = vld [vmem:[%s2 + $0x1] sm:$0x1]
    %v762 = vlaneseq
    %v763 = vshrl.u32 %v762, 7
    %v764 = vsub.s32 0, %v763
    %v765 = vrot.slane %v761, %v764
    %v770 = vunpack.c.l.b16 %v757
    %v771 = vunpack.c.l.b16 %v758
    %v772 = vunpack.c.l.b16 %v759
    %v773 = vunpack.c.l.b16 %v760
    %v774 = vpack.c.b16 %v771, %v770
    %v775 = vpack.c.b16 %v773, %v772
    %vm778 = vcmask 261120
    %v780 = vsel %vm778, %v756, 0
    %782 = vmatprep.subr.bf16.mxu0 0
    %783 = vmatpush1.bf16.msra.mxu0 %v774
    %784 = vmatprep.subr.bf16.mxu0 0
    %785 = vmatpush1.bf16.msra.mxu0 %v775
    %786 = vmatprep.subr.bf16.mxu0 0
    %787 = vmatpush1.bf16.msra.mxu0 0
    %788 = vmatprep.subr.bf16.mxu0 0
    %789 = vmatpush1.bf16.msra.mxu0 0
    %790 = vmatprep.subr.bf16.mxu0 0
    %791 = vmatpush1.bf16.msra.mxu0 0
    %792 = vmatprep.subr.bf16.mxu0 0
    %793 = vmatpush1.bf16.msra.mxu0 0
    %794 = vmatprep.subr.bf16.mxu0 0
    %795 = vmatpush1.bf16.msra.mxu0 0
    %796 = vmatprep.subr.bf16.mxu0 0
    %797 = vmatpush1.bf16.msra.mxu0 0
    %798 = vmatprep.subr.bf16.mxu0 0
    %799 = vmatpush1.bf16.msra.mxu0 0
    %800 = vmatprep.subr.bf16.mxu0 0
    %801 = vmatpush1.bf16.msra.mxu0 0
    %802 = vmatprep.subr.bf16.mxu0 0
    %803 = vmatpush1.bf16.msra.mxu0 0
    %804 = vmatprep.subr.bf16.mxu0 0
    %805 = vmatpush1.bf16.msra.mxu0 0
    %806 = vmatprep.subr.bf16.mxu0 0
    %807 = vmatpush1.bf16.msra.mxu0 0
    %808 = vmatprep.subr.bf16.mxu0 0
    %809 = vmatpush1.bf16.msra.mxu0 0
    %810 = vmatprep.subr.bf16.mxu0 0
    %811 = vmatpush1.bf16.msra.mxu0 0
    %812 = vmatprep.subr.bf16.mxu0 0
    %813 = vmatpush1.bf16.msra.mxu0 0
    %814 = vmatprep.mubr.bf16.mxu0 0
    %815 = vmatmul.mubr.bf16.gmra.mrb[0].mxu0 %v780
    %v816 = vpop.f32.mrb[0].mxu0
    %v817 = vadd.f32 %v765, %v816
    %v818 = vpop.f32.mrb[0].mxu0
    %v819 = vpop.f32.mrb[0].mxu0
    %v820 = vpop.f32.mrb[0].mxu0
    %821 = vdwg.mxu0
    %v822 = vadd.f32 %v755, %v817
    %v823 = vsel %vm778, %v822, 0.0
    %824 = vadd.xlane.f32.xlu0 %v823
    %v825 = vpop.xlane.xlu0 %824
    %v826 = vrcp.pop 32.0
    %v827 = vmul.f32 %v825, %v826
    %v828 = vsub.f32 %v822, %v827
    %v829 = vmul.f32 %v828, %v828
    %v830 = vsel %vm778, %v829, 0.0
    %831 = vadd.xlane.f32.xlu0 %v830
    %v832 = vpop.xlane.xlu0 %831
    %v833 = vmul.f32 %v832, %v826
    %v834 = vadd.f32 %v833, 1e-05
    %v835 = vrsqrt.pop %v834
    %v836 = vmul.f32 %v828, %v835
    %v837 = vld [vmem:[%s2 + $0x2] sm:$0x1]
    %v838 = vlaneseq
    %v839 = vshrl.u32 %v838, 7
    %v840 = vsub.s32 0, %v839
    %v841 = vrot.slane %v837, %v840
    %v842 = vmul.f32 %v836, %v841
    %v843 = vld [vmem:[%s2 + $0x3] sm:$0x1]
    %v844 = vlaneseq
    %v845 = vshrl.u32 %v844, 7
    %v846 = vsub.s32 0, %v845
    %v847 = vrot.slane %v843, %v846
    %v848 = vadd.f32 %v842, %v847
    %v849 = vpack.c.bf16 %v848, %v848
    %v850 = vld [vmem:[%s5] sm:$0xff]
    %v851 = vld [vmem:[%s5 + $0x8] sm:$0xff]
    %v852 = vld [vmem:[%s5 + $0x10] sm:$0xff]
    %v853 = vld [vmem:[%s5 + $0x18] sm:$0xff]
    %v854 = vld [vmem:[%s5 + $0x20] sm:$0xff]
    %v855 = vld [vmem:[%s5 + $0x28] sm:$0xff]
    %v856 = vld [vmem:[%s5 + $0x30] sm:$0xff]
    %v857 = vld [vmem:[%s5 + $0x38] sm:$0xff]
    %v858 = vld [vmem:[%s5 + $0x40] sm:$0xff]
    %v859 = vld [vmem:[%s5 + $0x48] sm:$0xff]
    %v860 = vld [vmem:[%s5 + $0x50] sm:$0xff]
    %v861 = vld [vmem:[%s5 + $0x58] sm:$0xff]
    %v862 = vld [vmem:[%s5 + $0x60] sm:$0xff]
    %v863 = vld [vmem:[%s5 + $0x68] sm:$0xff]
    %v864 = vld [vmem:[%s5 + $0x70] sm:$0xff]
    %v865 = vld [vmem:[%s5 + $0x78] sm:$0xff]
    %v866 = vld [vmem:[%s5 + $0x80] sm:$0xff]
    %v867 = vld [vmem:[%s5 + $0x88] sm:$0xff]
    %v868 = vld [vmem:[%s5 + $0x90] sm:$0xff]
    %v869 = vld [vmem:[%s5 + $0x98] sm:$0xff]
    %v870 = vld [vmem:[%s5 + $0xa0] sm:$0xff]
    %v871 = vld [vmem:[%s5 + $0xa8] sm:$0xff]
    %v872 = vld [vmem:[%s5 + $0xb0] sm:$0xff]
    %v873 = vld [vmem:[%s5 + $0xb8] sm:$0xff]
    %v874 = vld [vmem:[%s5 + $0xc0] sm:$0xff]
    %v875 = vld [vmem:[%s5 + $0xc8] sm:$0xff]
    %v876 = vld [vmem:[%s5 + $0xd0] sm:$0xff]
    %v877 = vld [vmem:[%s5 + $0xd8] sm:$0xff]
    %v878 = vld [vmem:[%s5 + $0xe0] sm:$0xff]
    %v879 = vld [vmem:[%s5 + $0xe8] sm:$0xff]
    %v880 = vld [vmem:[%s5 + $0xf0] sm:$0xff]
    %v881 = vld [vmem:[%s5 + $0xf8] sm:$0xff]
    %v882 = vld [vmem:[%s3] ss:$2 sm:$0xff]
    %s883 = scalar_lea.vmem %s3, 16
    %v884 = vld [vmem:[%s883] ss:$2 sm:$0xff]
    %v887 = vlaneseq
    %v888 = vshrl.u32 %v887, 7
    %v889 = vsub.s32 0, %v888
    %v890 = vrot.slane %v882, %v889
    %v891 = vlaneseq
    %v892 = vshrl.u32 %v891, 7
    %v893 = vsub.s32 1, %v892
    %v894 = vrot.slane %v882, %v893
    %v895 = vlaneseq
    %v896 = vshrl.u32 %v895, 7
    %v897 = vsub.s32 2, %v896
    %v898 = vrot.slane %v882, %v897
    %v899 = vlaneseq
    %v900 = vshrl.u32 %v899, 7
    %v901 = vsub.s32 3, %v900
    %v902 = vrot.slane %v882, %v901
    %v903 = vlaneseq
    %v904 = vshrl.u32 %v903, 7
    %v905 = vsub.s32 4, %v904
    %v906 = vrot.slane %v882, %v905
    %v907 = vlaneseq
    %v908 = vshrl.u32 %v907, 7
    %v909 = vsub.s32 5, %v908
    %v910 = vrot.slane %v882, %v909
    %v911 = vlaneseq
    %v912 = vshrl.u32 %v911, 7
    %v913 = vsub.s32 6, %v912
    %v914 = vrot.slane %v882, %v913
    %v915 = vlaneseq
    %v916 = vshrl.u32 %v915, 7
    %v917 = vsub.s32 7, %v916
    %v918 = vrot.slane %v882, %v917
    %v919 = vlaneseq
    %v920 = vshrl.u32 %v919, 7
    %v921 = vsub.s32 0, %v920
    %v922 = vrot.slane %v884, %v921
    %v923 = vlaneseq
    %v924 = vshrl.u32 %v923, 7
    %v925 = vsub.s32 1, %v924
    %v926 = vrot.slane %v884, %v925
    %v927 = vlaneseq
    %v928 = vshrl.u32 %v927, 7
    %v929 = vsub.s32 2, %v928
    %v930 = vrot.slane %v884, %v929
    %v931 = vlaneseq
    %v932 = vshrl.u32 %v931, 7
    %v933 = vsub.s32 3, %v932
    %v934 = vrot.slane %v884, %v933
    %v935 = vlaneseq
    %v936 = vshrl.u32 %v935, 7
    %v937 = vsub.s32 4, %v936
    %v938 = vrot.slane %v884, %v937
    %v939 = vlaneseq
    %v940 = vshrl.u32 %v939, 7
    %v941 = vsub.s32 5, %v940
    %v942 = vrot.slane %v884, %v941
    %v943 = vlaneseq
    %v944 = vshrl.u32 %v943, 7
    %v945 = vsub.s32 6, %v944
    %v946 = vrot.slane %v884, %v945
    %v947 = vlaneseq
    %v948 = vshrl.u32 %v947, 7
    %v949 = vsub.s32 7, %v948
    %v950 = vrot.slane %v884, %v949
    %v999 = vunpack.c.l.b16 %v850
    %v1000 = vunpack.c.h.b16 %v850
    %v1001 = vunpack.c.l.b16 %v851
    %v1002 = vunpack.c.h.b16 %v851
    %v1003 = vunpack.c.l.b16 %v852
    %v1004 = vunpack.c.h.b16 %v852
    %v1005 = vunpack.c.l.b16 %v853
    %v1006 = vunpack.c.h.b16 %v853
    %v1007 = vunpack.c.l.b16 %v854
    %v1008 = vunpack.c.h.b16 %v854
    %v1009 = vunpack.c.l.b16 %v855
    %v1010 = vunpack.c.h.b16 %v855
    %v1011 = vunpack.c.l.b16 %v856
    %v1012 = vunpack.c.h.b16 %v856
    %v1013 = vunpack.c.l.b16 %v857
    %v1014 = vunpack.c.h.b16 %v857
    %v1015 = vunpack.c.l.b16 %v858
    %v1016 = vunpack.c.h.b16 %v858
    %v1017 = vunpack.c.l.b16 %v859
    %v1018 = vunpack.c.h.b16 %v859
    %v1019 = vunpack.c.l.b16 %v860
    %v1020 = vunpack.c.h.b16 %v860
    %v1021 = vunpack.c.l.b16 %v861
    %v1022 = vunpack.c.h.b16 %v861
    %v1023 = vunpack.c.l.b16 %v862
    %v1024 = vunpack.c.h.b16 %v862
    %v1025 = vunpack.c.l.b16 %v863
    %v1026 = vunpack.c.h.b16 %v863
    %v1027 = vunpack.c.l.b16 %v864
    %v1028 = vunpack.c.h.b16 %v864
    %v1029 = vunpack.c.l.b16 %v865
    %v1030 = vunpack.c.h.b16 %v865
    %v1031 = vunpack.c.l.b16 %v866
    %v1032 = vunpack.c.h.b16 %v866
    %v1033 = vunpack.c.l.b16 %v867
    %v1034 = vunpack.c.h.b16 %v867
    %v1035 = vunpack.c.l.b16 %v868
    %v1036 = vunpack.c.h.b16 %v868
    %v1037 = vunpack.c.l.b16 %v869
    %v1038 = vunpack.c.h.b16 %v869
    %v1039 = vunpack.c.l.b16 %v870
    %v1040 = vunpack.c.h.b16 %v870
    %v1041 = vunpack.c.l.b16 %v871
    %v1042 = vunpack.c.h.b16 %v871
    %v1043 = vunpack.c.l.b16 %v872
    %v1044 = vunpack.c.h.b16 %v872
    %v1045 = vunpack.c.l.b16 %v873
    %v1046 = vunpack.c.h.b16 %v873
    %v1047 = vunpack.c.l.b16 %v874
    %v1048 = vunpack.c.h.b16 %v874
    %v1049 = vunpack.c.l.b16 %v875
    %v1050 = vunpack.c.h.b16 %v875
    %v1051 = vunpack.c.l.b16 %v876
    %v1052 = vunpack.c.h.b16 %v876
    %v1053 = vunpack.c.l.b16 %v877
    %v1054 = vunpack.c.h.b16 %v877
    %v1055 = vunpack.c.l.b16 %v878
    %v1056 = vunpack.c.h.b16 %v878
    %v1057 = vunpack.c.l.b16 %v879
    %v1058 = vunpack.c.h.b16 %v879
    %v1059 = vunpack.c.l.b16 %v880
    %v1060 = vunpack.c.h.b16 %v880
    %v1061 = vunpack.c.l.b16 %v881
    %v1062 = vunpack.c.h.b16 %v881
    %v1063 = vpack.c.b16 %v1015, %v999
    %v1064 = vpack.c.b16 %v1016, %v1000
    %v1065 = vpack.c.b16 %v1017, %v1001
    %v1066 = vpack.c.b16 %v1018, %v1002
    %v1067 = vpack.c.b16 %v1019, %v1003
    %v1068 = vpack.c.b16 %v1020, %v1004
    %v1069 = vpack.c.b16 %v1021, %v1005
    %v1070 = vpack.c.b16 %v1022, %v1006
    %v1071 = vpack.c.b16 %v1023, %v1007
    %v1072 = vpack.c.b16 %v1024, %v1008
    %v1073 = vpack.c.b16 %v1025, %v1009
    %v1074 = vpack.c.b16 %v1026, %v1010
    %v1075 = vpack.c.b16 %v1027, %v1011
    %v1076 = vpack.c.b16 %v1028, %v1012
    %v1077 = vpack.c.b16 %v1029, %v1013
    %v1078 = vpack.c.b16 %v1030, %v1014
    %v1079 = vpack.c.b16 %v1047, %v1031
    %v1080 = vpack.c.b16 %v1048, %v1032
    %v1081 = vpack.c.b16 %v1049, %v1033
    %v1082 = vpack.c.b16 %v1050, %v1034
    %v1083 = vpack.c.b16 %v1051, %v1035
    %v1084 = vpack.c.b16 %v1052, %v1036
    %v1085 = vpack.c.b16 %v1053, %v1037
    %v1086 = vpack.c.b16 %v1054, %v1038
    %v1087 = vpack.c.b16 %v1055, %v1039
    %v1088 = vpack.c.b16 %v1056, %v1040
    %v1089 = vpack.c.b16 %v1057, %v1041
    %v1090 = vpack.c.b16 %v1058, %v1042
    %v1091 = vpack.c.b16 %v1059, %v1043
    %v1092 = vpack.c.b16 %v1060, %v1044
    %v1093 = vpack.c.b16 %v1061, %v1045
    %v1094 = vpack.c.b16 %v1062, %v1046
    %v1128 = vsel %vm778, %v849, 0
    %1130 = vmatprep.subr.bf16.mxu0 %v1064
    %1131 = vmatpush1.bf16.msra.mxu0 %v1063
    %1132 = vmatprep.subr.bf16.mxu0 %v1080
    %1133 = vmatpush1.bf16.msra.mxu0 %v1079
    %1134 = vmatprep.subr.bf16.mxu0 0
    %1135 = vmatpush1.bf16.msra.mxu0 0
    %1136 = vmatprep.subr.bf16.mxu0 0
    %1137 = vmatpush1.bf16.msra.mxu0 0
    %1138 = vmatprep.subr.bf16.mxu0 0
    %1139 = vmatpush1.bf16.msra.mxu0 0
    %1140 = vmatprep.subr.bf16.mxu0 0
    %1141 = vmatpush1.bf16.msra.mxu0 0
    %1142 = vmatprep.subr.bf16.mxu0 0
    %1143 = vmatpush1.bf16.msra.mxu0 0
    %1144 = vmatprep.subr.bf16.mxu0 0
    %1145 = vmatpush1.bf16.msra.mxu0 0
    %1146 = vmatprep.subr.bf16.mxu0 0
    %1147 = vmatpush1.bf16.msra.mxu0 0
    %1148 = vmatprep.subr.bf16.mxu0 0
    %1149 = vmatpush1.bf16.msra.mxu0 0
    %1150 = vmatprep.subr.bf16.mxu0 0
    %1151 = vmatpush1.bf16.msra.mxu0 0
    %1152 = vmatprep.subr.bf16.mxu0 0
    %1153 = vmatpush1.bf16.msra.mxu0 0
    %1154 = vmatprep.subr.bf16.mxu0 0
    %1155 = vmatpush1.bf16.msra.mxu0 0
    %1156 = vmatprep.subr.bf16.mxu0 0
    %1157 = vmatpush1.bf16.msra.mxu0 0
    %1158 = vmatprep.subr.bf16.mxu0 0
    %1159 = vmatpush1.bf16.msra.mxu0 0
    %1160 = vmatprep.subr.bf16.mxu0 0
    %1161 = vmatpush1.bf16.msra.mxu0 0
    %1162 = vmatprep.mubr.bf16.mxu0 0
    %1163 = vmatmul.mubr.bf16.gmra.mrb[0].mxu0 %v1128
    %v1164 = vpop.f32.mrb[0].mxu0
    %v1165 = vadd.f32 %v890, %v1164
    %v1166 = vpop.f32.mrb[0].mxu0
    %v1167 = vadd.f32 %v894, %v1166
    %v1168 = vpop.f32.mrb[0].mxu0
    %v1169 = vpop.f32.mrb[0].mxu0
    %1170 = vdwg.mxu0
    %1171 = vmatprep.subr.bf16.mxu0 %v1066
    %1172 = vmatpush1.bf16.msra.mxu0 %v1065
    %1173 = vmatprep.subr.bf16.mxu0 %v1082
    %1174 = vmatpush1.bf16.msra.mxu0 %v1081
    %1175 = vmatprep.subr.bf16.mxu0 0
    %1176 = vmatpush1.bf16.msra.mxu0 0
    %1177 = vmatprep.subr.bf16.mxu0 0
    %1178 = vmatpush1.bf16.msra.mxu0 0
    %1179 = vmatprep.subr.bf16.mxu0 0
    %1180 = vmatpush1.bf16.msra.mxu0 0
    %1181 = vmatprep.subr.bf16.mxu0 0
    %1182 = vmatpush1.bf16.msra.mxu0 0
    %1183 = vmatprep.subr.bf16.mxu0 0
    %1184 = vmatpush1.bf16.msra.mxu0 0
    %1185 = vmatprep.subr.bf16.mxu0 0
    %1186 = vmatpush1.bf16.msra.mxu0 0
    %1187 = vmatprep.subr.bf16.mxu0 0
    %1188 = vmatpush1.bf16.msra.mxu0 0
    %1189 = vmatprep.subr.bf16.mxu0 0
    %1190 = vmatpush1.bf16.msra.mxu0 0
    %1191 = vmatprep.subr.bf16.mxu0 0
    %1192 = vmatpush1.bf16.msra.mxu0 0
    %1193 = vmatprep.subr.bf16.mxu0 0
    %1194 = vmatpush1.bf16.msra.mxu0 0
    %1195 = vmatprep.subr.bf16.mxu0 0
    %1196 = vmatpush1.bf16.msra.mxu0 0
    %1197 = vmatprep.subr.bf16.mxu0 0
    %1198 = vmatpush1.bf16.msra.mxu0 0
    %1199 = vmatprep.subr.bf16.mxu0 0
    %1200 = vmatpush1.bf16.msra.mxu0 0
    %1201 = vmatprep.subr.bf16.mxu0 0
    %1202 = vmatpush1.bf16.msra.mxu0 0
    %1203 = vmatprep.mubr.bf16.mxu0 0
    %1204 = vmatmul.mubr.bf16.gmra.mrb[0].mxu0 %v1128
    %v1205 = vpop.f32.mrb[0].mxu0
    %v1206 = vadd.f32 %v898, %v1205
    %v1207 = vpop.f32.mrb[0].mxu0
    %v1208 = vadd.f32 %v902, %v1207
    %v1209 = vpop.f32.mrb[0].mxu0
    %v1210 = vpop.f32.mrb[0].mxu0
    %1211 = vdwg.mxu0
    %1212 = vmatprep.subr.bf16.mxu0 %v1068
    %1213 = vmatpush1.bf16.msra.mxu0 %v1067
    %1214 = vmatprep.subr.bf16.mxu0 %v1084
    %1215 = vmatpush1.bf16.msra.mxu0 %v1083
    %1216 = vmatprep.subr.bf16.mxu0 0
    %1217 = vmatpush1.bf16.msra.mxu0 0
    %1218 = vmatprep.subr.bf16.mxu0 0
    %1219 = vmatpush1.bf16.msra.mxu0 0
    %1220 = vmatprep.subr.bf16.mxu0 0
    %1221 = vmatpush1.bf16.msra.mxu0 0
    %1222 = vmatprep.subr.bf16.mxu0 0
    %1223 = vmatpush1.bf16.msra.mxu0 0
    %1224 = vmatprep.subr.bf16.mxu0 0
    %1225 = vmatpush1.bf16.msra.mxu0 0
    %1226 = vmatprep.subr.bf16.mxu0 0
    %1227 = vmatpush1.bf16.msra.mxu0 0
    %1228 = vmatprep.subr.bf16.mxu0 0
    %1229 = vmatpush1.bf16.msra.mxu0 0
    %1230 = vmatprep.subr.bf16.mxu0 0
    %1231 = vmatpush1.bf16.msra.mxu0 0
    %1232 = vmatprep.subr.bf16.mxu0 0
    %1233 = vmatpush1.bf16.msra.mxu0 0
    %1234 = vmatprep.subr.bf16.mxu0 0
    %1235 = vmatpush1.bf16.msra.mxu0 0
    %1236 = vmatprep.subr.bf16.mxu0 0
    %1237 = vmatpush1.bf16.msra.mxu0 0
    %1238 = vmatprep.subr.bf16.mxu0 0
    %1239 = vmatpush1.bf16.msra.mxu0 0
    %1240 = vmatprep.subr.bf16.mxu0 0
    %1241 = vmatpush1.bf16.msra.mxu0 0
    %1242 = vmatprep.subr.bf16.mxu0 0
    %1243 = vmatpush1.bf16.msra.mxu0 0
    %1244 = vmatprep.mubr.bf16.mxu0 0
    %1245 = vmatmul.mubr.bf16.gmra.mrb[0].mxu0 %v1128
    %v1246 = vpop.f32.mrb[0].mxu0
    %v1247 = vadd.f32 %v906, %v1246
    %v1248 = vpop.f32.mrb[0].mxu0
    %v1249 = vadd.f32 %v910, %v1248
    %v1250 = vpop.f32.mrb[0].mxu0
    %v1251 = vpop.f32.mrb[0].mxu0
    %1252 = vdwg.mxu0
    %1253 = vmatprep.subr.bf16.mxu0 %v1070
    %1254 = vmatpush1.bf16.msra.mxu0 %v1069
    %1255 = vmatprep.subr.bf16.mxu0 %v1086
    %1256 = vmatpush1.bf16.msra.mxu0 %v1085
    %1257 = vmatprep.subr.bf16.mxu0 0
    %1258 = vmatpush1.bf16.msra.mxu0 0
    %1259 = vmatprep.subr.bf16.mxu0 0
    %1260 = vmatpush1.bf16.msra.mxu0 0
    %1261 = vmatprep.subr.bf16.mxu0 0
    %1262 = vmatpush1.bf16.msra.mxu0 0
    %1263 = vmatprep.subr.bf16.mxu0 0
    %1264 = vmatpush1.bf16.msra.mxu0 0
    %1265 = vmatprep.subr.bf16.mxu0 0
    %1266 = vmatpush1.bf16.msra.mxu0 0
    %1267 = vmatprep.subr.bf16.mxu0 0
    %1268 = vmatpush1.bf16.msra.mxu0 0
    %1269 = vmatprep.subr.bf16.mxu0 0
    %1270 = vmatpush1.bf16.msra.mxu0 0
    %1271 = vmatprep.subr.bf16.mxu0 0
    %1272 = vmatpush1.bf16.msra.mxu0 0
    %1273 = vmatprep.subr.bf16.mxu0 0
    %1274 = vmatpush1.bf16.msra.mxu0 0
    %1275 = vmatprep.subr.bf16.mxu0 0
    %1276 = vmatpush1.bf16.msra.mxu0 0
    %1277 = vmatprep.subr.bf16.mxu0 0
    %1278 = vmatpush1.bf16.msra.mxu0 0
    %1279 = vmatprep.subr.bf16.mxu0 0
    %1280 = vmatpush1.bf16.msra.mxu0 0
    %1281 = vmatprep.subr.bf16.mxu0 0
    %1282 = vmatpush1.bf16.msra.mxu0 0
    %1283 = vmatprep.subr.bf16.mxu0 0
    %1284 = vmatpush1.bf16.msra.mxu0 0
    %1285 = vmatprep.mubr.bf16.mxu0 0
    %1286 = vmatmul.mubr.bf16.gmra.mrb[0].mxu0 %v1128
    %v1287 = vpop.f32.mrb[0].mxu0
    %v1288 = vadd.f32 %v914, %v1287
    %v1289 = vpop.f32.mrb[0].mxu0
    %v1290 = vadd.f32 %v918, %v1289
    %v1291 = vpop.f32.mrb[0].mxu0
    %v1292 = vpop.f32.mrb[0].mxu0
    %1293 = vdwg.mxu0
    %1294 = vmatprep.subr.bf16.mxu0 %v1072
    %1295 = vmatpush1.bf16.msra.mxu0 %v1071
    %1296 = vmatprep.subr.bf16.mxu0 %v1088
    %1297 = vmatpush1.bf16.msra.mxu0 %v1087
    %1298 = vmatprep.subr.bf16.mxu0 0
    %1299 = vmatpush1.bf16.msra.mxu0 0
    %1300 = vmatprep.subr.bf16.mxu0 0
    %1301 = vmatpush1.bf16.msra.mxu0 0
    %1302 = vmatprep.subr.bf16.mxu0 0
    %1303 = vmatpush1.bf16.msra.mxu0 0
    %1304 = vmatprep.subr.bf16.mxu0 0
    %1305 = vmatpush1.bf16.msra.mxu0 0
    %1306 = vmatprep.subr.bf16.mxu0 0
    %1307 = vmatpush1.bf16.msra.mxu0 0
    %1308 = vmatprep.subr.bf16.mxu0 0
    %1309 = vmatpush1.bf16.msra.mxu0 0
    %1310 = vmatprep.subr.bf16.mxu0 0
    %1311 = vmatpush1.bf16.msra.mxu0 0
    %1312 = vmatprep.subr.bf16.mxu0 0
    %1313 = vmatpush1.bf16.msra.mxu0 0
    %1314 = vmatprep.subr.bf16.mxu0 0
    %1315 = vmatpush1.bf16.msra.mxu0 0
    %1316 = vmatprep.subr.bf16.mxu0 0
    %1317 = vmatpush1.bf16.msra.mxu0 0
    %1318 = vmatprep.subr.bf16.mxu0 0
    %1319 = vmatpush1.bf16.msra.mxu0 0
    %1320 = vmatprep.subr.bf16.mxu0 0
    %1321 = vmatpush1.bf16.msra.mxu0 0
    %1322 = vmatprep.subr.bf16.mxu0 0
    %1323 = vmatpush1.bf16.msra.mxu0 0
    %1324 = vmatprep.subr.bf16.mxu0 0
    %1325 = vmatpush1.bf16.msra.mxu0 0
    %1326 = vmatprep.mubr.bf16.mxu0 0
    %1327 = vmatmul.mubr.bf16.gmra.mrb[0].mxu0 %v1128
    %v1328 = vpop.f32.mrb[0].mxu0
    %v1329 = vadd.f32 %v922, %v1328
    %v1330 = vpop.f32.mrb[0].mxu0
    %v1331 = vadd.f32 %v926, %v1330
    %v1332 = vpop.f32.mrb[0].mxu0
    %v1333 = vpop.f32.mrb[0].mxu0
    %1334 = vdwg.mxu0
    %1335 = vmatprep.subr.bf16.mxu0 %v1074
    %1336 = vmatpush1.bf16.msra.mxu0 %v1073
    %1337 = vmatprep.subr.bf16.mxu0 %v1090
    %1338 = vmatpush1.bf16.msra.mxu0 %v1089
    %1339 = vmatprep.subr.bf16.mxu0 0
    %1340 = vmatpush1.bf16.msra.mxu0 0
    %1341 = vmatprep.subr.bf16.mxu0 0
    %1342 = vmatpush1.bf16.msra.mxu0 0
    %1343 = vmatprep.subr.bf16.mxu0 0
    %1344 = vmatpush1.bf16.msra.mxu0 0
    %1345 = vmatprep.subr.bf16.mxu0 0
    %1346 = vmatpush1.bf16.msra.mxu0 0
    %1347 = vmatprep.subr.bf16.mxu0 0
    %1348 = vmatpush1.bf16.msra.mxu0 0
    %1349 = vmatprep.subr.bf16.mxu0 0
    %1350 = vmatpush1.bf16.msra.mxu0 0
    %1351 = vmatprep.subr.bf16.mxu0 0
    %1352 = vmatpush1.bf16.msra.mxu0 0
    %1353 = vmatprep.subr.bf16.mxu0 0
    %1354 = vmatpush1.bf16.msra.mxu0 0
    %1355 = vmatprep.subr.bf16.mxu0 0
    %1356 = vmatpush1.bf16.msra.mxu0 0
    %1357 = vmatprep.subr.bf16.mxu0 0
    %1358 = vmatpush1.bf16.msra.mxu0 0
    %1359 = vmatprep.subr.bf16.mxu0 0
    %1360 = vmatpush1.bf16.msra.mxu0 0
    %1361 = vmatprep.subr.bf16.mxu0 0
    %1362 = vmatpush1.bf16.msra.mxu0 0
    %1363 = vmatprep.subr.bf16.mxu0 0
    %1364 = vmatpush1.bf16.msra.mxu0 0
    %1365 = vmatprep.subr.bf16.mxu0 0
    %1366 = vmatpush1.bf16.msra.mxu0 0
    %1367 = vmatprep.mubr.bf16.mxu0 0
    %1368 = vmatmul.mubr.bf16.gmra.mrb[0].mxu0 %v1128
    %v1369 = vpop.f32.mrb[0].mxu0
    %v1370 = vadd.f32 %v930, %v1369
    %v1371 = vpop.f32.mrb[0].mxu0
    %v1372 = vadd.f32 %v934, %v1371
    %v1373 = vpop.f32.mrb[0].mxu0
    %v1374 = vpop.f32.mrb[0].mxu0
    %1375 = vdwg.mxu0
    %1376 = vmatprep.subr.bf16.mxu0 %v1076
    %1377 = vmatpush1.bf16.msra.mxu0 %v1075
    %1378 = vmatprep.subr.bf16.mxu0 %v1092
    %1379 = vmatpush1.bf16.msra.mxu0 %v1091
    %1380 = vmatprep.subr.bf16.mxu0 0
    %1381 = vmatpush1.bf16.msra.mxu0 0
    %1382 = vmatprep.subr.bf16.mxu0 0
    %1383 = vmatpush1.bf16.msra.mxu0 0
    %1384 = vmatprep.subr.bf16.mxu0 0
    %1385 = vmatpush1.bf16.msra.mxu0 0
    %1386 = vmatprep.subr.bf16.mxu0 0
    %1387 = vmatpush1.bf16.msra.mxu0 0
    %1388 = vmatprep.subr.bf16.mxu0 0
    %1389 = vmatpush1.bf16.msra.mxu0 0
    %1390 = vmatprep.subr.bf16.mxu0 0
    %1391 = vmatpush1.bf16.msra.mxu0 0
    %1392 = vmatprep.subr.bf16.mxu0 0
    %1393 = vmatpush1.bf16.msra.mxu0 0
    %1394 = vmatprep.subr.bf16.mxu0 0
    %1395 = vmatpush1.bf16.msra.mxu0 0
    %1396 = vmatprep.subr.bf16.mxu0 0
    %1397 = vmatpush1.bf16.msra.mxu0 0
    %1398 = vmatprep.subr.bf16.mxu0 0
    %1399 = vmatpush1.bf16.msra.mxu0 0
    %1400 = vmatprep.subr.bf16.mxu0 0
    %1401 = vmatpush1.bf16.msra.mxu0 0
    %1402 = vmatprep.subr.bf16.mxu0 0
    %1403 = vmatpush1.bf16.msra.mxu0 0
    %1404 = vmatprep.subr.bf16.mxu0 0
    %1405 = vmatpush1.bf16.msra.mxu0 0
    %1406 = vmatprep.subr.bf16.mxu0 0
    %1407 = vmatpush1.bf16.msra.mxu0 0
    %1408 = vmatprep.mubr.bf16.mxu0 0
    %1409 = vmatmul.mubr.bf16.gmra.mrb[0].mxu0 %v1128
    %v1410 = vpop.f32.mrb[0].mxu0
    %v1411 = vadd.f32 %v938, %v1410
    %v1412 = vpop.f32.mrb[0].mxu0
    %v1413 = vadd.f32 %v942, %v1412
    %v1414 = vpop.f32.mrb[0].mxu0
    %v1415 = vpop.f32.mrb[0].mxu0
    %1416 = vdwg.mxu0
    %1417 = vmatprep.subr.bf16.mxu0 %v1078
    %1418 = vmatpush1.bf16.msra.mxu0 %v1077
    %1419 = vmatprep.subr.bf16.mxu0 %v1094
    %1420 = vmatpush1.bf16.msra.mxu0 %v1093
    %1421 = vmatprep.subr.bf16.mxu0 0
    %1422 = vmatpush1.bf16.msra.mxu0 0
    %1423 = vmatprep.subr.bf16.mxu0 0
    %1424 = vmatpush1.bf16.msra.mxu0 0
    %1425 = vmatprep.subr.bf16.mxu0 0
    %1426 = vmatpush1.bf16.msra.mxu0 0
    %1427 = vmatprep.subr.bf16.mxu0 0
    %1428 = vmatpush1.bf16.msra.mxu0 0
    %1429 = vmatprep.subr.bf16.mxu0 0
    %1430 = vmatpush1.bf16.msra.mxu0 0
    %1431 = vmatprep.subr.bf16.mxu0 0
    %1432 = vmatpush1.bf16.msra.mxu0 0
    %1433 = vmatprep.subr.bf16.mxu0 0
    %1434 = vmatpush1.bf16.msra.mxu0 0
    %1435 = vmatprep.subr.bf16.mxu0 0
    %1436 = vmatpush1.bf16.msra.mxu0 0
    %1437 = vmatprep.subr.bf16.mxu0 0
    %1438 = vmatpush1.bf16.msra.mxu0 0
    %1439 = vmatprep.subr.bf16.mxu0 0
    %1440 = vmatpush1.bf16.msra.mxu0 0
    %1441 = vmatprep.subr.bf16.mxu0 0
    %1442 = vmatpush1.bf16.msra.mxu0 0
    %1443 = vmatprep.subr.bf16.mxu0 0
    %1444 = vmatpush1.bf16.msra.mxu0 0
    %1445 = vmatprep.subr.bf16.mxu0 0
    %1446 = vmatpush1.bf16.msra.mxu0 0
    %1447 = vmatprep.subr.bf16.mxu0 0
    %1448 = vmatpush1.bf16.msra.mxu0 0
    %1449 = vmatprep.mubr.bf16.mxu0 0
    %1450 = vmatmul.mubr.bf16.gmra.mrb[0].mxu0 %v1128
    %v1451 = vpop.f32.mrb[0].mxu0
    %v1452 = vadd.f32 %v946, %v1451
    %v1453 = vpop.f32.mrb[0].mxu0
    %v1454 = vadd.f32 %v950, %v1453
    %v1455 = vpop.f32.mrb[0].mxu0
    %v1456 = vpop.f32.mrb[0].mxu0
    %1457 = vdwg.mxu0
    %v1458 = vmax.f32 %v1165, 0.0
    %v1459 = vmax.f32 %v1167, 0.0
    %v1460 = vmax.f32 %v1206, 0.0
    %v1461 = vmax.f32 %v1208, 0.0
    %v1462 = vmax.f32 %v1247, 0.0
    %v1463 = vmax.f32 %v1249, 0.0
    %v1464 = vmax.f32 %v1288, 0.0
    %v1465 = vmax.f32 %v1290, 0.0
    %v1466 = vmax.f32 %v1329, 0.0
    %v1467 = vmax.f32 %v1331, 0.0
    %v1468 = vmax.f32 %v1370, 0.0
    %v1469 = vmax.f32 %v1372, 0.0
    %v1470 = vmax.f32 %v1411, 0.0
    %v1471 = vmax.f32 %v1413, 0.0
    %v1472 = vmax.f32 %v1452, 0.0
    %v1473 = vmax.f32 %v1454, 0.0
    %v1474 = vpack.c.bf16 %v1458, %v1458
    %v1475 = vpack.c.bf16 %v1459, %v1459
    %v1476 = vpack.c.bf16 %v1460, %v1460
    %v1477 = vpack.c.bf16 %v1461, %v1461
    %v1478 = vpack.c.bf16 %v1462, %v1462
    %v1479 = vpack.c.bf16 %v1463, %v1463
    %v1480 = vpack.c.bf16 %v1464, %v1464
    %v1481 = vpack.c.bf16 %v1465, %v1465
    %v1482 = vpack.c.bf16 %v1466, %v1466
    %v1483 = vpack.c.bf16 %v1467, %v1467
    %v1484 = vpack.c.bf16 %v1468, %v1468
    %v1485 = vpack.c.bf16 %v1469, %v1469
    %v1486 = vpack.c.bf16 %v1470, %v1470
    %v1487 = vpack.c.bf16 %v1471, %v1471
    %v1488 = vpack.c.bf16 %v1472, %v1472
    %v1489 = vpack.c.bf16 %v1473, %v1473
    %v1490 = vld [vmem:[%s6] sm:$0xf]
    %v1491 = vld [vmem:[%s6 + $0x4] sm:$0xf]
    %v1492 = vld [vmem:[%s6 + $0x8] sm:$0xf]
    %v1493 = vld [vmem:[%s6 + $0xc] sm:$0xf]
    %v1494 = vld [vmem:[%s6 + $0x10] sm:$0xf]
    %v1495 = vld [vmem:[%s6 + $0x14] sm:$0xf]
    %v1496 = vld [vmem:[%s6 + $0x18] sm:$0xf]
    %v1497 = vld [vmem:[%s6 + $0x1c] sm:$0xf]
    %v1498 = vld [vmem:[%s6 + $0x20] sm:$0xf]
    %v1499 = vld [vmem:[%s6 + $0x24] sm:$0xf]
    %v1500 = vld [vmem:[%s6 + $0x28] sm:$0xf]
    %v1501 = vld [vmem:[%s6 + $0x2c] sm:$0xf]
    %v1502 = vld [vmem:[%s6 + $0x30] sm:$0xf]
    %v1503 = vld [vmem:[%s6 + $0x34] sm:$0xf]
    %v1504 = vld [vmem:[%s6 + $0x38] sm:$0xf]
    %v1505 = vld [vmem:[%s6 + $0x3c] sm:$0xf]
    %v1506 = vld [vmem:[%s6 + $0x40] sm:$0xf]
    %v1507 = vld [vmem:[%s6 + $0x44] sm:$0xf]
    %v1508 = vld [vmem:[%s6 + $0x48] sm:$0xf]
    %v1509 = vld [vmem:[%s6 + $0x4c] sm:$0xf]
    %v1510 = vld [vmem:[%s6 + $0x50] sm:$0xf]
    %v1511 = vld [vmem:[%s6 + $0x54] sm:$0xf]
    %v1512 = vld [vmem:[%s6 + $0x58] sm:$0xf]
    %v1513 = vld [vmem:[%s6 + $0x5c] sm:$0xf]
    %v1514 = vld [vmem:[%s6 + $0x60] sm:$0xf]
    %v1515 = vld [vmem:[%s6 + $0x64] sm:$0xf]
    %v1516 = vld [vmem:[%s6 + $0x68] sm:$0xf]
    %v1517 = vld [vmem:[%s6 + $0x6c] sm:$0xf]
    %v1518 = vld [vmem:[%s6 + $0x70] sm:$0xf]
    %v1519 = vld [vmem:[%s6 + $0x74] sm:$0xf]
    %v1520 = vld [vmem:[%s6 + $0x78] sm:$0xf]
    %v1521 = vld [vmem:[%s6 + $0x7c] sm:$0xf]
    %v1522 = vld [vmem:[%s6 + $0x80] sm:$0xf]
    %v1523 = vld [vmem:[%s6 + $0x84] sm:$0xf]
    %v1524 = vld [vmem:[%s6 + $0x88] sm:$0xf]
    %v1525 = vld [vmem:[%s6 + $0x8c] sm:$0xf]
    %v1526 = vld [vmem:[%s6 + $0x90] sm:$0xf]
    %v1527 = vld [vmem:[%s6 + $0x94] sm:$0xf]
    %v1528 = vld [vmem:[%s6 + $0x98] sm:$0xf]
    %v1529 = vld [vmem:[%s6 + $0x9c] sm:$0xf]
    %v1530 = vld [vmem:[%s6 + $0xa0] sm:$0xf]
    %v1531 = vld [vmem:[%s6 + $0xa4] sm:$0xf]
    %v1532 = vld [vmem:[%s6 + $0xa8] sm:$0xf]
    %v1533 = vld [vmem:[%s6 + $0xac] sm:$0xf]
    %v1534 = vld [vmem:[%s6 + $0xb0] sm:$0xf]
    %v1535 = vld [vmem:[%s6 + $0xb4] sm:$0xf]
    %v1536 = vld [vmem:[%s6 + $0xb8] sm:$0xf]
    %v1537 = vld [vmem:[%s6 + $0xbc] sm:$0xf]
    %v1538 = vld [vmem:[%s6 + $0xc0] sm:$0xf]
    %v1539 = vld [vmem:[%s6 + $0xc4] sm:$0xf]
    %v1540 = vld [vmem:[%s6 + $0xc8] sm:$0xf]
    %v1541 = vld [vmem:[%s6 + $0xcc] sm:$0xf]
    %v1542 = vld [vmem:[%s6 + $0xd0] sm:$0xf]
    %v1543 = vld [vmem:[%s6 + $0xd4] sm:$0xf]
    %v1544 = vld [vmem:[%s6 + $0xd8] sm:$0xf]
    %v1545 = vld [vmem:[%s6 + $0xdc] sm:$0xf]
    %v1546 = vld [vmem:[%s6 + $0xe0] sm:$0xf]
    %v1547 = vld [vmem:[%s6 + $0xe4] sm:$0xf]
    %v1548 = vld [vmem:[%s6 + $0xe8] sm:$0xf]
    %v1549 = vld [vmem:[%s6 + $0xec] sm:$0xf]
    %v1550 = vld [vmem:[%s6 + $0xf0] sm:$0xf]
    %v1551 = vld [vmem:[%s6 + $0xf4] sm:$0xf]
    %v1552 = vld [vmem:[%s6 + $0xf8] sm:$0xf]
    %v1553 = vld [vmem:[%s6 + $0xfc] sm:$0xf]
    %v1554 = vld [vmem:[%s6 + $0x100] sm:$0xf]
    %v1555 = vld [vmem:[%s6 + $0x104] sm:$0xf]
    %v1556 = vld [vmem:[%s6 + $0x108] sm:$0xf]
    %v1557 = vld [vmem:[%s6 + $0x10c] sm:$0xf]
    %v1558 = vld [vmem:[%s6 + $0x110] sm:$0xf]
    %v1559 = vld [vmem:[%s6 + $0x114] sm:$0xf]
    %v1560 = vld [vmem:[%s6 + $0x118] sm:$0xf]
    %v1561 = vld [vmem:[%s6 + $0x11c] sm:$0xf]
    %v1562 = vld [vmem:[%s6 + $0x120] sm:$0xf]
    %v1563 = vld [vmem:[%s6 + $0x124] sm:$0xf]
    %v1564 = vld [vmem:[%s6 + $0x128] sm:$0xf]
    %v1565 = vld [vmem:[%s6 + $0x12c] sm:$0xf]
    %v1566 = vld [vmem:[%s6 + $0x130] sm:$0xf]
    %v1567 = vld [vmem:[%s6 + $0x134] sm:$0xf]
    %v1568 = vld [vmem:[%s6 + $0x138] sm:$0xf]
    %v1569 = vld [vmem:[%s6 + $0x13c] sm:$0xf]
    %v1570 = vld [vmem:[%s6 + $0x140] sm:$0xf]
    %v1571 = vld [vmem:[%s6 + $0x144] sm:$0xf]
    %v1572 = vld [vmem:[%s6 + $0x148] sm:$0xf]
    %v1573 = vld [vmem:[%s6 + $0x14c] sm:$0xf]
    %v1574 = vld [vmem:[%s6 + $0x150] sm:$0xf]
    %v1575 = vld [vmem:[%s6 + $0x154] sm:$0xf]
    %v1576 = vld [vmem:[%s6 + $0x158] sm:$0xf]
    %v1577 = vld [vmem:[%s6 + $0x15c] sm:$0xf]
    %v1578 = vld [vmem:[%s6 + $0x160] sm:$0xf]
    %v1579 = vld [vmem:[%s6 + $0x164] sm:$0xf]
    %v1580 = vld [vmem:[%s6 + $0x168] sm:$0xf]
    %v1581 = vld [vmem:[%s6 + $0x16c] sm:$0xf]
    %v1582 = vld [vmem:[%s6 + $0x170] sm:$0xf]
    %v1583 = vld [vmem:[%s6 + $0x174] sm:$0xf]
    %v1584 = vld [vmem:[%s6 + $0x178] sm:$0xf]
    %v1585 = vld [vmem:[%s6 + $0x17c] sm:$0xf]
    %v1586 = vld [vmem:[%s6 + $0x180] sm:$0xf]
    %v1587 = vld [vmem:[%s6 + $0x184] sm:$0xf]
    %v1588 = vld [vmem:[%s6 + $0x188] sm:$0xf]
    %v1589 = vld [vmem:[%s6 + $0x18c] sm:$0xf]
    %v1590 = vld [vmem:[%s6 + $0x190] sm:$0xf]
    %v1591 = vld [vmem:[%s6 + $0x194] sm:$0xf]
    %v1592 = vld [vmem:[%s6 + $0x198] sm:$0xf]
    %v1593 = vld [vmem:[%s6 + $0x19c] sm:$0xf]
    %v1594 = vld [vmem:[%s6 + $0x1a0] sm:$0xf]
    %v1595 = vld [vmem:[%s6 + $0x1a4] sm:$0xf]
    %v1596 = vld [vmem:[%s6 + $0x1a8] sm:$0xf]
    %v1597 = vld [vmem:[%s6 + $0x1ac] sm:$0xf]
    %v1598 = vld [vmem:[%s6 + $0x1b0] sm:$0xf]
    %v1599 = vld [vmem:[%s6 + $0x1b4] sm:$0xf]
    %v1600 = vld [vmem:[%s6 + $0x1b8] sm:$0xf]
    %v1601 = vld [vmem:[%s6 + $0x1bc] sm:$0xf]
    %v1602 = vld [vmem:[%s6 + $0x1c0] sm:$0xf]
    %v1603 = vld [vmem:[%s6 + $0x1c4] sm:$0xf]
    %v1604 = vld [vmem:[%s6 + $0x1c8] sm:$0xf]
    %v1605 = vld [vmem:[%s6 + $0x1cc] sm:$0xf]
    %v1606 = vld [vmem:[%s6 + $0x1d0] sm:$0xf]
    %v1607 = vld [vmem:[%s6 + $0x1d4] sm:$0xf]
    %v1608 = vld [vmem:[%s6 + $0x1d8] sm:$0xf]
    %v1609 = vld [vmem:[%s6 + $0x1dc] sm:$0xf]
    %v1610 = vld [vmem:[%s6 + $0x1e0] sm:$0xf]
    %v1611 = vld [vmem:[%s6 + $0x1e4] sm:$0xf]
    %v1612 = vld [vmem:[%s6 + $0x1e8] sm:$0xf]
    %v1613 = vld [vmem:[%s6 + $0x1ec] sm:$0xf]
    %v1614 = vld [vmem:[%s6 + $0x1f0] sm:$0xf]
    %v1615 = vld [vmem:[%s6 + $0x1f4] sm:$0xf]
    %v1616 = vld [vmem:[%s6 + $0x1f8] sm:$0xf]
    %v1617 = vld [vmem:[%s6 + $0x1fc] sm:$0xf]
    %v1618 = vld [vmem:[%s6 + $0x200] sm:$0xf]
    %v1619 = vld [vmem:[%s6 + $0x204] sm:$0xf]
    %v1620 = vld [vmem:[%s6 + $0x208] sm:$0xf]
    %v1621 = vld [vmem:[%s6 + $0x20c] sm:$0xf]
    %v1622 = vld [vmem:[%s6 + $0x210] sm:$0xf]
    %v1623 = vld [vmem:[%s6 + $0x214] sm:$0xf]
    %v1624 = vld [vmem:[%s6 + $0x218] sm:$0xf]
    %v1625 = vld [vmem:[%s6 + $0x21c] sm:$0xf]
    %v1626 = vld [vmem:[%s6 + $0x220] sm:$0xf]
    %v1627 = vld [vmem:[%s6 + $0x224] sm:$0xf]
    %v1628 = vld [vmem:[%s6 + $0x228] sm:$0xf]
    %v1629 = vld [vmem:[%s6 + $0x22c] sm:$0xf]
    %v1630 = vld [vmem:[%s6 + $0x230] sm:$0xf]
    %v1631 = vld [vmem:[%s6 + $0x234] sm:$0xf]
    %v1632 = vld [vmem:[%s6 + $0x238] sm:$0xf]
    %v1633 = vld [vmem:[%s6 + $0x23c] sm:$0xf]
    %v1634 = vld [vmem:[%s6 + $0x240] sm:$0xf]
    %v1635 = vld [vmem:[%s6 + $0x244] sm:$0xf]
    %v1636 = vld [vmem:[%s6 + $0x248] sm:$0xf]
    %v1637 = vld [vmem:[%s6 + $0x24c] sm:$0xf]
    %v1638 = vld [vmem:[%s6 + $0x250] sm:$0xf]
    %v1639 = vld [vmem:[%s6 + $0x254] sm:$0xf]
    %v1640 = vld [vmem:[%s6 + $0x258] sm:$0xf]
    %v1641 = vld [vmem:[%s6 + $0x25c] sm:$0xf]
    %v1642 = vld [vmem:[%s6 + $0x260] sm:$0xf]
    %v1643 = vld [vmem:[%s6 + $0x264] sm:$0xf]
    %v1644 = vld [vmem:[%s6 + $0x268] sm:$0xf]
    %v1645 = vld [vmem:[%s6 + $0x26c] sm:$0xf]
    %v1646 = vld [vmem:[%s6 + $0x270] sm:$0xf]
    %v1647 = vld [vmem:[%s6 + $0x274] sm:$0xf]
    %v1648 = vld [vmem:[%s6 + $0x278] sm:$0xf]
    %v1649 = vld [vmem:[%s6 + $0x27c] sm:$0xf]
    %v1650 = vld [vmem:[%s6 + $0x280] sm:$0xf]
    %v1651 = vld [vmem:[%s6 + $0x284] sm:$0xf]
    %v1652 = vld [vmem:[%s6 + $0x288] sm:$0xf]
    %v1653 = vld [vmem:[%s6 + $0x28c] sm:$0xf]
    %v1654 = vld [vmem:[%s6 + $0x290] sm:$0xf]
    %v1655 = vld [vmem:[%s6 + $0x294] sm:$0xf]
    %v1656 = vld [vmem:[%s6 + $0x298] sm:$0xf]
    %v1657 = vld [vmem:[%s6 + $0x29c] sm:$0xf]
    %v1658 = vld [vmem:[%s6 + $0x2a0] sm:$0xf]
    %v1659 = vld [vmem:[%s6 + $0x2a4] sm:$0xf]
    %v1660 = vld [vmem:[%s6 + $0x2a8] sm:$0xf]
    %v1661 = vld [vmem:[%s6 + $0x2ac] sm:$0xf]
    %v1662 = vld [vmem:[%s6 + $0x2b0] sm:$0xf]
    %v1663 = vld [vmem:[%s6 + $0x2b4] sm:$0xf]
    %v1664 = vld [vmem:[%s6 + $0x2b8] sm:$0xf]
    %v1665 = vld [vmem:[%s6 + $0x2bc] sm:$0xf]
    %v1666 = vld [vmem:[%s6 + $0x2c0] sm:$0xf]
    %v1667 = vld [vmem:[%s6 + $0x2c4] sm:$0xf]
    %v1668 = vld [vmem:[%s6 + $0x2c8] sm:$0xf]
    %v1669 = vld [vmem:[%s6 + $0x2cc] sm:$0xf]
    %v1670 = vld [vmem:[%s6 + $0x2d0] sm:$0xf]
    %v1671 = vld [vmem:[%s6 + $0x2d4] sm:$0xf]
    %v1672 = vld [vmem:[%s6 + $0x2d8] sm:$0xf]
    %v1673 = vld [vmem:[%s6 + $0x2dc] sm:$0xf]
    %v1674 = vld [vmem:[%s6 + $0x2e0] sm:$0xf]
    %v1675 = vld [vmem:[%s6 + $0x2e4] sm:$0xf]
    %v1676 = vld [vmem:[%s6 + $0x2e8] sm:$0xf]
    %v1677 = vld [vmem:[%s6 + $0x2ec] sm:$0xf]
    %v1678 = vld [vmem:[%s6 + $0x2f0] sm:$0xf]
    %v1679 = vld [vmem:[%s6 + $0x2f4] sm:$0xf]
    %v1680 = vld [vmem:[%s6 + $0x2f8] sm:$0xf]
    %v1681 = vld [vmem:[%s6 + $0x2fc] sm:$0xf]
    %v1682 = vld [vmem:[%s6 + $0x300] sm:$0xf]
    %v1683 = vld [vmem:[%s6 + $0x304] sm:$0xf]
    %v1684 = vld [vmem:[%s6 + $0x308] sm:$0xf]
    %v1685 = vld [vmem:[%s6 + $0x30c] sm:$0xf]
    %v1686 = vld [vmem:[%s6 + $0x310] sm:$0xf]
    %v1687 = vld [vmem:[%s6 + $0x314] sm:$0xf]
    %v1688 = vld [vmem:[%s6 + $0x318] sm:$0xf]
    %v1689 = vld [vmem:[%s6 + $0x31c] sm:$0xf]
    %v1690 = vld [vmem:[%s6 + $0x320] sm:$0xf]
    %v1691 = vld [vmem:[%s6 + $0x324] sm:$0xf]
    %v1692 = vld [vmem:[%s6 + $0x328] sm:$0xf]
    %v1693 = vld [vmem:[%s6 + $0x32c] sm:$0xf]
    %v1694 = vld [vmem:[%s6 + $0x330] sm:$0xf]
    %v1695 = vld [vmem:[%s6 + $0x334] sm:$0xf]
    %v1696 = vld [vmem:[%s6 + $0x338] sm:$0xf]
    %v1697 = vld [vmem:[%s6 + $0x33c] sm:$0xf]
    %v1698 = vld [vmem:[%s6 + $0x340] sm:$0xf]
    %v1699 = vld [vmem:[%s6 + $0x344] sm:$0xf]
    %v1700 = vld [vmem:[%s6 + $0x348] sm:$0xf]
    %v1701 = vld [vmem:[%s6 + $0x34c] sm:$0xf]
    %v1702 = vld [vmem:[%s6 + $0x350] sm:$0xf]
    %v1703 = vld [vmem:[%s6 + $0x354] sm:$0xf]
    %v1704 = vld [vmem:[%s6 + $0x358] sm:$0xf]
    %v1705 = vld [vmem:[%s6 + $0x35c] sm:$0xf]
    %v1706 = vld [vmem:[%s6 + $0x360] sm:$0xf]
    %v1707 = vld [vmem:[%s6 + $0x364] sm:$0xf]
    %v1708 = vld [vmem:[%s6 + $0x368] sm:$0xf]
    %v1709 = vld [vmem:[%s6 + $0x36c] sm:$0xf]
    %v1710 = vld [vmem:[%s6 + $0x370] sm:$0xf]
    %v1711 = vld [vmem:[%s6 + $0x374] sm:$0xf]
    %v1712 = vld [vmem:[%s6 + $0x378] sm:$0xf]
    %v1713 = vld [vmem:[%s6 + $0x37c] sm:$0xf]
    %v1714 = vld [vmem:[%s6 + $0x380] sm:$0xf]
    %v1715 = vld [vmem:[%s6 + $0x384] sm:$0xf]
    %v1716 = vld [vmem:[%s6 + $0x388] sm:$0xf]
    %v1717 = vld [vmem:[%s6 + $0x38c] sm:$0xf]
    %v1718 = vld [vmem:[%s6 + $0x390] sm:$0xf]
    %v1719 = vld [vmem:[%s6 + $0x394] sm:$0xf]
    %v1720 = vld [vmem:[%s6 + $0x398] sm:$0xf]
    %v1721 = vld [vmem:[%s6 + $0x39c] sm:$0xf]
    %v1722 = vld [vmem:[%s6 + $0x3a0] sm:$0xf]
    %v1723 = vld [vmem:[%s6 + $0x3a4] sm:$0xf]
    %v1724 = vld [vmem:[%s6 + $0x3a8] sm:$0xf]
    %v1725 = vld [vmem:[%s6 + $0x3ac] sm:$0xf]
    %v1726 = vld [vmem:[%s6 + $0x3b0] sm:$0xf]
    %v1727 = vld [vmem:[%s6 + $0x3b4] sm:$0xf]
    %v1728 = vld [vmem:[%s6 + $0x3b8] sm:$0xf]
    %v1729 = vld [vmem:[%s6 + $0x3bc] sm:$0xf]
    %v1730 = vld [vmem:[%s6 + $0x3c0] sm:$0xf]
    %v1731 = vld [vmem:[%s6 + $0x3c4] sm:$0xf]
    %v1732 = vld [vmem:[%s6 + $0x3c8] sm:$0xf]
    %v1733 = vld [vmem:[%s6 + $0x3cc] sm:$0xf]
    %v1734 = vld [vmem:[%s6 + $0x3d0] sm:$0xf]
    %v1735 = vld [vmem:[%s6 + $0x3d4] sm:$0xf]
    %v1736 = vld [vmem:[%s6 + $0x3d8] sm:$0xf]
    %v1737 = vld [vmem:[%s6 + $0x3dc] sm:$0xf]
    %v1738 = vld [vmem:[%s6 + $0x3e0] sm:$0xf]
    %v1739 = vld [vmem:[%s6 + $0x3e4] sm:$0xf]
    %v1740 = vld [vmem:[%s6 + $0x3e8] sm:$0xf]
    %v1741 = vld [vmem:[%s6 + $0x3ec] sm:$0xf]
    %v1742 = vld [vmem:[%s6 + $0x3f0] sm:$0xf]
    %v1743 = vld [vmem:[%s6 + $0x3f4] sm:$0xf]
    %v1744 = vld [vmem:[%s6 + $0x3f8] sm:$0xf]
    %v1745 = vld [vmem:[%s6 + $0x3fc] sm:$0xf]
    %v1746 = vld [vmem:[%s2 + $0x4] sm:$0x1]
    %v1747 = vlaneseq
    %v1748 = vshrl.u32 %v1747, 7
    %v1749 = vsub.s32 0, %v1748
    %v1750 = vrot.slane %v1746, %v1749
    %v2007 = vunpack.c.l.b16 %v1490
    %v2008 = vunpack.c.l.b16 %v1491
    %v2009 = vunpack.c.l.b16 %v1492
    %v2010 = vunpack.c.l.b16 %v1493
    %v2011 = vunpack.c.l.b16 %v1494
    %v2012 = vunpack.c.l.b16 %v1495
    %v2013 = vunpack.c.l.b16 %v1496
    %v2014 = vunpack.c.l.b16 %v1497
    %v2015 = vunpack.c.l.b16 %v1498
    %v2016 = vunpack.c.l.b16 %v1499
    %v2017 = vunpack.c.l.b16 %v1500
    %v2018 = vunpack.c.l.b16 %v1501
    %v2019 = vunpack.c.l.b16 %v1502
    %v2020 = vunpack.c.l.b16 %v1503
    %v2021 = vunpack.c.l.b16 %v1504
    %v2022 = vunpack.c.l.b16 %v1505
    %v2023 = vunpack.c.l.b16 %v1506
    %v2024 = vunpack.c.l.b16 %v1507
    %v2025 = vunpack.c.l.b16 %v1508
    %v2026 = vunpack.c.l.b16 %v1509
    %v2027 = vunpack.c.l.b16 %v1510
    %v2028 = vunpack.c.l.b16 %v1511
    %v2029 = vunpack.c.l.b16 %v1512
    %v2030 = vunpack.c.l.b16 %v1513
    %v2031 = vunpack.c.l.b16 %v1514
    %v2032 = vunpack.c.l.b16 %v1515
    %v2033 = vunpack.c.l.b16 %v1516
    %v2034 = vunpack.c.l.b16 %v1517
    %v2035 = vunpack.c.l.b16 %v1518
    %v2036 = vunpack.c.l.b16 %v1519
    %v2037 = vunpack.c.l.b16 %v1520
    %v2038 = vunpack.c.l.b16 %v1521
    %v2039 = vunpack.c.l.b16 %v1522
    %v2040 = vunpack.c.l.b16 %v1523
    %v2041 = vunpack.c.l.b16 %v1524
    %v2042 = vunpack.c.l.b16 %v1525
    %v2043 = vunpack.c.l.b16 %v1526
    %v2044 = vunpack.c.l.b16 %v1527
    %v2045 = vunpack.c.l.b16 %v1528
    %v2046 = vunpack.c.l.b16 %v1529
    %v2047 = vunpack.c.l.b16 %v1530
    %v2048 = vunpack.c.l.b16 %v1531
    %v2049 = vunpack.c.l.b16 %v1532
    %v2050 = vunpack.c.l.b16 %v1533
    %v2051 = vunpack.c.l.b16 %v1534
    %v2052 = vunpack.c.l.b16 %v1535
    %v2053 = vunpack.c.l.b16 %v1536
    %v2054 = vunpack.c.l.b16 %v1537
    %v2055 = vunpack.c.l.b16 %v1538
    %v2056 = vunpack.c.l.b16 %v1539
    %v2057 = vunpack.c.l.b16 %v1540
    %v2058 = vunpack.c.l.b16 %v1541
    %v2059 = vunpack.c.l.b16 %v1542
    %v2060 = vunpack.c.l.b16 %v1543
    %v2061 = vunpack.c.l.b16 %v1544
    %v2062 = vunpack.c.l.b16 %v1545
    %v2063 = vunpack.c.l.b16 %v1546
    %v2064 = vunpack.c.l.b16 %v1547
    %v2065 = vunpack.c.l.b16 %v1548
    %v2066 = vunpack.c.l.b16 %v1549
    %v2067 = vunpack.c.l.b16 %v1550
    %v2068 = vunpack.c.l.b16 %v1551
    %v2069 = vunpack.c.l.b16 %v1552
    %v2070 = vunpack.c.l.b16 %v1553
    %v2071 = vunpack.c.l.b16 %v1554
    %v2072 = vunpack.c.l.b16 %v1555
    %v2073 = vunpack.c.l.b16 %v1556
    %v2074 = vunpack.c.l.b16 %v1557
    %v2075 = vunpack.c.l.b16 %v1558
    %v2076 = vunpack.c.l.b16 %v1559
    %v2077 = vunpack.c.l.b16 %v1560
    %v2078 = vunpack.c.l.b16 %v1561
    %v2079 = vunpack.c.l.b16 %v1562
    %v2080 = vunpack.c.l.b16 %v1563
    %v2081 = vunpack.c.l.b16 %v1564
    %v2082 = vunpack.c.l.b16 %v1565
    %v2083 = vunpack.c.l.b16 %v1566
    %v2084 = vunpack.c.l.b16 %v1567
    %v2085 = vunpack.c.l.b16 %v1568
    %v2086 = vunpack.c.l.b16 %v1569
    %v2087 = vunpack.c.l.b16 %v1570
    %v2088 = vunpack.c.l.b16 %v1571
    %v2089 = vunpack.c.l.b16 %v1572
    %v2090 = vunpack.c.l.b16 %v1573
    %v2091 = vunpack.c.l.b16 %v1574
    %v2092 = vunpack.c.l.b16 %v1575
    %v2093 = vunpack.c.l.b16 %v1576
    %v2094 = vunpack.c.l.b16 %v1577
    %v2095 = vunpack.c.l.b16 %v1578
    %v2096 = vunpack.c.l.b16 %v1579
    %v2097 = vunpack.c.l.b16 %v1580
    %v2098 = vunpack.c.l.b16 %v1581
    %v2099 = vunpack.c.l.b16 %v1582
    %v2100 = vunpack.c.l.b16 %v1583
    %v2101 = vunpack.c.l.b16 %v1584
    %v2102 = vunpack.c.l.b16 %v1585
    %v2103 = vunpack.c.l.b16 %v1586
    %v2104 = vunpack.c.l.b16 %v1587
    %v2105 = vunpack.c.l.b16 %v1588
    %v2106 = vunpack.c.l.b16 %v1589
    %v2107 = vunpack.c.l.b16 %v1590
    %v2108 = vunpack.c.l.b16 %v1591
    %v2109 = vunpack.c.l.b16 %v1592
    %v2110 = vunpack.c.l.b16 %v1593
    %v2111 = vunpack.c.l.b16 %v1594
    %v2112 = vunpack.c.l.b16 %v1595
    %v2113 = vunpack.c.l.b16 %v1596
    %v2114 = vunpack.c.l.b16 %v1597
    %v2115 = vunpack.c.l.b16 %v1598
    %v2116 = vunpack.c.l.b16 %v1599
    %v2117 = vunpack.c.l.b16 %v1600
    %v2118 = vunpack.c.l.b16 %v1601
    %v2119 = vunpack.c.l.b16 %v1602
    %v2120 = vunpack.c.l.b16 %v1603
    %v2121 = vunpack.c.l.b16 %v1604
    %v2122 = vunpack.c.l.b16 %v1605
    %v2123 = vunpack.c.l.b16 %v1606
    %v2124 = vunpack.c.l.b16 %v1607
    %v2125 = vunpack.c.l.b16 %v1608
    %v2126 = vunpack.c.l.b16 %v1609
    %v2127 = vunpack.c.l.b16 %v1610
    %v2128 = vunpack.c.l.b16 %v1611
    %v2129 = vunpack.c.l.b16 %v1612
    %v2130 = vunpack.c.l.b16 %v1613
    %v2131 = vunpack.c.l.b16 %v1614
    %v2132 = vunpack.c.l.b16 %v1615
    %v2133 = vunpack.c.l.b16 %v1616
    %v2134 = vunpack.c.l.b16 %v1617
    %v2135 = vunpack.c.l.b16 %v1618
    %v2136 = vunpack.c.l.b16 %v1619
    %v2137 = vunpack.c.l.b16 %v1620
    %v2138 = vunpack.c.l.b16 %v1621
    %v2139 = vunpack.c.l.b16 %v1622
    %v2140 = vunpack.c.l.b16 %v1623
    %v2141 = vunpack.c.l.b16 %v1624
    %v2142 = vunpack.c.l.b16 %v1625
    %v2143 = vunpack.c.l.b16 %v1626
    %v2144 = vunpack.c.l.b16 %v1627
    %v2145 = vunpack.c.l.b16 %v1628
    %v2146 = vunpack.c.l.b16 %v1629
    %v2147 = vunpack.c.l.b16 %v1630
    %v2148 = vunpack.c.l.b16 %v1631
    %v2149 = vunpack.c.l.b16 %v1632
    %v2150 = vunpack.c.l.b16 %v1633
    %v2151 = vunpack.c.l.b16 %v1634
    %v2152 = vunpack.c.l.b16 %v1635
    %v2153 = vunpack.c.l.b16 %v1636
    %v2154 = vunpack.c.l.b16 %v1637
    %v2155 = vunpack.c.l.b16 %v1638
    %v2156 = vunpack.c.l.b16 %v1639
    %v2157 = vunpack.c.l.b16 %v1640
    %v2158 = vunpack.c.l.b16 %v1641
    %v2159 = vunpack.c.l.b16 %v1642
    %v2160 = vunpack.c.l.b16 %v1643
    %v2161 = vunpack.c.l.b16 %v1644
    %v2162 = vunpack.c.l.b16 %v1645
    %v2163 = vunpack.c.l.b16 %v1646
    %v2164 = vunpack.c.l.b16 %v1647
    %v2165 = vunpack.c.l.b16 %v1648
    %v2166 = vunpack.c.l.b16 %v1649
    %v2167 = vunpack.c.l.b16 %v1650
    %v2168 = vunpack.c.l.b16 %v1651
    %v2169 = vunpack.c.l.b16 %v1652
    %v2170 = vunpack.c.l.b16 %v1653
    %v2171 = vunpack.c.l.b16 %v1654
    %v2172 = vunpack.c.l.b16 %v1655
    %v2173 = vunpack.c.l.b16 %v1656
    %v2174 = vunpack.c.l.b16 %v1657
    %v2175 = vunpack.c.l.b16 %v1658
    %v2176 = vunpack.c.l.b16 %v1659
    %v2177 = vunpack.c.l.b16 %v1660
    %v2178 = vunpack.c.l.b16 %v1661
    %v2179 = vunpack.c.l.b16 %v1662
    %v2180 = vunpack.c.l.b16 %v1663
    %v2181 = vunpack.c.l.b16 %v1664
    %v2182 = vunpack.c.l.b16 %v1665
    %v2183 = vunpack.c.l.b16 %v1666
    %v2184 = vunpack.c.l.b16 %v1667
    %v2185 = vunpack.c.l.b16 %v1668
    %v2186 = vunpack.c.l.b16 %v1669
    %v2187 = vunpack.c.l.b16 %v1670
    %v2188 = vunpack.c.l.b16 %v1671
    %v2189 = vunpack.c.l.b16 %v1672
    %v2190 = vunpack.c.l.b16 %v1673
    %v2191 = vunpack.c.l.b16 %v1674
    %v2192 = vunpack.c.l.b16 %v1675
    %v2193 = vunpack.c.l.b16 %v1676
    %v2194 = vunpack.c.l.b16 %v1677
    %v2195 = vunpack.c.l.b16 %v1678
    %v2196 = vunpack.c.l.b16 %v1679
    %v2197 = vunpack.c.l.b16 %v1680
    %v2198 = vunpack.c.l.b16 %v1681
    %v2199 = vunpack.c.l.b16 %v1682
    %v2200 = vunpack.c.l.b16 %v1683
    %v2201 = vunpack.c.l.b16 %v1684
    %v2202 = vunpack.c.l.b16 %v1685
    %v2203 = vunpack.c.l.b16 %v1686
    %v2204 = vunpack.c.l.b16 %v1687
    %v2205 = vunpack.c.l.b16 %v1688
    %v2206 = vunpack.c.l.b16 %v1689
    %v2207 = vunpack.c.l.b16 %v1690
    %v2208 = vunpack.c.l.b16 %v1691
    %v2209 = vunpack.c.l.b16 %v1692
    %v2210 = vunpack.c.l.b16 %v1693
    %v2211 = vunpack.c.l.b16 %v1694
    %v2212 = vunpack.c.l.b16 %v1695
    %v2213 = vunpack.c.l.b16 %v1696
    %v2214 = vunpack.c.l.b16 %v1697
    %v2215 = vunpack.c.l.b16 %v1698
    %v2216 = vunpack.c.l.b16 %v1699
    %v2217 = vunpack.c.l.b16 %v1700
    %v2218 = vunpack.c.l.b16 %v1701
    %v2219 = vunpack.c.l.b16 %v1702
    %v2220 = vunpack.c.l.b16 %v1703
    %v2221 = vunpack.c.l.b16 %v1704
    %v2222 = vunpack.c.l.b16 %v1705
    %v2223 = vunpack.c.l.b16 %v1706
    %v2224 = vunpack.c.l.b16 %v1707
    %v2225 = vunpack.c.l.b16 %v1708
    %v2226 = vunpack.c.l.b16 %v1709
    %v2227 = vunpack.c.l.b16 %v1710
    %v2228 = vunpack.c.l.b16 %v1711
    %v2229 = vunpack.c.l.b16 %v1712
    %v2230 = vunpack.c.l.b16 %v1713
    %v2231 = vunpack.c.l.b16 %v1714
    %v2232 = vunpack.c.l.b16 %v1715
    %v2233 = vunpack.c.l.b16 %v1716
    %v2234 = vunpack.c.l.b16 %v1717
    %v2235 = vunpack.c.l.b16 %v1718
    %v2236 = vunpack.c.l.b16 %v1719
    %v2237 = vunpack.c.l.b16 %v1720
    %v2238 = vunpack.c.l.b16 %v1721
    %v2239 = vunpack.c.l.b16 %v1722
    %v2240 = vunpack.c.l.b16 %v1723
    %v2241 = vunpack.c.l.b16 %v1724
    %v2242 = vunpack.c.l.b16 %v1725
    %v2243 = vunpack.c.l.b16 %v1726
    %v2244 = vunpack.c.l.b16 %v1727
    %v2245 = vunpack.c.l.b16 %v1728
    %v2246 = vunpack.c.l.b16 %v1729
    %v2247 = vunpack.c.l.b16 %v1730
    %v2248 = vunpack.c.l.b16 %v1731
    %v2249 = vunpack.c.l.b16 %v1732
    %v2250 = vunpack.c.l.b16 %v1733
    %v2251 = vunpack.c.l.b16 %v1734
    %v2252 = vunpack.c.l.b16 %v1735
    %v2253 = vunpack.c.l.b16 %v1736
    %v2254 = vunpack.c.l.b16 %v1737
    %v2255 = vunpack.c.l.b16 %v1738
    %v2256 = vunpack.c.l.b16 %v1739
    %v2257 = vunpack.c.l.b16 %v1740
    %v2258 = vunpack.c.l.b16 %v1741
    %v2259 = vunpack.c.l.b16 %v1742
    %v2260 = vunpack.c.l.b16 %v1743
    %v2261 = vunpack.c.l.b16 %v1744
    %v2262 = vunpack.c.l.b16 %v1745
    %v2263 = vpack.c.b16 %v2008, %v2007
    %v2264 = vpack.c.b16 %v2010, %v2009
    %v2265 = vpack.c.b16 %v2012, %v2011
    %v2266 = vpack.c.b16 %v2014, %v2013
    %v2267 = vpack.c.b16 %v2016, %v2015
    %v2268 = vpack.c.b16 %v2018, %v2017
    %v2269 = vpack.c.b16 %v2020, %v2019
    %v2270 = vpack.c.b16 %v2022, %v2021
    %v2271 = vpack.c.b16 %v2024, %v2023
    %v2272 = vpack.c.b16 %v2026, %v2025
    %v2273 = vpack.c.b16 %v2028, %v2027
    %v2274 = vpack.c.b16 %v2030, %v2029
    %v2275 = vpack.c.b16 %v2032, %v2031
    %v2276 = vpack.c.b16 %v2034, %v2033
    %v2277 = vpack.c.b16 %v2036, %v2035
    %v2278 = vpack.c.b16 %v2038, %v2037
    %v2279 = vpack.c.b16 %v2040, %v2039
    %v2280 = vpack.c.b16 %v2042, %v2041
    %v2281 = vpack.c.b16 %v2044, %v2043
    %v2282 = vpack.c.b16 %v2046, %v2045
    %v2283 = vpack.c.b16 %v2048, %v2047
    %v2284 = vpack.c.b16 %v2050, %v2049
    %v2285 = vpack.c.b16 %v2052, %v2051
    %v2286 = vpack.c.b16 %v2054, %v2053
    %v2287 = vpack.c.b16 %v2056, %v2055
    %v2288 = vpack.c.b16 %v2058, %v2057
    %v2289 = vpack.c.b16 %v2060, %v2059
    %v2290 = vpack.c.b16 %v2062, %v2061
    %v2291 = vpack.c.b16 %v2064, %v2063
    %v2292 = vpack.c.b16 %v2066, %v2065
    %v2293 = vpack.c.b16 %v2068, %v2067
    %v2294 = vpack.c.b16 %v2070, %v2069
    %v2295 = vpack.c.b16 %v2072, %v2071
    %v2296 = vpack.c.b16 %v2074, %v2073
    %v2297 = vpack.c.b16 %v2076, %v2075
    %v2298 = vpack.c.b16 %v2078, %v2077
    %v2299 = vpack.c.b16 %v2080, %v2079
    %v2300 = vpack.c.b16 %v2082, %v2081
    %v2301 = vpack.c.b16 %v2084, %v2083
    %v2302 = vpack.c.b16 %v2086, %v2085
    %v2303 = vpack.c.b16 %v2088, %v2087
    %v2304 = vpack.c.b16 %v2090, %v2089
    %v2305 = vpack.c.b16 %v2092, %v2091
    %v2306 = vpack.c.b16 %v2094, %v2093
    %v2307 = vpack.c.b16 %v2096, %v2095
    %v2308 = vpack.c.b16 %v2098, %v2097
    %v2309 = vpack.c.b16 %v2100, %v2099
    %v2310 = vpack.c.b16 %v2102, %v2101
    %v2311 = vpack.c.b16 %v2104, %v2103
    %v2312 = vpack.c.b16 %v2106, %v2105
    %v2313 = vpack.c.b16 %v2108, %v2107
    %v2314 = vpack.c.b16 %v2110, %v2109
    %v2315 = vpack.c.b16 %v2112, %v2111
    %v2316 = vpack.c.b16 %v2114, %v2113
    %v2317 = vpack.c.b16 %v2116, %v2115
    %v2318 = vpack.c.b16 %v2118, %v2117
    %v2319 = vpack.c.b16 %v2120, %v2119
    %v2320 = vpack.c.b16 %v2122, %v2121
    %v2321 = vpack.c.b16 %v2124, %v2123
    %v2322 = vpack.c.b16 %v2126, %v2125
    %v2323 = vpack.c.b16 %v2128, %v2127
    %v2324 = vpack.c.b16 %v2130, %v2129
    %v2325 = vpack.c.b16 %v2132, %v2131
    %v2326 = vpack.c.b16 %v2134, %v2133
    %v2327 = vpack.c.b16 %v2136, %v2135
    %v2328 = vpack.c.b16 %v2138, %v2137
    %v2329 = vpack.c.b16 %v2140, %v2139
    %v2330 = vpack.c.b16 %v2142, %v2141
    %v2331 = vpack.c.b16 %v2144, %v2143
    %v2332 = vpack.c.b16 %v2146, %v2145
    %v2333 = vpack.c.b16 %v2148, %v2147
    %v2334 = vpack.c.b16 %v2150, %v2149
    %v2335 = vpack.c.b16 %v2152, %v2151
    %v2336 = vpack.c.b16 %v2154, %v2153
    %v2337 = vpack.c.b16 %v2156, %v2155
    %v2338 = vpack.c.b16 %v2158, %v2157
    %v2339 = vpack.c.b16 %v2160, %v2159
    %v2340 = vpack.c.b16 %v2162, %v2161
    %v2341 = vpack.c.b16 %v2164, %v2163
    %v2342 = vpack.c.b16 %v2166, %v2165
    %v2343 = vpack.c.b16 %v2168, %v2167
    %v2344 = vpack.c.b16 %v2170, %v2169
    %v2345 = vpack.c.b16 %v2172, %v2171
    %v2346 = vpack.c.b16 %v2174, %v2173
    %v2347 = vpack.c.b16 %v2176, %v2175
    %v2348 = vpack.c.b16 %v2178, %v2177
    %v2349 = vpack.c.b16 %v2180, %v2179
    %v2350 = vpack.c.b16 %v2182, %v2181
    %v2351 = vpack.c.b16 %v2184, %v2183
    %v2352 = vpack.c.b16 %v2186, %v2185
    %v2353 = vpack.c.b16 %v2188, %v2187
    %v2354 = vpack.c.b16 %v2190, %v2189
    %v2355 = vpack.c.b16 %v2192, %v2191
    %v2356 = vpack.c.b16 %v2194, %v2193
    %v2357 = vpack.c.b16 %v2196, %v2195
    %v2358 = vpack.c.b16 %v2198, %v2197
    %v2359 = vpack.c.b16 %v2200, %v2199
    %v2360 = vpack.c.b16 %v2202, %v2201
    %v2361 = vpack.c.b16 %v2204, %v2203
    %v2362 = vpack.c.b16 %v2206, %v2205
    %v2363 = vpack.c.b16 %v2208, %v2207
    %v2364 = vpack.c.b16 %v2210, %v2209
    %v2365 = vpack.c.b16 %v2212, %v2211
    %v2366 = vpack.c.b16 %v2214, %v2213
    %v2367 = vpack.c.b16 %v2216, %v2215
    %v2368 = vpack.c.b16 %v2218, %v2217
    %v2369 = vpack.c.b16 %v2220, %v2219
    %v2370 = vpack.c.b16 %v2222, %v2221
    %v2371 = vpack.c.b16 %v2224, %v2223
    %v2372 = vpack.c.b16 %v2226, %v2225
    %v2373 = vpack.c.b16 %v2228, %v2227
    %v2374 = vpack.c.b16 %v2230, %v2229
    %v2375 = vpack.c.b16 %v2232, %v2231
    %v2376 = vpack.c.b16 %v2234, %v2233
    %v2377 = vpack.c.b16 %v2236, %v2235
    %v2378 = vpack.c.b16 %v2238, %v2237
    %v2379 = vpack.c.b16 %v2240, %v2239
    %v2380 = vpack.c.b16 %v2242, %v2241
    %v2381 = vpack.c.b16 %v2244, %v2243
    %v2382 = vpack.c.b16 %v2246, %v2245
    %v2383 = vpack.c.b16 %v2248, %v2247
    %v2384 = vpack.c.b16 %v2250, %v2249
    %v2385 = vpack.c.b16 %v2252, %v2251
    %v2386 = vpack.c.b16 %v2254, %v2253
    %v2387 = vpack.c.b16 %v2256, %v2255
    %v2388 = vpack.c.b16 %v2258, %v2257
    %v2389 = vpack.c.b16 %v2260, %v2259
    %v2390 = vpack.c.b16 %v2262, %v2261
    %2519 = vmatprep.subr.bf16.mxu0 0
    %2520 = vmatpush1.bf16.msra.mxu0 %v2263
    %2521 = vmatprep.subr.bf16.mxu0 0
    %2522 = vmatpush1.bf16.msra.mxu0 %v2264
    %2523 = vmatprep.subr.bf16.mxu0 0
    %2524 = vmatpush1.bf16.msra.mxu0 %v2265
    %2525 = vmatprep.subr.bf16.mxu0 0
    %2526 = vmatpush1.bf16.msra.mxu0 %v2266
    %2527 = vmatprep.subr.bf16.mxu0 0
    %2528 = vmatpush1.bf16.msra.mxu0 %v2267
    %2529 = vmatprep.subr.bf16.mxu0 0
    %2530 = vmatpush1.bf16.msra.mxu0 %v2268
    %2531 = vmatprep.subr.bf16.mxu0 0
    %2532 = vmatpush1.bf16.msra.mxu0 %v2269
    %2533 = vmatprep.subr.bf16.mxu0 0
    %2534 = vmatpush1.bf16.msra.mxu0 %v2270
    %2535 = vmatprep.subr.bf16.mxu0 0
    %2536 = vmatpush1.bf16.msra.mxu0 %v2271
    %2537 = vmatprep.subr.bf16.mxu0 0
    %2538 = vmatpush1.bf16.msra.mxu0 %v2272
    %2539 = vmatprep.subr.bf16.mxu0 0
    %2540 = vmatpush1.bf16.msra.mxu0 %v2273
    %2541 = vmatprep.subr.bf16.mxu0 0
    %2542 = vmatpush1.bf16.msra.mxu0 %v2274
    %2543 = vmatprep.subr.bf16.mxu0 0
    %2544 = vmatpush1.bf16.msra.mxu0 %v2275
    %2545 = vmatprep.subr.bf16.mxu0 0
    %2546 = vmatpush1.bf16.msra.mxu0 %v2276
    %2547 = vmatprep.subr.bf16.mxu0 0
    %2548 = vmatpush1.bf16.msra.mxu0 %v2277
    %2549 = vmatprep.subr.bf16.mxu0 0
    %2550 = vmatpush1.bf16.msra.mxu0 %v2278
    %2551 = vmatprep.mubr.bf16.mxu0 %v1475
    %2552 = vmatmul.mubr.bf16.gmra.mrb[0].mxu0 %v1474
    %v2553 = vpop.f32.mrb[0].mxu0
    %v2554 = vadd.f32 %v1750, %v2553
    %v2555 = vpop.f32.mrb[0].mxu0
    %v2556 = vpop.f32.mrb[0].mxu0
    %v2557 = vpop.f32.mrb[0].mxu0
    %2558 = vdwg.mxu0
    %2559 = vmatprep.subr.bf16.mxu0 0
    %2560 = vmatpush1.bf16.msra.mxu0 %v2279
    %2561 = vmatprep.subr.bf16.mxu0 0
    %2562 = vmatpush1.bf16.msra.mxu0 %v2280
    %2563 = vmatprep.subr.bf16.mxu0 0
    %2564 = vmatpush1.bf16.msra.mxu0 %v2281
    %2565 = vmatprep.subr.bf16.mxu0 0
    %2566 = vmatpush1.bf16.msra.mxu0 %v2282
    %2567 = vmatprep.subr.bf16.mxu0 0
    %2568 = vmatpush1.bf16.msra.mxu0 %v2283
    %2569 = vmatprep.subr.bf16.mxu0 0
    %2570 = vmatpush1.bf16.msra.mxu0 %v2284
    %2571 = vmatprep.subr.bf16.mxu0 0
    %2572 = vmatpush1.bf16.msra.mxu0 %v2285
    %2573 = vmatprep.subr.bf16.mxu0 0
    %2574 = vmatpush1.bf16.msra.mxu0 %v2286
    %2575 = vmatprep.subr.bf16.mxu0 0
    %2576 = vmatpush1.bf16.msra.mxu0 %v2287
    %2577 = vmatprep.subr.bf16.mxu0 0
    %2578 = vmatpush1.bf16.msra.mxu0 %v2288
    %2579 = vmatprep.subr.bf16.mxu0 0
    %2580 = vmatpush1.bf16.msra.mxu0 %v2289
    %2581 = vmatprep.subr.bf16.mxu0 0
    %2582 = vmatpush1.bf16.msra.mxu0 %v2290
    %2583 = vmatprep.subr.bf16.mxu0 0
    %2584 = vmatpush1.bf16.msra.mxu0 %v2291
    %2585 = vmatprep.subr.bf16.mxu0 0
    %2586 = vmatpush1.bf16.msra.mxu0 %v2292
    %2587 = vmatprep.subr.bf16.mxu0 0
    %2588 = vmatpush1.bf16.msra.mxu0 %v2293
    %2589 = vmatprep.subr.bf16.mxu0 0
    %2590 = vmatpush1.bf16.msra.mxu0 %v2294
    %2591 = vmatprep.mubr.bf16.mxu0 %v1477
    %2592 = vmatmul.mubr.bf16.gmra.mrb[0].mxu0 %v1476
    %v2593 = vpop.f32.mrb[0].mxu0
    %v2594 = vadd.f32 %v2554, %v2593
    %v2595 = vpop.f32.mrb[0].mxu0
    %v2596 = vpop.f32.mrb[0].mxu0
    %v2597 = vpop.f32.mrb[0].mxu0
    %2598 = vdwg.mxu0
    %2599 = vmatprep.subr.bf16.mxu0 0
    %2600 = vmatpush1.bf16.msra.mxu0 %v2295
    %2601 = vmatprep.subr.bf16.mxu0 0
    %2602 = vmatpush1.bf16.msra.mxu0 %v2296
    %2603 = vmatprep.subr.bf16.mxu0 0
    %2604 = vmatpush1.bf16.msra.mxu0 %v2297
    %2605 = vmatprep.subr.bf16.mxu0 0
    %2606 = vmatpush1.bf16.msra.mxu0 %v2298
    %2607 = vmatprep.subr.bf16.mxu0 0
    %2608 = vmatpush1.bf16.msra.mxu0 %v2299
    %2609 = vmatprep.subr.bf16.mxu0 0
    %2610 = vmatpush1.bf16.msra.mxu0 %v2300
    %2611 = vmatprep.subr.bf16.mxu0 0
    %2612 = vmatpush1.bf16.msra.mxu0 %v2301
    %2613 = vmatprep.subr.bf16.mxu0 0
    %2614 = vmatpush1.bf16.msra.mxu0 %v2302
    %2615 = vmatprep.subr.bf16.mxu0 0
    %2616 = vmatpush1.bf16.msra.mxu0 %v2303
    %2617 = vmatprep.subr.bf16.mxu0 0
    %2618 = vmatpush1.bf16.msra.mxu0 %v2304
    %2619 = vmatprep.subr.bf16.mxu0 0
    %2620 = vmatpush1.bf16.msra.mxu0 %v2305
    %2621 = vmatprep.subr.bf16.mxu0 0
    %2622 = vmatpush1.bf16.msra.mxu0 %v2306
    %2623 = vmatprep.subr.bf16.mxu0 0
    %2624 = vmatpush1.bf16.msra.mxu0 %v2307
    %2625 = vmatprep.subr.bf16.mxu0 0
    %2626 = vmatpush1.bf16.msra.mxu0 %v2308
    %2627 = vmatprep.subr.bf16.mxu0 0
    %2628 = vmatpush1.bf16.msra.mxu0 %v2309
    %2629 = vmatprep.subr.bf16.mxu0 0
    %2630 = vmatpush1.bf16.msra.mxu0 %v2310
    %2631 = vmatprep.mubr.bf16.mxu0 %v1479
    %2632 = vmatmul.mubr.bf16.gmra.mrb[0].mxu0 %v1478
    %v2633 = vpop.f32.mrb[0].mxu0
    %v2634 = vadd.f32 %v2594, %v2633
    %v2635 = vpop.f32.mrb[0].mxu0
    %v2636 = vpop.f32.mrb[0].mxu0
    %v2637 = vpop.f32.mrb[0].mxu0
    %2638 = vdwg.mxu0
    %2639 = vmatprep.subr.bf16.mxu0 0
    %2640 = vmatpush1.bf16.msra.mxu0 %v2311
    %2641 = vmatprep.subr.bf16.mxu0 0
    %2642 = vmatpush1.bf16.msra.mxu0 %v2312
    %2643 = vmatprep.subr.bf16.mxu0 0
    %2644 = vmatpush1.bf16.msra.mxu0 %v2313
    %2645 = vmatprep.subr.bf16.mxu0 0
    %2646 = vmatpush1.bf16.msra.mxu0 %v2314
    %2647 = vmatprep.subr.bf16.mxu0 0
    %2648 = vmatpush1.bf16.msra.mxu0 %v2315
    %2649 = vmatprep.subr.bf16.mxu0 0
    %2650 = vmatpush1.bf16.msra.mxu0 %v2316
    %2651 = vmatprep.subr.bf16.mxu0 0
    %2652 = vmatpush1.bf16.msra.mxu0 %v2317
    %2653 = vmatprep.subr.bf16.mxu0 0
    %2654 = vmatpush1.bf16.msra.mxu0 %v2318
    %2655 = vmatprep.subr.bf16.mxu0 0
    %2656 = vmatpush1.bf16.msra.mxu0 %v2319
    %2657 = vmatprep.subr.bf16.mxu0 0
    %2658 = vmatpush1.bf16.msra.mxu0 %v2320
    %2659 = vmatprep.subr.bf16.mxu0 0
    %2660 = vmatpush1.bf16.msra.mxu0 %v2321
    %2661 = vmatprep.subr.bf16.mxu0 0
    %2662 = vmatpush1.bf16.msra.mxu0 %v2322
    %2663 = vmatprep.subr.bf16.mxu0 0
    %2664 = vmatpush1.bf16.msra.mxu0 %v2323
    %2665 = vmatprep.subr.bf16.mxu0 0
    %2666 = vmatpush1.bf16.msra.mxu0 %v2324
    %2667 = vmatprep.subr.bf16.mxu0 0
    %2668 = vmatpush1.bf16.msra.mxu0 %v2325
    %2669 = vmatprep.subr.bf16.mxu0 0
    %2670 = vmatpush1.bf16.msra.mxu0 %v2326
    %2671 = vmatprep.mubr.bf16.mxu0 %v1481
    %2672 = vmatmul.mubr.bf16.gmra.mrb[0].mxu0 %v1480
    %v2673 = vpop.f32.mrb[0].mxu0
    %v2674 = vadd.f32 %v2634, %v2673
    %v2675 = vpop.f32.mrb[0].mxu0
    %v2676 = vpop.f32.mrb[0].mxu0
    %v2677 = vpop.f32.mrb[0].mxu0
    %2678 = vdwg.mxu0
    %2679 = vmatprep.subr.bf16.mxu0 0
    %2680 = vmatpush1.bf16.msra.mxu0 %v2327
    %2681 = vmatprep.subr.bf16.mxu0 0
    %2682 = vmatpush1.bf16.msra.mxu0 %v2328
    %2683 = vmatprep.subr.bf16.mxu0 0
    %2684 = vmatpush1.bf16.msra.mxu0 %v2329
    %2685 = vmatprep.subr.bf16.mxu0 0
    %2686 = vmatpush1.bf16.msra.mxu0 %v2330
    %2687 = vmatprep.subr.bf16.mxu0 0
    %2688 = vmatpush1.bf16.msra.mxu0 %v2331
    %2689 = vmatprep.subr.bf16.mxu0 0
    %2690 = vmatpush1.bf16.msra.mxu0 %v2332
    %2691 = vmatprep.subr.bf16.mxu0 0
    %2692 = vmatpush1.bf16.msra.mxu0 %v2333
    %2693 = vmatprep.subr.bf16.mxu0 0
    %2694 = vmatpush1.bf16.msra.mxu0 %v2334
    %2695 = vmatprep.subr.bf16.mxu0 0
    %2696 = vmatpush1.bf16.msra.mxu0 %v2335
    %2697 = vmatprep.subr.bf16.mxu0 0
    %2698 = vmatpush1.bf16.msra.mxu0 %v2336
    %2699 = vmatprep.subr.bf16.mxu0 0
    %2700 = vmatpush1.bf16.msra.mxu0 %v2337
    %2701 = vmatprep.subr.bf16.mxu0 0
    %2702 = vmatpush1.bf16.msra.mxu0 %v2338
    %2703 = vmatprep.subr.bf16.mxu0 0
    %2704 = vmatpush1.bf16.msra.mxu0 %v2339
    %2705 = vmatprep.subr.bf16.mxu0 0
    %2706 = vmatpush1.bf16.msra.mxu0 %v2340
    %2707 = vmatprep.subr.bf16.mxu0 0
    %2708 = vmatpush1.bf16.msra.mxu0 %v2341
    %2709 = vmatprep.subr.bf16.mxu0 0
    %2710 = vmatpush1.bf16.msra.mxu0 %v2342
    %2711 = vmatprep.mubr.bf16.mxu0 %v1483
    %2712 = vmatmul.mubr.bf16.gmra.mrb[0].mxu0 %v1482
    %v2713 = vpop.f32.mrb[0].mxu0
    %v2714 = vadd.f32 %v2674, %v2713
    %v2715 = vpop.f32.mrb[0].mxu0
    %v2716 = vpop.f32.mrb[0].mxu0
    %v2717 = vpop.f32.mrb[0].mxu0
    %2718 = vdwg.mxu0
    %2719 = vmatprep.subr.bf16.mxu0 0
    %2720 = vmatpush1.bf16.msra.mxu0 %v2343
    %2721 = vmatprep.subr.bf16.mxu0 0
    %2722 = vmatpush1.bf16.msra.mxu0 %v2344
    %2723 = vmatprep.subr.bf16.mxu0 0
    %2724 = vmatpush1.bf16.msra.mxu0 %v2345
    %2725 = vmatprep.subr.bf16.mxu0 0
    %2726 = vmatpush1.bf16.msra.mxu0 %v2346
    %2727 = vmatprep.subr.bf16.mxu0 0
    %2728 = vmatpush1.bf16.msra.mxu0 %v2347
    %2729 = vmatprep.subr.bf16.mxu0 0
    %2730 = vmatpush1.bf16.msra.mxu0 %v2348
    %2731 = vmatprep.subr.bf16.mxu0 0
    %2732 = vmatpush1.bf16.msra.mxu0 %v2349
    %2733 = vmatprep.subr.bf16.mxu0 0
    %2734 = vmatpush1.bf16.msra.mxu0 %v2350
    %2735 = vmatprep.subr.bf16.mxu0 0
    %2736 = vmatpush1.bf16.msra.mxu0 %v2351
    %2737 = vmatprep.subr.bf16.mxu0 0
    %2738 = vmatpush1.bf16.msra.mxu0 %v2352
    %2739 = vmatprep.subr.bf16.mxu0 0
    %2740 = vmatpush1.bf16.msra.mxu0 %v2353
    %2741 = vmatprep.subr.bf16.mxu0 0
    %2742 = vmatpush1.bf16.msra.mxu0 %v2354
    %2743 = vmatprep.subr.bf16.mxu0 0
    %2744 = vmatpush1.bf16.msra.mxu0 %v2355
    %2745 = vmatprep.subr.bf16.mxu0 0
    %2746 = vmatpush1.bf16.msra.mxu0 %v2356
    %2747 = vmatprep.subr.bf16.mxu0 0
    %2748 = vmatpush1.bf16.msra.mxu0 %v2357
    %2749 = vmatprep.subr.bf16.mxu0 0
    %2750 = vmatpush1.bf16.msra.mxu0 %v2358
    %2751 = vmatprep.mubr.bf16.mxu0 %v1485
    %2752 = vmatmul.mubr.bf16.gmra.mrb[0].mxu0 %v1484
    %v2753 = vpop.f32.mrb[0].mxu0
    %v2754 = vadd.f32 %v2714, %v2753
    %v2755 = vpop.f32.mrb[0].mxu0
    %v2756 = vpop.f32.mrb[0].mxu0
    %v2757 = vpop.f32.mrb[0].mxu0
    %2758 = vdwg.mxu0
    %2759 = vmatprep.subr.bf16.mxu0 0
    %2760 = vmatpush1.bf16.msra.mxu0 %v2359
    %2761 = vmatprep.subr.bf16.mxu0 0
    %2762 = vmatpush1.bf16.msra.mxu0 %v2360
    %2763 = vmatprep.subr.bf16.mxu0 0
    %2764 = vmatpush1.bf16.msra.mxu0 %v2361
    %2765 = vmatprep.subr.bf16.mxu0 0
    %2766 = vmatpush1.bf16.msra.mxu0 %v2362
    %2767 = vmatprep.subr.bf16.mxu0 0
    %2768 = vmatpush1.bf16.msra.mxu0 %v2363
    %2769 = vmatprep.subr.bf16.mxu0 0
    %2770 = vmatpush1.bf16.msra.mxu0 %v2364
    %2771 = vmatprep.subr.bf16.mxu0 0
    %2772 = vmatpush1.bf16.msra.mxu0 %v2365
    %2773 = vmatprep.subr.bf16.mxu0 0
    %2774 = vmatpush1.bf16.msra.mxu0 %v2366
    %2775 = vmatprep.subr.bf16.mxu0 0
    %2776 = vmatpush1.bf16.msra.mxu0 %v2367
    %2777 = vmatprep.subr.bf16.mxu0 0
    %2778 = vmatpush1.bf16.msra.mxu0 %v2368
    %2779 = vmatprep.subr.bf16.mxu0 0
    %2780 = vmatpush1.bf16.msra.mxu0 %v2369
    %2781 = vmatprep.subr.bf16.mxu0 0
    %2782 = vmatpush1.bf16.msra.mxu0 %v2370
    %2783 = vmatprep.subr.bf16.mxu0 0
    %2784 = vmatpush1.bf16.msra.mxu0 %v2371
    %2785 = vmatprep.subr.bf16.mxu0 0
    %2786 = vmatpush1.bf16.msra.mxu0 %v2372
    %2787 = vmatprep.subr.bf16.mxu0 0
    %2788 = vmatpush1.bf16.msra.mxu0 %v2373
    %2789 = vmatprep.subr.bf16.mxu0 0
    %2790 = vmatpush1.bf16.msra.mxu0 %v2374
    %2791 = vmatprep.mubr.bf16.mxu0 %v1487
    %2792 = vmatmul.mubr.bf16.gmra.mrb[0].mxu0 %v1486
    %v2793 = vpop.f32.mrb[0].mxu0
    %v2794 = vadd.f32 %v2754, %v2793
    %v2795 = vpop.f32.mrb[0].mxu0
    %v2796 = vpop.f32.mrb[0].mxu0
    %v2797 = vpop.f32.mrb[0].mxu0
    %2798 = vdwg.mxu0
    %2799 = vmatprep.subr.bf16.mxu0 0
    %2800 = vmatpush1.bf16.msra.mxu0 %v2375
    %2801 = vmatprep.subr.bf16.mxu0 0
    %2802 = vmatpush1.bf16.msra.mxu0 %v2376
    %2803 = vmatprep.subr.bf16.mxu0 0
    %2804 = vmatpush1.bf16.msra.mxu0 %v2377
    %2805 = vmatprep.subr.bf16.mxu0 0
    %2806 = vmatpush1.bf16.msra.mxu0 %v2378
    %2807 = vmatprep.subr.bf16.mxu0 0
    %2808 = vmatpush1.bf16.msra.mxu0 %v2379
    %2809 = vmatprep.subr.bf16.mxu0 0
    %2810 = vmatpush1.bf16.msra.mxu0 %v2380
    %2811 = vmatprep.subr.bf16.mxu0 0
    %2812 = vmatpush1.bf16.msra.mxu0 %v2381
    %2813 = vmatprep.subr.bf16.mxu0 0
    %2814 = vmatpush1.bf16.msra.mxu0 %v2382
    %2815 = vmatprep.subr.bf16.mxu0 0
    %2816 = vmatpush1.bf16.msra.mxu0 %v2383
    %2817 = vmatprep.subr.bf16.mxu0 0
    %2818 = vmatpush1.bf16.msra.mxu0 %v2384
    %2819 = vmatprep.subr.bf16.mxu0 0
    %2820 = vmatpush1.bf16.msra.mxu0 %v2385
    %2821 = vmatprep.subr.bf16.mxu0 0
    %2822 = vmatpush1.bf16.msra.mxu0 %v2386
    %2823 = vmatprep.subr.bf16.mxu0 0
    %2824 = vmatpush1.bf16.msra.mxu0 %v2387
    %2825 = vmatprep.subr.bf16.mxu0 0
    %2826 = vmatpush1.bf16.msra.mxu0 %v2388
    %2827 = vmatprep.subr.bf16.mxu0 0
    %2828 = vmatpush1.bf16.msra.mxu0 %v2389
    %2829 = vmatprep.subr.bf16.mxu0 0
    %2830 = vmatpush1.bf16.msra.mxu0 %v2390
    %2831 = vmatprep.mubr.bf16.mxu0 %v1489
    %2832 = vmatmul.mubr.bf16.gmra.mrb[0].mxu0 %v1488
    %v2833 = vpop.f32.mrb[0].mxu0
    %v2834 = vadd.f32 %v2794, %v2833
    %v2835 = vpop.f32.mrb[0].mxu0
    %v2836 = vpop.f32.mrb[0].mxu0
    %v2837 = vpop.f32.mrb[0].mxu0
    %2838 = vdwg.mxu0
    %v2839 = vadd.f32 %v848, %v2834
    %v2840 = vsel %vm778, %v2839, 0.0
    %2841 = vadd.xlane.f32.xlu0 %v2840
    %v2842 = vpop.xlane.xlu0 %2841
    %v2843 = vmul.f32 %v2842, %v826
    %v2844 = vsub.f32 %v2839, %v2843
    %v2845 = vmul.f32 %v2844, %v2844
    %v2846 = vsel %vm778, %v2845, 0.0
    %2847 = vadd.xlane.f32.xlu0 %v2846
    %v2848 = vpop.xlane.xlu0 %2847
    %v2849 = vmul.f32 %v2848, %v826
    %v2850 = vadd.f32 %v2849, 1e-05
    %v2851 = vrsqrt.pop %v2850
    %v2852 = vmul.f32 %v2844, %v2851
    %v2853 = vld [vmem:[%s2 + $0x5] sm:$0x1]
    %v2854 = vlaneseq
    %v2855 = vshrl.u32 %v2854, 7
    %v2856 = vsub.s32 0, %v2855
    %v2857 = vrot.slane %v2853, %v2856
    %v2858 = vmul.f32 %v2852, %v2857
    %v2859 = vld [vmem:[%s2 + $0x6] sm:$0x1]
    %v2860 = vlaneseq
    %v2861 = vshrl.u32 %v2860, 7
    %v2862 = vsub.s32 0, %v2861
    %v2863 = vrot.slane %v2859, %v2862
    %v2864 = vadd.f32 %v2858, %v2863
    %v2865 = vld [vmem:[%s7] sm:$0xf]
    %v2866 = vld [vmem:[%s7 + $0x4] sm:$0xf]
    %v2867 = vld [vmem:[%s7 + $0x8] sm:$0xf]
    %v2868 = vld [vmem:[%s7 + $0xc] sm:$0xf]
    %v2869 = vld [vmem:[%s2 + $0x7] sm:$0x1]
    %v2870 = vlaneseq
    %v2871 = vshrl.u32 %v2870, 7
    %v2872 = vsub.s32 0, %v2871
    %v2873 = vrot.slane %v2869, %v2872
    %v2878 = vunpack.c.l.b16 %v2865
    %v2879 = vunpack.c.l.b16 %v2866
    %v2880 = vunpack.c.l.b16 %v2867
    %v2881 = vunpack.c.l.b16 %v2868
    %v2882 = vpack.c.b16 %v2879, %v2878
    %v2883 = vpack.c.b16 %v2881, %v2880
    %2886 = vmatprep.subr.bf16.mxu0 0
    %2887 = vmatpush1.bf16.msra.mxu0 %v2882
    %2888 = vmatprep.subr.bf16.mxu0 0
    %2889 = vmatpush1.bf16.msra.mxu0 %v2883
    %2890 = vmatprep.subr.bf16.mxu0 0
    %2891 = vmatpush1.bf16.msra.mxu0 0
    %2892 = vmatprep.subr.bf16.mxu0 0
    %2893 = vmatpush1.bf16.msra.mxu0 0
    %2894 = vmatprep.subr.bf16.mxu0 0
    %2895 = vmatpush1.bf16.msra.mxu0 0
    %2896 = vmatprep.subr.bf16.mxu0 0
    %2897 = vmatpush1.bf16.msra.mxu0 0
    %2898 = vmatprep.subr.bf16.mxu0 0
    %2899 = vmatpush1.bf16.msra.mxu0 0
    %2900 = vmatprep.subr.bf16.mxu0 0
    %2901 = vmatpush1.bf16.msra.mxu0 0
    %2902 = vmatprep.subr.bf16.mxu0 0
    %2903 = vmatpush1.bf16.msra.mxu0 0
    %2904 = vmatprep.subr.bf16.mxu0 0
    %2905 = vmatpush1.bf16.msra.mxu0 0
    %2906 = vmatprep.subr.bf16.mxu0 0
    %2907 = vmatpush1.bf16.msra.mxu0 0
    %2908 = vmatprep.subr.bf16.mxu0 0
    %2909 = vmatpush1.bf16.msra.mxu0 0
    %2910 = vmatprep.subr.bf16.mxu0 0
    %2911 = vmatpush1.bf16.msra.mxu0 0
    %2912 = vmatprep.subr.bf16.mxu0 0
    %2913 = vmatpush1.bf16.msra.mxu0 0
    %2914 = vmatprep.subr.bf16.mxu0 0
    %2915 = vmatpush1.bf16.msra.mxu0 0
    %2916 = vmatprep.subr.bf16.mxu0 0
    %2917 = vmatpush1.bf16.msra.mxu0 0
    %2918 = vmatprep.mubr.bf16.mxu0 0
    %2919 = vmatmul.mubr.bf16.gmra.mrb[0].mxu0 %v780
    %v2920 = vpop.f32.mrb[0].mxu0
    %v2921 = vadd.f32 %v2873, %v2920
    %v2922 = vpop.f32.mrb[0].mxu0
    %v2923 = vpop.f32.mrb[0].mxu0
    %v2924 = vpop.f32.mrb[0].mxu0
    %2925 = vdwg.mxu0
    %v2926 = vadd.f32 %v755, %v2921
    %v2927 = vsel %vm778, %v2926, 0.0
    %2928 = vadd.xlane.f32.xlu0 %v2927
    %v2929 = vpop.xlane.xlu0 %2928
    %v2930 = vmul.f32 %v2929, %v826
    %v2931 = vsub.f32 %v2926, %v2930
    %v2932 = vmul.f32 %v2931, %v2931
    %v2933 = vsel %vm778, %v2932, 0.0
    %2934 = vadd.xlane.f32.xlu0 %v2933
    %v2935 = vpop.xlane.xlu0 %2934
    %v2936 = vmul.f32 %v2935, %v826
    %v2937 = vadd.f32 %v2936, 1e-05
    %v2938 = vrsqrt.pop %v2937
    %v2939 = vmul.f32 %v2931, %v2938
    %v2940 = vld [vmem:[%s2 + $0x8] sm:$0x1]
    %v2941 = vlaneseq
    %v2942 = vshrl.u32 %v2941, 7
    %v2943 = vsub.s32 0, %v2942
    %v2944 = vrot.slane %v2940, %v2943
    %v2945 = vmul.f32 %v2939, %v2944
    %v2946 = vld [vmem:[%s2 + $0x9] sm:$0x1]
    %v2947 = vlaneseq
    %v2948 = vshrl.u32 %v2947, 7
    %v2949 = vsub.s32 0, %v2948
    %v2950 = vrot.slane %v2946, %v2949
    %v2951 = vadd.f32 %v2945, %v2950
    %v2952 = vpack.c.bf16 %v2864, %v2864
    %v2953 = vld [vmem:[%s8] sm:$0xf]
    %v2954 = vld [vmem:[%s8 + $0x4] sm:$0xf]
    %v2955 = vld [vmem:[%s8 + $0x8] sm:$0xf]
    %v2956 = vld [vmem:[%s8 + $0xc] sm:$0xf]
    %v2957 = vld [vmem:[%s2 + $0xa] sm:$0x1]
    %v2958 = vlaneseq
    %v2959 = vshrl.u32 %v2958, 7
    %v2960 = vsub.s32 0, %v2959
    %v2961 = vrot.slane %v2957, %v2960
    %v2966 = vunpack.c.l.b16 %v2953
    %v2967 = vunpack.c.l.b16 %v2954
    %v2968 = vunpack.c.l.b16 %v2955
    %v2969 = vunpack.c.l.b16 %v2956
    %v2970 = vpack.c.b16 %v2967, %v2966
    %v2971 = vpack.c.b16 %v2969, %v2968
    %v2975 = vsel %vm778, %v2952, 0
    %2977 = vmatprep.subr.bf16.mxu0 0
    %2978 = vmatpush1.bf16.msra.mxu0 %v2970
    %2979 = vmatprep.subr.bf16.mxu0 0
    %2980 = vmatpush1.bf16.msra.mxu0 %v2971
    %2981 = vmatprep.subr.bf16.mxu0 0
    %2982 = vmatpush1.bf16.msra.mxu0 0
    %2983 = vmatprep.subr.bf16.mxu0 0
    %2984 = vmatpush1.bf16.msra.mxu0 0
    %2985 = vmatprep.subr.bf16.mxu0 0
    %2986 = vmatpush1.bf16.msra.mxu0 0
    %2987 = vmatprep.subr.bf16.mxu0 0
    %2988 = vmatpush1.bf16.msra.mxu0 0
    %2989 = vmatprep.subr.bf16.mxu0 0
    %2990 = vmatpush1.bf16.msra.mxu0 0
    %2991 = vmatprep.subr.bf16.mxu0 0
    %2992 = vmatpush1.bf16.msra.mxu0 0
    %2993 = vmatprep.subr.bf16.mxu0 0
    %2994 = vmatpush1.bf16.msra.mxu0 0
    %2995 = vmatprep.subr.bf16.mxu0 0
    %2996 = vmatpush1.bf16.msra.mxu0 0
    %2997 = vmatprep.subr.bf16.mxu0 0
    %2998 = vmatpush1.bf16.msra.mxu0 0
    %2999 = vmatprep.subr.bf16.mxu0 0
    %3000 = vmatpush1.bf16.msra.mxu0 0
    %3001 = vmatprep.subr.bf16.mxu0 0
    %3002 = vmatpush1.bf16.msra.mxu0 0
    %3003 = vmatprep.subr.bf16.mxu0 0
    %3004 = vmatpush1.bf16.msra.mxu0 0
    %3005 = vmatprep.subr.bf16.mxu0 0
    %3006 = vmatpush1.bf16.msra.mxu0 0
    %3007 = vmatprep.subr.bf16.mxu0 0
    %3008 = vmatpush1.bf16.msra.mxu0 0
    %3009 = vmatprep.mubr.bf16.mxu0 0
    %3010 = vmatmul.mubr.bf16.gmra.mrb[0].mxu0 %v2975
    %v3011 = vpop.f32.mrb[0].mxu0
    %v3012 = vadd.f32 %v2961, %v3011
    %v3013 = vpop.f32.mrb[0].mxu0
    %v3014 = vpop.f32.mrb[0].mxu0
    %v3015 = vpop.f32.mrb[0].mxu0
    %3016 = vdwg.mxu0
    %v3017 = vadd.f32 %v2951, %v3012
    %v3018 = vsel %vm778, %v3017, 0.0
    %3019 = vadd.xlane.f32.xlu0 %v3018
    %v3020 = vpop.xlane.xlu0 %3019
    %v3021 = vmul.f32 %v3020, %v826
    %v3022 = vsub.f32 %v3017, %v3021
    %v3023 = vmul.f32 %v3022, %v3022
    %v3024 = vsel %vm778, %v3023, 0.0
    %3025 = vadd.xlane.f32.xlu0 %v3024
    %v3026 = vpop.xlane.xlu0 %3025
    %v3027 = vmul.f32 %v3026, %v826
    %v3028 = vadd.f32 %v3027, 1e-05
    %v3029 = vrsqrt.pop %v3028
    %v3030 = vmul.f32 %v3022, %v3029
    %v3031 = vld [vmem:[%s2 + $0xb] sm:$0x1]
    %v3032 = vlaneseq
    %v3033 = vshrl.u32 %v3032, 7
    %v3034 = vsub.s32 0, %v3033
    %v3035 = vrot.slane %v3031, %v3034
    %v3036 = vmul.f32 %v3030, %v3035
    %v3037 = vld [vmem:[%s2 + $0xc] sm:$0x1]
    %v3038 = vlaneseq
    %v3039 = vshrl.u32 %v3038, 7
    %v3040 = vsub.s32 0, %v3039
    %v3041 = vrot.slane %v3037, %v3040
    %v3042 = vadd.f32 %v3036, %v3041
    %v3043 = vpack.c.bf16 %v3042, %v3042
    %v3044 = vld [vmem:[%s9] sm:$0xff]
    %v3045 = vld [vmem:[%s9 + $0x8] sm:$0xff]
    %v3046 = vld [vmem:[%s9 + $0x10] sm:$0xff]
    %v3047 = vld [vmem:[%s9 + $0x18] sm:$0xff]
    %v3048 = vld [vmem:[%s9 + $0x20] sm:$0xff]
    %v3049 = vld [vmem:[%s9 + $0x28] sm:$0xff]
    %v3050 = vld [vmem:[%s9 + $0x30] sm:$0xff]
    %v3051 = vld [vmem:[%s9 + $0x38] sm:$0xff]
    %v3052 = vld [vmem:[%s9 + $0x40] sm:$0xff]
    %v3053 = vld [vmem:[%s9 + $0x48] sm:$0xff]
    %v3054 = vld [vmem:[%s9 + $0x50] sm:$0xff]
    %v3055 = vld [vmem:[%s9 + $0x58] sm:$0xff]
    %v3056 = vld [vmem:[%s9 + $0x60] sm:$0xff]
    %v3057 = vld [vmem:[%s9 + $0x68] sm:$0xff]
    %v3058 = vld [vmem:[%s9 + $0x70] sm:$0xff]
    %v3059 = vld [vmem:[%s9 + $0x78] sm:$0xff]
    %v3060 = vld [vmem:[%s9 + $0x80] sm:$0xff]
    %v3061 = vld [vmem:[%s9 + $0x88] sm:$0xff]
    %v3062 = vld [vmem:[%s9 + $0x90] sm:$0xff]
    %v3063 = vld [vmem:[%s9 + $0x98] sm:$0xff]
    %v3064 = vld [vmem:[%s9 + $0xa0] sm:$0xff]
    %v3065 = vld [vmem:[%s9 + $0xa8] sm:$0xff]
    %v3066 = vld [vmem:[%s9 + $0xb0] sm:$0xff]
    %v3067 = vld [vmem:[%s9 + $0xb8] sm:$0xff]
    %v3068 = vld [vmem:[%s9 + $0xc0] sm:$0xff]
    %v3069 = vld [vmem:[%s9 + $0xc8] sm:$0xff]
    %v3070 = vld [vmem:[%s9 + $0xd0] sm:$0xff]
    %v3071 = vld [vmem:[%s9 + $0xd8] sm:$0xff]
    %v3072 = vld [vmem:[%s9 + $0xe0] sm:$0xff]
    %v3073 = vld [vmem:[%s9 + $0xe8] sm:$0xff]
    %v3074 = vld [vmem:[%s9 + $0xf0] sm:$0xff]
    %v3075 = vld [vmem:[%s9 + $0xf8] sm:$0xff]
    %s3076 = scalar_lea.vmem %s3, 1
    %v3077 = vld [vmem:[%s3076] ss:$2 sm:$0xff]
    %s3078 = scalar_lea.vmem %s3, 17
    %v3079 = vld [vmem:[%s3078] ss:$2 sm:$0xff]
    %v3082 = vlaneseq
    %v3083 = vshrl.u32 %v3082, 7
    %v3084 = vsub.s32 0, %v3083
    %v3085 = vrot.slane %v3077, %v3084
    %v3086 = vlaneseq
    %v3087 = vshrl.u32 %v3086, 7
    %v3088 = vsub.s32 1, %v3087
    %v3089 = vrot.slane %v3077, %v3088
    %v3090 = vlaneseq
    %v3091 = vshrl.u32 %v3090, 7
    %v3092 = vsub.s32 2, %v3091
    %v3093 = vrot.slane %v3077, %v3092
    %v3094 = vlaneseq
    %v3095 = vshrl.u32 %v3094, 7
    %v3096 = vsub.s32 3, %v3095
    %v3097 = vrot.slane %v3077, %v3096
    %v3098 = vlaneseq
    %v3099 = vshrl.u32 %v3098, 7
    %v3100 = vsub.s32 4, %v3099
    %v3101 = vrot.slane %v3077, %v3100
    %v3102 = vlaneseq
    %v3103 = vshrl.u32 %v3102, 7
    %v3104 = vsub.s32 5, %v3103
    %v3105 = vrot.slane %v3077, %v3104
    %v3106 = vlaneseq
    %v3107 = vshrl.u32 %v3106, 7
    %v3108 = vsub.s32 6, %v3107
    %v3109 = vrot.slane %v3077, %v3108
    %v3110 = vlaneseq
    %v3111 = vshrl.u32 %v3110, 7
    %v3112 = vsub.s32 7, %v3111
    %v3113 = vrot.slane %v3077, %v3112
    %v3114 = vlaneseq
    %v3115 = vshrl.u32 %v3114, 7
    %v3116 = vsub.s32 0, %v3115
    %v3117 = vrot.slane %v3079, %v3116
    %v3118 = vlaneseq
    %v3119 = vshrl.u32 %v3118, 7
    %v3120 = vsub.s32 1, %v3119
    %v3121 = vrot.slane %v3079, %v3120
    %v3122 = vlaneseq
    %v3123 = vshrl.u32 %v3122, 7
    %v3124 = vsub.s32 2, %v3123
    %v3125 = vrot.slane %v3079, %v3124
    %v3126 = vlaneseq
    %v3127 = vshrl.u32 %v3126, 7
    %v3128 = vsub.s32 3, %v3127
    %v3129 = vrot.slane %v3079, %v3128
    %v3130 = vlaneseq
    %v3131 = vshrl.u32 %v3130, 7
    %v3132 = vsub.s32 4, %v3131
    %v3133 = vrot.slane %v3079, %v3132
    %v3134 = vlaneseq
    %v3135 = vshrl.u32 %v3134, 7
    %v3136 = vsub.s32 5, %v3135
    %v3137 = vrot.slane %v3079, %v3136
    %v3138 = vlaneseq
    %v3139 = vshrl.u32 %v3138, 7
    %v3140 = vsub.s32 6, %v3139
    %v3141 = vrot.slane %v3079, %v3140
    %v3142 = vlaneseq
    %v3143 = vshrl.u32 %v3142, 7
    %v3144 = vsub.s32 7, %v3143
    %v3145 = vrot.slane %v3079, %v3144
    %v3194 = vunpack.c.l.b16 %v3044
    %v3195 = vunpack.c.h.b16 %v3044
    %v3196 = vunpack.c.l.b16 %v3045
    %v3197 = vunpack.c.h.b16 %v3045
    %v3198 = vunpack.c.l.b16 %v3046
    %v3199 = vunpack.c.h.b16 %v3046
    %v3200 = vunpack.c.l.b16 %v3047
    %v3201 = vunpack.c.h.b16 %v3047
    %v3202 = vunpack.c.l.b16 %v3048
    %v3203 = vunpack.c.h.b16 %v3048
    %v3204 = vunpack.c.l.b16 %v3049
    %v3205 = vunpack.c.h.b16 %v3049
    %v3206 = vunpack.c.l.b16 %v3050
    %v3207 = vunpack.c.h.b16 %v3050
    %v3208 = vunpack.c.l.b16 %v3051
    %v3209 = vunpack.c.h.b16 %v3051
    %v3210 = vunpack.c.l.b16 %v3052
    %v3211 = vunpack.c.h.b16 %v3052
    %v3212 = vunpack.c.l.b16 %v3053
    %v3213 = vunpack.c.h.b16 %v3053
    %v3214 = vunpack.c.l.b16 %v3054
    %v3215 = vunpack.c.h.b16 %v3054
    %v3216 = vunpack.c.l.b16 %v3055
    %v3217 = vunpack.c.h.b16 %v3055
    %v3218 = vunpack.c.l.b16 %v3056
    %v3219 = vunpack.c.h.b16 %v3056
    %v3220 = vunpack.c.l.b16 %v3057
    %v3221 = vunpack.c.h.b16 %v3057
    %v3222 = vunpack.c.l.b16 %v3058
    %v3223 = vunpack.c.h.b16 %v3058
    %v3224 = vunpack.c.l.b16 %v3059
    %v3225 = vunpack.c.h.b16 %v3059
    %v3226 = vunpack.c.l.b16 %v3060
    %v3227 = vunpack.c.h.b16 %v3060
    %v3228 = vunpack.c.l.b16 %v3061
    %v3229 = vunpack.c.h.b16 %v3061
    %v3230 = vunpack.c.l.b16 %v3062
    %v3231 = vunpack.c.h.b16 %v3062
    %v3232 = vunpack.c.l.b16 %v3063
    %v3233 = vunpack.c.h.b16 %v3063
    %v3234 = vunpack.c.l.b16 %v3064
    %v3235 = vunpack.c.h.b16 %v3064
    %v3236 = vunpack.c.l.b16 %v3065
    %v3237 = vunpack.c.h.b16 %v3065
    %v3238 = vunpack.c.l.b16 %v3066
    %v3239 = vunpack.c.h.b16 %v3066
    %v3240 = vunpack.c.l.b16 %v3067
    %v3241 = vunpack.c.h.b16 %v3067
    %v3242 = vunpack.c.l.b16 %v3068
    %v3243 = vunpack.c.h.b16 %v3068
    %v3244 = vunpack.c.l.b16 %v3069
    %v3245 = vunpack.c.h.b16 %v3069
    %v3246 = vunpack.c.l.b16 %v3070
    %v3247 = vunpack.c.h.b16 %v3070
    %v3248 = vunpack.c.l.b16 %v3071
    %v3249 = vunpack.c.h.b16 %v3071
    %v3250 = vunpack.c.l.b16 %v3072
    %v3251 = vunpack.c.h.b16 %v3072
    %v3252 = vunpack.c.l.b16 %v3073
    %v3253 = vunpack.c.h.b16 %v3073
    %v3254 = vunpack.c.l.b16 %v3074
    %v3255 = vunpack.c.h.b16 %v3074
    %v3256 = vunpack.c.l.b16 %v3075
    %v3257 = vunpack.c.h.b16 %v3075
    %v3258 = vpack.c.b16 %v3210, %v3194
    %v3259 = vpack.c.b16 %v3211, %v3195
    %v3260 = vpack.c.b16 %v3212, %v3196
    %v3261 = vpack.c.b16 %v3213, %v3197
    %v3262 = vpack.c.b16 %v3214, %v3198
    %v3263 = vpack.c.b16 %v3215, %v3199
    %v3264 = vpack.c.b16 %v3216, %v3200
    %v3265 = vpack.c.b16 %v3217, %v3201
    %v3266 = vpack.c.b16 %v3218, %v3202
    %v3267 = vpack.c.b16 %v3219, %v3203
    %v3268 = vpack.c.b16 %v3220, %v3204
    %v3269 = vpack.c.b16 %v3221, %v3205
    %v3270 = vpack.c.b16 %v3222, %v3206
    %v3271 = vpack.c.b16 %v3223, %v3207
    %v3272 = vpack.c.b16 %v3224, %v3208
    %v3273 = vpack.c.b16 %v3225, %v3209
    %v3274 = vpack.c.b16 %v3242, %v3226
    %v3275 = vpack.c.b16 %v3243, %v3227
    %v3276 = vpack.c.b16 %v3244, %v3228
    %v3277 = vpack.c.b16 %v3245, %v3229
    %v3278 = vpack.c.b16 %v3246, %v3230
    %v3279 = vpack.c.b16 %v3247, %v3231
    %v3280 = vpack.c.b16 %v3248, %v3232
    %v3281 = vpack.c.b16 %v3249, %v3233
    %v3282 = vpack.c.b16 %v3250, %v3234
    %v3283 = vpack.c.b16 %v3251, %v3235
    %v3284 = vpack.c.b16 %v3252, %v3236
    %v3285 = vpack.c.b16 %v3253, %v3237
    %v3286 = vpack.c.b16 %v3254, %v3238
    %v3287 = vpack.c.b16 %v3255, %v3239
    %v3288 = vpack.c.b16 %v3256, %v3240
    %v3289 = vpack.c.b16 %v3257, %v3241
    %v3323 = vsel %vm778, %v3043, 0
    %3325 = vmatprep.subr.bf16.mxu0 %v3259
    %3326 = vmatpush1.bf16.msra.mxu0 %v3258
    %3327 = vmatprep.subr.bf16.mxu0 %v3275
    %3328 = vmatpush1.bf16.msra.mxu0 %v3274
    %3329 = vmatprep.subr.bf16.mxu0 0
    %3330 = vmatpush1.bf16.msra.mxu0 0
    %3331 = vmatprep.subr.bf16.mxu0 0
    %3332 = vmatpush1.bf16.msra.mxu0 0
    %3333 = vmatprep.subr.bf16.mxu0 0
    %3334 = vmatpush1.bf16.msra.mxu0 0
    %3335 = vmatprep.subr.bf16.mxu0 0
    %3336 = vmatpush1.bf16.msra.mxu0 0
    %3337 = vmatprep.subr.bf16.mxu0 0
    %3338 = vmatpush1.bf16.msra.mxu0 0
    %3339 = vmatprep.subr.bf16.mxu0 0
    %3340 = vmatpush1.bf16.msra.mxu0 0
    %3341 = vmatprep.subr.bf16.mxu0 0
    %3342 = vmatpush1.bf16.msra.mxu0 0
    %3343 = vmatprep.subr.bf16.mxu0 0
    %3344 = vmatpush1.bf16.msra.mxu0 0
    %3345 = vmatprep.subr.bf16.mxu0 0
    %3346 = vmatpush1.bf16.msra.mxu0 0
    %3347 = vmatprep.subr.bf16.mxu0 0
    %3348 = vmatpush1.bf16.msra.mxu0 0
    %3349 = vmatprep.subr.bf16.mxu0 0
    %3350 = vmatpush1.bf16.msra.mxu0 0
    %3351 = vmatprep.subr.bf16.mxu0 0
    %3352 = vmatpush1.bf16.msra.mxu0 0
    %3353 = vmatprep.subr.bf16.mxu0 0
    %3354 = vmatpush1.bf16.msra.mxu0 0
    %3355 = vmatprep.subr.bf16.mxu0 0
    %3356 = vmatpush1.bf16.msra.mxu0 0
    %3357 = vmatprep.mubr.bf16.mxu0 0
    %3358 = vmatmul.mubr.bf16.gmra.mrb[0].mxu0 %v3323
    %v3359 = vpop.f32.mrb[0].mxu0
    %v3360 = vadd.f32 %v3085, %v3359
    %v3361 = vpop.f32.mrb[0].mxu0
    %v3362 = vadd.f32 %v3089, %v3361
    %v3363 = vpop.f32.mrb[0].mxu0
    %v3364 = vpop.f32.mrb[0].mxu0
    %3365 = vdwg.mxu0
    %3366 = vmatprep.subr.bf16.mxu0 %v3261
    %3367 = vmatpush1.bf16.msra.mxu0 %v3260
    %3368 = vmatprep.subr.bf16.mxu0 %v3277
    %3369 = vmatpush1.bf16.msra.mxu0 %v3276
    %3370 = vmatprep.subr.bf16.mxu0 0
    %3371 = vmatpush1.bf16.msra.mxu0 0
    %3372 = vmatprep.subr.bf16.mxu0 0
    %3373 = vmatpush1.bf16.msra.mxu0 0
    %3374 = vmatprep.subr.bf16.mxu0 0
    %3375 = vmatpush1.bf16.msra.mxu0 0
    %3376 = vmatprep.subr.bf16.mxu0 0
    %3377 = vmatpush1.bf16.msra.mxu0 0
    %3378 = vmatprep.subr.bf16.mxu0 0
    %3379 = vmatpush1.bf16.msra.mxu0 0
    %3380 = vmatprep.subr.bf16.mxu0 0
    %3381 = vmatpush1.bf16.msra.mxu0 0
    %3382 = vmatprep.subr.bf16.mxu0 0
    %3383 = vmatpush1.bf16.msra.mxu0 0
    %3384 = vmatprep.subr.bf16.mxu0 0
    %3385 = vmatpush1.bf16.msra.mxu0 0
    %3386 = vmatprep.subr.bf16.mxu0 0
    %3387 = vmatpush1.bf16.msra.mxu0 0
    %3388 = vmatprep.subr.bf16.mxu0 0
    %3389 = vmatpush1.bf16.msra.mxu0 0
    %3390 = vmatprep.subr.bf16.mxu0 0
    %3391 = vmatpush1.bf16.msra.mxu0 0
    %3392 = vmatprep.subr.bf16.mxu0 0
    %3393 = vmatpush1.bf16.msra.mxu0 0
    %3394 = vmatprep.subr.bf16.mxu0 0
    %3395 = vmatpush1.bf16.msra.mxu0 0
    %3396 = vmatprep.subr.bf16.mxu0 0
    %3397 = vmatpush1.bf16.msra.mxu0 0
    %3398 = vmatprep.mubr.bf16.mxu0 0
    %3399 = vmatmul.mubr.bf16.gmra.mrb[0].mxu0 %v3323
    %v3400 = vpop.f32.mrb[0].mxu0
    %v3401 = vadd.f32 %v3093, %v3400
    %v3402 = vpop.f32.mrb[0].mxu0
    %v3403 = vadd.f32 %v3097, %v3402
    %v3404 = vpop.f32.mrb[0].mxu0
    %v3405 = vpop.f32.mrb[0].mxu0
    %3406 = vdwg.mxu0
    %3407 = vmatprep.subr.bf16.mxu0 %v3263
    %3408 = vmatpush1.bf16.msra.mxu0 %v3262
    %3409 = vmatprep.subr.bf16.mxu0 %v3279
    %3410 = vmatpush1.bf16.msra.mxu0 %v3278
    %3411 = vmatprep.subr.bf16.mxu0 0
    %3412 = vmatpush1.bf16.msra.mxu0 0
    %3413 = vmatprep.subr.bf16.mxu0 0
    %3414 = vmatpush1.bf16.msra.mxu0 0
    %3415 = vmatprep.subr.bf16.mxu0 0
    %3416 = vmatpush1.bf16.msra.mxu0 0
    %3417 = vmatprep.subr.bf16.mxu0 0
    %3418 = vmatpush1.bf16.msra.mxu0 0
    %3419 = vmatprep.subr.bf16.mxu0 0
    %3420 = vmatpush1.bf16.msra.mxu0 0
    %3421 = vmatprep.subr.bf16.mxu0 0
    %3422 = vmatpush1.bf16.msra.mxu0 0
    %3423 = vmatprep.subr.bf16.mxu0 0
    %3424 = vmatpush1.bf16.msra.mxu0 0
    %3425 = vmatprep.subr.bf16.mxu0 0
    %3426 = vmatpush1.bf16.msra.mxu0 0
    %3427 = vmatprep.subr.bf16.mxu0 0
    %3428 = vmatpush1.bf16.msra.mxu0 0
    %3429 = vmatprep.subr.bf16.mxu0 0
    %3430 = vmatpush1.bf16.msra.mxu0 0
    %3431 = vmatprep.subr.bf16.mxu0 0
    %3432 = vmatpush1.bf16.msra.mxu0 0
    %3433 = vmatprep.subr.bf16.mxu0 0
    %3434 = vmatpush1.bf16.msra.mxu0 0
    %3435 = vmatprep.subr.bf16.mxu0 0
    %3436 = vmatpush1.bf16.msra.mxu0 0
    %3437 = vmatprep.subr.bf16.mxu0 0
    %3438 = vmatpush1.bf16.msra.mxu0 0
    %3439 = vmatprep.mubr.bf16.mxu0 0
    %3440 = vmatmul.mubr.bf16.gmra.mrb[0].mxu0 %v3323
    %v3441 = vpop.f32.mrb[0].mxu0
    %v3442 = vadd.f32 %v3101, %v3441
    %v3443 = vpop.f32.mrb[0].mxu0
    %v3444 = vadd.f32 %v3105, %v3443
    %v3445 = vpop.f32.mrb[0].mxu0
    %v3446 = vpop.f32.mrb[0].mxu0
    %3447 = vdwg.mxu0
    %3448 = vmatprep.subr.bf16.mxu0 %v3265
    %3449 = vmatpush1.bf16.msra.mxu0 %v3264
    %3450 = vmatprep.subr.bf16.mxu0 %v3281
    %3451 = vmatpush1.bf16.msra.mxu0 %v3280
    %3452 = vmatprep.subr.bf16.mxu0 0
    %3453 = vmatpush1.bf16.msra.mxu0 0
    %3454 = vmatprep.subr.bf16.mxu0 0
    %3455 = vmatpush1.bf16.msra.mxu0 0
    %3456 = vmatprep.subr.bf16.mxu0 0
    %3457 = vmatpush1.bf16.msra.mxu0 0
    %3458 = vmatprep.subr.bf16.mxu0 0
    %3459 = vmatpush1.bf16.msra.mxu0 0
    %3460 = vmatprep.subr.bf16.mxu0 0
    %3461 = vmatpush1.bf16.msra.mxu0 0
    %3462 = vmatprep.subr.bf16.mxu0 0
    %3463 = vmatpush1.bf16.msra.mxu0 0
    %3464 = vmatprep.subr.bf16.mxu0 0
    %3465 = vmatpush1.bf16.msra.mxu0 0
    %3466 = vmatprep.subr.bf16.mxu0 0
    %3467 = vmatpush1.bf16.msra.mxu0 0
    %3468 = vmatprep.subr.bf16.mxu0 0
    %3469 = vmatpush1.bf16.msra.mxu0 0
    %3470 = vmatprep.subr.bf16.mxu0 0
    %3471 = vmatpush1.bf16.msra.mxu0 0
    %3472 = vmatprep.subr.bf16.mxu0 0
    %3473 = vmatpush1.bf16.msra.mxu0 0
    %3474 = vmatprep.subr.bf16.mxu0 0
    %3475 = vmatpush1.bf16.msra.mxu0 0
    %3476 = vmatprep.subr.bf16.mxu0 0
    %3477 = vmatpush1.bf16.msra.mxu0 0
    %3478 = vmatprep.subr.bf16.mxu0 0
    %3479 = vmatpush1.bf16.msra.mxu0 0
    %3480 = vmatprep.mubr.bf16.mxu0 0
    %3481 = vmatmul.mubr.bf16.gmra.mrb[0].mxu0 %v3323
    %v3482 = vpop.f32.mrb[0].mxu0
    %v3483 = vadd.f32 %v3109, %v3482
    %v3484 = vpop.f32.mrb[0].mxu0
    %v3485 = vadd.f32 %v3113, %v3484
    %v3486 = vpop.f32.mrb[0].mxu0
    %v3487 = vpop.f32.mrb[0].mxu0
    %3488 = vdwg.mxu0
    %3489 = vmatprep.subr.bf16.mxu0 %v3267
    %3490 = vmatpush1.bf16.msra.mxu0 %v3266
    %3491 = vmatprep.subr.bf16.mxu0 %v3283
    %3492 = vmatpush1.bf16.msra.mxu0 %v3282
    %3493 = vmatprep.subr.bf16.mxu0 0
    %3494 = vmatpush1.bf16.msra.mxu0 0
    %3495 = vmatprep.subr.bf16.mxu0 0
    %3496 = vmatpush1.bf16.msra.mxu0 0
    %3497 = vmatprep.subr.bf16.mxu0 0
    %3498 = vmatpush1.bf16.msra.mxu0 0
    %3499 = vmatprep.subr.bf16.mxu0 0
    %3500 = vmatpush1.bf16.msra.mxu0 0
    %3501 = vmatprep.subr.bf16.mxu0 0
    %3502 = vmatpush1.bf16.msra.mxu0 0
    %3503 = vmatprep.subr.bf16.mxu0 0
    %3504 = vmatpush1.bf16.msra.mxu0 0
    %3505 = vmatprep.subr.bf16.mxu0 0
    %3506 = vmatpush1.bf16.msra.mxu0 0
    %3507 = vmatprep.subr.bf16.mxu0 0
    %3508 = vmatpush1.bf16.msra.mxu0 0
    %3509 = vmatprep.subr.bf16.mxu0 0
    %3510 = vmatpush1.bf16.msra.mxu0 0
    %3511 = vmatprep.subr.bf16.mxu0 0
    %3512 = vmatpush1.bf16.msra.mxu0 0
    %3513 = vmatprep.subr.bf16.mxu0 0
    %3514 = vmatpush1.bf16.msra.mxu0 0
    %3515 = vmatprep.subr.bf16.mxu0 0
    %3516 = vmatpush1.bf16.msra.mxu0 0
    %3517 = vmatprep.subr.bf16.mxu0 0
    %3518 = vmatpush1.bf16.msra.mxu0 0
    %3519 = vmatprep.subr.bf16.mxu0 0
    %3520 = vmatpush1.bf16.msra.mxu0 0
    %3521 = vmatprep.mubr.bf16.mxu0 0
    %3522 = vmatmul.mubr.bf16.gmra.mrb[0].mxu0 %v3323
    %v3523 = vpop.f32.mrb[0].mxu0
    %v3524 = vadd.f32 %v3117, %v3523
    %v3525 = vpop.f32.mrb[0].mxu0
    %v3526 = vadd.f32 %v3121, %v3525
    %v3527 = vpop.f32.mrb[0].mxu0
    %v3528 = vpop.f32.mrb[0].mxu0
    %3529 = vdwg.mxu0
    %3530 = vmatprep.subr.bf16.mxu0 %v3269
    %3531 = vmatpush1.bf16.msra.mxu0 %v3268
    %3532 = vmatprep.subr.bf16.mxu0 %v3285
    %3533 = vmatpush1.bf16.msra.mxu0 %v3284
    %3534 = vmatprep.subr.bf16.mxu0 0
    %3535 = vmatpush1.bf16.msra.mxu0 0
    %3536 = vmatprep.subr.bf16.mxu0 0
    %3537 = vmatpush1.bf16.msra.mxu0 0
    %3538 = vmatprep.subr.bf16.mxu0 0
    %3539 = vmatpush1.bf16.msra.mxu0 0
    %3540 = vmatprep.subr.bf16.mxu0 0
    %3541 = vmatpush1.bf16.msra.mxu0 0
    %3542 = vmatprep.subr.bf16.mxu0 0
    %3543 = vmatpush1.bf16.msra.mxu0 0
    %3544 = vmatprep.subr.bf16.mxu0 0
    %3545 = vmatpush1.bf16.msra.mxu0 0
    %3546 = vmatprep.subr.bf16.mxu0 0
    %3547 = vmatpush1.bf16.msra.mxu0 0
    %3548 = vmatprep.subr.bf16.mxu0 0
    %3549 = vmatpush1.bf16.msra.mxu0 0
    %3550 = vmatprep.subr.bf16.mxu0 0
    %3551 = vmatpush1.bf16.msra.mxu0 0
    %3552 = vmatprep.subr.bf16.mxu0 0
    %3553 = vmatpush1.bf16.msra.mxu0 0
    %3554 = vmatprep.subr.bf16.mxu0 0
    %3555 = vmatpush1.bf16.msra.mxu0 0
    %3556 = vmatprep.subr.bf16.mxu0 0
    %3557 = vmatpush1.bf16.msra.mxu0 0
    %3558 = vmatprep.subr.bf16.mxu0 0
    %3559 = vmatpush1.bf16.msra.mxu0 0
    %3560 = vmatprep.subr.bf16.mxu0 0
    %3561 = vmatpush1.bf16.msra.mxu0 0
    %3562 = vmatprep.mubr.bf16.mxu0 0
    %3563 = vmatmul.mubr.bf16.gmra.mrb[0].mxu0 %v3323
    %v3564 = vpop.f32.mrb[0].mxu0
    %v3565 = vadd.f32 %v3125, %v3564
    %v3566 = vpop.f32.mrb[0].mxu0
    %v3567 = vadd.f32 %v3129, %v3566
    %v3568 = vpop.f32.mrb[0].mxu0
    %v3569 = vpop.f32.mrb[0].mxu0
    %3570 = vdwg.mxu0
    %3571 = vmatprep.subr.bf16.mxu0 %v3271
    %3572 = vmatpush1.bf16.msra.mxu0 %v3270
    %3573 = vmatprep.subr.bf16.mxu0 %v3287
    %3574 = vmatpush1.bf16.msra.mxu0 %v3286
    %3575 = vmatprep.subr.bf16.mxu0 0
    %3576 = vmatpush1.bf16.msra.mxu0 0
    %3577 = vmatprep.subr.bf16.mxu0 0
    %3578 = vmatpush1.bf16.msra.mxu0 0
    %3579 = vmatprep.subr.bf16.mxu0 0
    %3580 = vmatpush1.bf16.msra.mxu0 0
    %3581 = vmatprep.subr.bf16.mxu0 0
    %3582 = vmatpush1.bf16.msra.mxu0 0
    %3583 = vmatprep.subr.bf16.mxu0 0
    %3584 = vmatpush1.bf16.msra.mxu0 0
    %3585 = vmatprep.subr.bf16.mxu0 0
    %3586 = vmatpush1.bf16.msra.mxu0 0
    %3587 = vmatprep.subr.bf16.mxu0 0
    %3588 = vmatpush1.bf16.msra.mxu0 0
    %3589 = vmatprep.subr.bf16.mxu0 0
    %3590 = vmatpush1.bf16.msra.mxu0 0
    %3591 = vmatprep.subr.bf16.mxu0 0
    %3592 = vmatpush1.bf16.msra.mxu0 0
    %3593 = vmatprep.subr.bf16.mxu0 0
    %3594 = vmatpush1.bf16.msra.mxu0 0
    %3595 = vmatprep.subr.bf16.mxu0 0
    %3596 = vmatpush1.bf16.msra.mxu0 0
    %3597 = vmatprep.subr.bf16.mxu0 0
    %3598 = vmatpush1.bf16.msra.mxu0 0
    %3599 = vmatprep.subr.bf16.mxu0 0
    %3600 = vmatpush1.bf16.msra.mxu0 0
    %3601 = vmatprep.subr.bf16.mxu0 0
    %3602 = vmatpush1.bf16.msra.mxu0 0
    %3603 = vmatprep.mubr.bf16.mxu0 0
    %3604 = vmatmul.mubr.bf16.gmra.mrb[0].mxu0 %v3323
    %v3605 = vpop.f32.mrb[0].mxu0
    %v3606 = vadd.f32 %v3133, %v3605
    %v3607 = vpop.f32.mrb[0].mxu0
    %v3608 = vadd.f32 %v3137, %v3607
    %v3609 = vpop.f32.mrb[0].mxu0
    %v3610 = vpop.f32.mrb[0].mxu0
    %3611 = vdwg.mxu0
    %3612 = vmatprep.subr.bf16.mxu0 %v3273
    %3613 = vmatpush1.bf16.msra.mxu0 %v3272
    %3614 = vmatprep.subr.bf16.mxu0 %v3289
    %3615 = vmatpush1.bf16.msra.mxu0 %v3288
    %3616 = vmatprep.subr.bf16.mxu0 0
    %3617 = vmatpush1.bf16.msra.mxu0 0
    %3618 = vmatprep.subr.bf16.mxu0 0
    %3619 = vmatpush1.bf16.msra.mxu0 0
    %3620 = vmatprep.subr.bf16.mxu0 0
    %3621 = vmatpush1.bf16.msra.mxu0 0
    %3622 = vmatprep.subr.bf16.mxu0 0
    %3623 = vmatpush1.bf16.msra.mxu0 0
    %3624 = vmatprep.subr.bf16.mxu0 0
    %3625 = vmatpush1.bf16.msra.mxu0 0
    %3626 = vmatprep.subr.bf16.mxu0 0
    %3627 = vmatpush1.bf16.msra.mxu0 0
    %3628 = vmatprep.subr.bf16.mxu0 0
    %3629 = vmatpush1.bf16.msra.mxu0 0
    %3630 = vmatprep.subr.bf16.mxu0 0
    %3631 = vmatpush1.bf16.msra.mxu0 0
    %3632 = vmatprep.subr.bf16.mxu0 0
    %3633 = vmatpush1.bf16.msra.mxu0 0
    %3634 = vmatprep.subr.bf16.mxu0 0
    %3635 = vmatpush1.bf16.msra.mxu0 0
    %3636 = vmatprep.subr.bf16.mxu0 0
    %3637 = vmatpush1.bf16.msra.mxu0 0
    %3638 = vmatprep.subr.bf16.mxu0 0
    %3639 = vmatpush1.bf16.msra.mxu0 0
    %3640 = vmatprep.subr.bf16.mxu0 0
    %3641 = vmatpush1.bf16.msra.mxu0 0
    %3642 = vmatprep.subr.bf16.mxu0 0
    %3643 = vmatpush1.bf16.msra.mxu0 0
    %3644 = vmatprep.mubr.bf16.mxu0 0
    %3645 = vmatmul.mubr.bf16.gmra.mrb[0].mxu0 %v3323
    %v3646 = vpop.f32.mrb[0].mxu0
    %v3647 = vadd.f32 %v3141, %v3646
    %v3648 = vpop.f32.mrb[0].mxu0
    %v3649 = vadd.f32 %v3145, %v3648
    %v3650 = vpop.f32.mrb[0].mxu0
    %v3651 = vpop.f32.mrb[0].mxu0
    %3652 = vdwg.mxu0
    %v3653 = vmax.f32 %v3360, 0.0
    %v3654 = vmax.f32 %v3362, 0.0
    %v3655 = vmax.f32 %v3401, 0.0
    %v3656 = vmax.f32 %v3403, 0.0
    %v3657 = vmax.f32 %v3442, 0.0
    %v3658 = vmax.f32 %v3444, 0.0
    %v3659 = vmax.f32 %v3483, 0.0
    %v3660 = vmax.f32 %v3485, 0.0
    %v3661 = vmax.f32 %v3524, 0.0
    %v3662 = vmax.f32 %v3526, 0.0
    %v3663 = vmax.f32 %v3565, 0.0
    %v3664 = vmax.f32 %v3567, 0.0
    %v3665 = vmax.f32 %v3606, 0.0
    %v3666 = vmax.f32 %v3608, 0.0
    %v3667 = vmax.f32 %v3647, 0.0
    %v3668 = vmax.f32 %v3649, 0.0
    %v3669 = vpack.c.bf16 %v3653, %v3653
    %v3670 = vpack.c.bf16 %v3654, %v3654
    %v3671 = vpack.c.bf16 %v3655, %v3655
    %v3672 = vpack.c.bf16 %v3656, %v3656
    %v3673 = vpack.c.bf16 %v3657, %v3657
    %v3674 = vpack.c.bf16 %v3658, %v3658
    %v3675 = vpack.c.bf16 %v3659, %v3659
    %v3676 = vpack.c.bf16 %v3660, %v3660
    %v3677 = vpack.c.bf16 %v3661, %v3661
    %v3678 = vpack.c.bf16 %v3662, %v3662
    %v3679 = vpack.c.bf16 %v3663, %v3663
    %v3680 = vpack.c.bf16 %v3664, %v3664
    %v3681 = vpack.c.bf16 %v3665, %v3665
    %v3682 = vpack.c.bf16 %v3666, %v3666
    %v3683 = vpack.c.bf16 %v3667, %v3667
    %v3684 = vpack.c.bf16 %v3668, %v3668
    %v3685 = vld [vmem:[%s10] sm:$0xf]
    %v3686 = vld [vmem:[%s10 + $0x4] sm:$0xf]
    %v3687 = vld [vmem:[%s10 + $0x8] sm:$0xf]
    %v3688 = vld [vmem:[%s10 + $0xc] sm:$0xf]
    %v3689 = vld [vmem:[%s10 + $0x10] sm:$0xf]
    %v3690 = vld [vmem:[%s10 + $0x14] sm:$0xf]
    %v3691 = vld [vmem:[%s10 + $0x18] sm:$0xf]
    %v3692 = vld [vmem:[%s10 + $0x1c] sm:$0xf]
    %v3693 = vld [vmem:[%s10 + $0x20] sm:$0xf]
    %v3694 = vld [vmem:[%s10 + $0x24] sm:$0xf]
    %v3695 = vld [vmem:[%s10 + $0x28] sm:$0xf]
    %v3696 = vld [vmem:[%s10 + $0x2c] sm:$0xf]
    %v3697 = vld [vmem:[%s10 + $0x30] sm:$0xf]
    %v3698 = vld [vmem:[%s10 + $0x34] sm:$0xf]
    %v3699 = vld [vmem:[%s10 + $0x38] sm:$0xf]
    %v3700 = vld [vmem:[%s10 + $0x3c] sm:$0xf]
    %v3701 = vld [vmem:[%s10 + $0x40] sm:$0xf]
    %v3702 = vld [vmem:[%s10 + $0x44] sm:$0xf]
    %v3703 = vld [vmem:[%s10 + $0x48] sm:$0xf]
    %v3704 = vld [vmem:[%s10 + $0x4c] sm:$0xf]
    %v3705 = vld [vmem:[%s10 + $0x50] sm:$0xf]
    %v3706 = vld [vmem:[%s10 + $0x54] sm:$0xf]
    %v3707 = vld [vmem:[%s10 + $0x58] sm:$0xf]
    %v3708 = vld [vmem:[%s10 + $0x5c] sm:$0xf]
    %v3709 = vld [vmem:[%s10 + $0x60] sm:$0xf]
    %v3710 = vld [vmem:[%s10 + $0x64] sm:$0xf]
    %v3711 = vld [vmem:[%s10 + $0x68] sm:$0xf]
    %v3712 = vld [vmem:[%s10 + $0x6c] sm:$0xf]
    %v3713 = vld [vmem:[%s10 + $0x70] sm:$0xf]
    %v3714 = vld [vmem:[%s10 + $0x74] sm:$0xf]
    %v3715 = vld [vmem:[%s10 + $0x78] sm:$0xf]
    %v3716 = vld [vmem:[%s10 + $0x7c] sm:$0xf]
    %v3717 = vld [vmem:[%s10 + $0x80] sm:$0xf]
    %v3718 = vld [vmem:[%s10 + $0x84] sm:$0xf]
    %v3719 = vld [vmem:[%s10 + $0x88] sm:$0xf]
    %v3720 = vld [vmem:[%s10 + $0x8c] sm:$0xf]
    %v3721 = vld [vmem:[%s10 + $0x90] sm:$0xf]
    %v3722 = vld [vmem:[%s10 + $0x94] sm:$0xf]
    %v3723 = vld [vmem:[%s10 + $0x98] sm:$0xf]
    %v3724 = vld [vmem:[%s10 + $0x9c] sm:$0xf]
    %v3725 = vld [vmem:[%s10 + $0xa0] sm:$0xf]
    %v3726 = vld [vmem:[%s10 + $0xa4] sm:$0xf]
    %v3727 = vld [vmem:[%s10 + $0xa8] sm:$0xf]
    %v3728 = vld [vmem:[%s10 + $0xac] sm:$0xf]
    %v3729 = vld [vmem:[%s10 + $0xb0] sm:$0xf]
    %v3730 = vld [vmem:[%s10 + $0xb4] sm:$0xf]
    %v3731 = vld [vmem:[%s10 + $0xb8] sm:$0xf]
    %v3732 = vld [vmem:[%s10 + $0xbc] sm:$0xf]
    %v3733 = vld [vmem:[%s10 + $0xc0] sm:$0xf]
    %v3734 = vld [vmem:[%s10 + $0xc4] sm:$0xf]
    %v3735 = vld [vmem:[%s10 + $0xc8] sm:$0xf]
    %v3736 = vld [vmem:[%s10 + $0xcc] sm:$0xf]
    %v3737 = vld [vmem:[%s10 + $0xd0] sm:$0xf]
    %v3738 = vld [vmem:[%s10 + $0xd4] sm:$0xf]
    %v3739 = vld [vmem:[%s10 + $0xd8] sm:$0xf]
    %v3740 = vld [vmem:[%s10 + $0xdc] sm:$0xf]
    %v3741 = vld [vmem:[%s10 + $0xe0] sm:$0xf]
    %v3742 = vld [vmem:[%s10 + $0xe4] sm:$0xf]
    %v3743 = vld [vmem:[%s10 + $0xe8] sm:$0xf]
    %v3744 = vld [vmem:[%s10 + $0xec] sm:$0xf]
    %v3745 = vld [vmem:[%s10 + $0xf0] sm:$0xf]
    %v3746 = vld [vmem:[%s10 + $0xf4] sm:$0xf]
    %v3747 = vld [vmem:[%s10 + $0xf8] sm:$0xf]
    %v3748 = vld [vmem:[%s10 + $0xfc] sm:$0xf]
    %v3749 = vld [vmem:[%s10 + $0x100] sm:$0xf]
    %v3750 = vld [vmem:[%s10 + $0x104] sm:$0xf]
    %v3751 = vld [vmem:[%s10 + $0x108] sm:$0xf]
    %v3752 = vld [vmem:[%s10 + $0x10c] sm:$0xf]
    %v3753 = vld [vmem:[%s10 + $0x110] sm:$0xf]
    %v3754 = vld [vmem:[%s10 + $0x114] sm:$0xf]
    %v3755 = vld [vmem:[%s10 + $0x118] sm:$0xf]
    %v3756 = vld [vmem:[%s10 + $0x11c] sm:$0xf]
    %v3757 = vld [vmem:[%s10 + $0x120] sm:$0xf]
    %v3758 = vld [vmem:[%s10 + $0x124] sm:$0xf]
    %v3759 = vld [vmem:[%s10 + $0x128] sm:$0xf]
    %v3760 = vld [vmem:[%s10 + $0x12c] sm:$0xf]
    %v3761 = vld [vmem:[%s10 + $0x130] sm:$0xf]
    %v3762 = vld [vmem:[%s10 + $0x134] sm:$0xf]
    %v3763 = vld [vmem:[%s10 + $0x138] sm:$0xf]
    %v3764 = vld [vmem:[%s10 + $0x13c] sm:$0xf]
    %v3765 = vld [vmem:[%s10 + $0x140] sm:$0xf]
    %v3766 = vld [vmem:[%s10 + $0x144] sm:$0xf]
    %v3767 = vld [vmem:[%s10 + $0x148] sm:$0xf]
    %v3768 = vld [vmem:[%s10 + $0x14c] sm:$0xf]
    %v3769 = vld [vmem:[%s10 + $0x150] sm:$0xf]
    %v3770 = vld [vmem:[%s10 + $0x154] sm:$0xf]
    %v3771 = vld [vmem:[%s10 + $0x158] sm:$0xf]
    %v3772 = vld [vmem:[%s10 + $0x15c] sm:$0xf]
    %v3773 = vld [vmem:[%s10 + $0x160] sm:$0xf]
    %v3774 = vld [vmem:[%s10 + $0x164] sm:$0xf]
    %v3775 = vld [vmem:[%s10 + $0x168] sm:$0xf]
    %v3776 = vld [vmem:[%s10 + $0x16c] sm:$0xf]
    %v3777 = vld [vmem:[%s10 + $0x170] sm:$0xf]
    %v3778 = vld [vmem:[%s10 + $0x174] sm:$0xf]
    %v3779 = vld [vmem:[%s10 + $0x178] sm:$0xf]
    %v3780 = vld [vmem:[%s10 + $0x17c] sm:$0xf]
    %v3781 = vld [vmem:[%s10 + $0x180] sm:$0xf]
    %v3782 = vld [vmem:[%s10 + $0x184] sm:$0xf]
    %v3783 = vld [vmem:[%s10 + $0x188] sm:$0xf]
    %v3784 = vld [vmem:[%s10 + $0x18c] sm:$0xf]
    %v3785 = vld [vmem:[%s10 + $0x190] sm:$0xf]
    %v3786 = vld [vmem:[%s10 + $0x194] sm:$0xf]
    %v3787 = vld [vmem:[%s10 + $0x198] sm:$0xf]
    %v3788 = vld [vmem:[%s10 + $0x19c] sm:$0xf]
    %v3789 = vld [vmem:[%s10 + $0x1a0] sm:$0xf]
    %v3790 = vld [vmem:[%s10 + $0x1a4] sm:$0xf]
    %v3791 = vld [vmem:[%s10 + $0x1a8] sm:$0xf]
    %v3792 = vld [vmem:[%s10 + $0x1ac] sm:$0xf]
    %v3793 = vld [vmem:[%s10 + $0x1b0] sm:$0xf]
    %v3794 = vld [vmem:[%s10 + $0x1b4] sm:$0xf]
    %v3795 = vld [vmem:[%s10 + $0x1b8] sm:$0xf]
    %v3796 = vld [vmem:[%s10 + $0x1bc] sm:$0xf]
    %v3797 = vld [vmem:[%s10 + $0x1c0] sm:$0xf]
    %v3798 = vld [vmem:[%s10 + $0x1c4] sm:$0xf]
    %v3799 = vld [vmem:[%s10 + $0x1c8] sm:$0xf]
    %v3800 = vld [vmem:[%s10 + $0x1cc] sm:$0xf]
    %v3801 = vld [vmem:[%s10 + $0x1d0] sm:$0xf]
    %v3802 = vld [vmem:[%s10 + $0x1d4] sm:$0xf]
    %v3803 = vld [vmem:[%s10 + $0x1d8] sm:$0xf]
    %v3804 = vld [vmem:[%s10 + $0x1dc] sm:$0xf]
    %v3805 = vld [vmem:[%s10 + $0x1e0] sm:$0xf]
    %v3806 = vld [vmem:[%s10 + $0x1e4] sm:$0xf]
    %v3807 = vld [vmem:[%s10 + $0x1e8] sm:$0xf]
    %v3808 = vld [vmem:[%s10 + $0x1ec] sm:$0xf]
    %v3809 = vld [vmem:[%s10 + $0x1f0] sm:$0xf]
    %v3810 = vld [vmem:[%s10 + $0x1f4] sm:$0xf]
    %v3811 = vld [vmem:[%s10 + $0x1f8] sm:$0xf]
    %v3812 = vld [vmem:[%s10 + $0x1fc] sm:$0xf]
    %v3813 = vld [vmem:[%s10 + $0x200] sm:$0xf]
    %v3814 = vld [vmem:[%s10 + $0x204] sm:$0xf]
    %v3815 = vld [vmem:[%s10 + $0x208] sm:$0xf]
    %v3816 = vld [vmem:[%s10 + $0x20c] sm:$0xf]
    %v3817 = vld [vmem:[%s10 + $0x210] sm:$0xf]
    %v3818 = vld [vmem:[%s10 + $0x214] sm:$0xf]
    %v3819 = vld [vmem:[%s10 + $0x218] sm:$0xf]
    %v3820 = vld [vmem:[%s10 + $0x21c] sm:$0xf]
    %v3821 = vld [vmem:[%s10 + $0x220] sm:$0xf]
    %v3822 = vld [vmem:[%s10 + $0x224] sm:$0xf]
    %v3823 = vld [vmem:[%s10 + $0x228] sm:$0xf]
    %v3824 = vld [vmem:[%s10 + $0x22c] sm:$0xf]
    %v3825 = vld [vmem:[%s10 + $0x230] sm:$0xf]
    %v3826 = vld [vmem:[%s10 + $0x234] sm:$0xf]
    %v3827 = vld [vmem:[%s10 + $0x238] sm:$0xf]
    %v3828 = vld [vmem:[%s10 + $0x23c] sm:$0xf]
    %v3829 = vld [vmem:[%s10 + $0x240] sm:$0xf]
    %v3830 = vld [vmem:[%s10 + $0x244] sm:$0xf]
    %v3831 = vld [vmem:[%s10 + $0x248] sm:$0xf]
    %v3832 = vld [vmem:[%s10 + $0x24c] sm:$0xf]
    %v3833 = vld [vmem:[%s10 + $0x250] sm:$0xf]
    %v3834 = vld [vmem:[%s10 + $0x254] sm:$0xf]
    %v3835 = vld [vmem:[%s10 + $0x258] sm:$0xf]
    %v3836 = vld [vmem:[%s10 + $0x25c] sm:$0xf]
    %v3837 = vld [vmem:[%s10 + $0x260] sm:$0xf]
    %v3838 = vld [vmem:[%s10 + $0x264] sm:$0xf]
    %v3839 = vld [vmem:[%s10 + $0x268] sm:$0xf]
    %v3840 = vld [vmem:[%s10 + $0x26c] sm:$0xf]
    %v3841 = vld [vmem:[%s10 + $0x270] sm:$0xf]
    %v3842 = vld [vmem:[%s10 + $0x274] sm:$0xf]
    %v3843 = vld [vmem:[%s10 + $0x278] sm:$0xf]
    %v3844 = vld [vmem:[%s10 + $0x27c] sm:$0xf]
    %v3845 = vld [vmem:[%s10 + $0x280] sm:$0xf]
    %v3846 = vld [vmem:[%s10 + $0x284] sm:$0xf]
    %v3847 = vld [vmem:[%s10 + $0x288] sm:$0xf]
    %v3848 = vld [vmem:[%s10 + $0x28c] sm:$0xf]
    %v3849 = vld [vmem:[%s10 + $0x290] sm:$0xf]
    %v3850 = vld [vmem:[%s10 + $0x294] sm:$0xf]
    %v3851 = vld [vmem:[%s10 + $0x298] sm:$0xf]
    %v3852 = vld [vmem:[%s10 + $0x29c] sm:$0xf]
    %v3853 = vld [vmem:[%s10 + $0x2a0] sm:$0xf]
    %v3854 = vld [vmem:[%s10 + $0x2a4] sm:$0xf]
    %v3855 = vld [vmem:[%s10 + $0x2a8] sm:$0xf]
    %v3856 = vld [vmem:[%s10 + $0x2ac] sm:$0xf]
    %v3857 = vld [vmem:[%s10 + $0x2b0] sm:$0xf]
    %v3858 = vld [vmem:[%s10 + $0x2b4] sm:$0xf]
    %v3859 = vld [vmem:[%s10 + $0x2b8] sm:$0xf]
    %v3860 = vld [vmem:[%s10 + $0x2bc] sm:$0xf]
    %v3861 = vld [vmem:[%s10 + $0x2c0] sm:$0xf]
    %v3862 = vld [vmem:[%s10 + $0x2c4] sm:$0xf]
    %v3863 = vld [vmem:[%s10 + $0x2c8] sm:$0xf]
    %v3864 = vld [vmem:[%s10 + $0x2cc] sm:$0xf]
    %v3865 = vld [vmem:[%s10 + $0x2d0] sm:$0xf]
    %v3866 = vld [vmem:[%s10 + $0x2d4] sm:$0xf]
    %v3867 = vld [vmem:[%s10 + $0x2d8] sm:$0xf]
    %v3868 = vld [vmem:[%s10 + $0x2dc] sm:$0xf]
    %v3869 = vld [vmem:[%s10 + $0x2e0] sm:$0xf]
    %v3870 = vld [vmem:[%s10 + $0x2e4] sm:$0xf]
    %v3871 = vld [vmem:[%s10 + $0x2e8] sm:$0xf]
    %v3872 = vld [vmem:[%s10 + $0x2ec] sm:$0xf]
    %v3873 = vld [vmem:[%s10 + $0x2f0] sm:$0xf]
    %v3874 = vld [vmem:[%s10 + $0x2f4] sm:$0xf]
    %v3875 = vld [vmem:[%s10 + $0x2f8] sm:$0xf]
    %v3876 = vld [vmem:[%s10 + $0x2fc] sm:$0xf]
    %v3877 = vld [vmem:[%s10 + $0x300] sm:$0xf]
    %v3878 = vld [vmem:[%s10 + $0x304] sm:$0xf]
    %v3879 = vld [vmem:[%s10 + $0x308] sm:$0xf]
    %v3880 = vld [vmem:[%s10 + $0x30c] sm:$0xf]
    %v3881 = vld [vmem:[%s10 + $0x310] sm:$0xf]
    %v3882 = vld [vmem:[%s10 + $0x314] sm:$0xf]
    %v3883 = vld [vmem:[%s10 + $0x318] sm:$0xf]
    %v3884 = vld [vmem:[%s10 + $0x31c] sm:$0xf]
    %v3885 = vld [vmem:[%s10 + $0x320] sm:$0xf]
    %v3886 = vld [vmem:[%s10 + $0x324] sm:$0xf]
    %v3887 = vld [vmem:[%s10 + $0x328] sm:$0xf]
    %v3888 = vld [vmem:[%s10 + $0x32c] sm:$0xf]
    %v3889 = vld [vmem:[%s10 + $0x330] sm:$0xf]
    %v3890 = vld [vmem:[%s10 + $0x334] sm:$0xf]
    %v3891 = vld [vmem:[%s10 + $0x338] sm:$0xf]
    %v3892 = vld [vmem:[%s10 + $0x33c] sm:$0xf]
    %v3893 = vld [vmem:[%s10 + $0x340] sm:$0xf]
    %v3894 = vld [vmem:[%s10 + $0x344] sm:$0xf]
    %v3895 = vld [vmem:[%s10 + $0x348] sm:$0xf]
    %v3896 = vld [vmem:[%s10 + $0x34c] sm:$0xf]
    %v3897 = vld [vmem:[%s10 + $0x350] sm:$0xf]
    %v3898 = vld [vmem:[%s10 + $0x354] sm:$0xf]
    %v3899 = vld [vmem:[%s10 + $0x358] sm:$0xf]
    %v3900 = vld [vmem:[%s10 + $0x35c] sm:$0xf]
    %v3901 = vld [vmem:[%s10 + $0x360] sm:$0xf]
    %v3902 = vld [vmem:[%s10 + $0x364] sm:$0xf]
    %v3903 = vld [vmem:[%s10 + $0x368] sm:$0xf]
    %v3904 = vld [vmem:[%s10 + $0x36c] sm:$0xf]
    %v3905 = vld [vmem:[%s10 + $0x370] sm:$0xf]
    %v3906 = vld [vmem:[%s10 + $0x374] sm:$0xf]
    %v3907 = vld [vmem:[%s10 + $0x378] sm:$0xf]
    %v3908 = vld [vmem:[%s10 + $0x37c] sm:$0xf]
    %v3909 = vld [vmem:[%s10 + $0x380] sm:$0xf]
    %v3910 = vld [vmem:[%s10 + $0x384] sm:$0xf]
    %v3911 = vld [vmem:[%s10 + $0x388] sm:$0xf]
    %v3912 = vld [vmem:[%s10 + $0x38c] sm:$0xf]
    %v3913 = vld [vmem:[%s10 + $0x390] sm:$0xf]
    %v3914 = vld [vmem:[%s10 + $0x394] sm:$0xf]
    %v3915 = vld [vmem:[%s10 + $0x398] sm:$0xf]
    %v3916 = vld [vmem:[%s10 + $0x39c] sm:$0xf]
    %v3917 = vld [vmem:[%s10 + $0x3a0] sm:$0xf]
    %v3918 = vld [vmem:[%s10 + $0x3a4] sm:$0xf]
    %v3919 = vld [vmem:[%s10 + $0x3a8] sm:$0xf]
    %v3920 = vld [vmem:[%s10 + $0x3ac] sm:$0xf]
    %v3921 = vld [vmem:[%s10 + $0x3b0] sm:$0xf]
    %v3922 = vld [vmem:[%s10 + $0x3b4] sm:$0xf]
    %v3923 = vld [vmem:[%s10 + $0x3b8] sm:$0xf]
    %v3924 = vld [vmem:[%s10 + $0x3bc] sm:$0xf]
    %v3925 = vld [vmem:[%s10 + $0x3c0] sm:$0xf]
    %v3926 = vld [vmem:[%s10 + $0x3c4] sm:$0xf]
    %v3927 = vld [vmem:[%s10 + $0x3c8] sm:$0xf]
    %v3928 = vld [vmem:[%s10 + $0x3cc] sm:$0xf]
    %v3929 = vld [vmem:[%s10 + $0x3d0] sm:$0xf]
    %v3930 = vld [vmem:[%s10 + $0x3d4] sm:$0xf]
    %v3931 = vld [vmem:[%s10 + $0x3d8] sm:$0xf]
    %v3932 = vld [vmem:[%s10 + $0x3dc] sm:$0xf]
    %v3933 = vld [vmem:[%s10 + $0x3e0] sm:$0xf]
    %v3934 = vld [vmem:[%s10 + $0x3e4] sm:$0xf]
    %v3935 = vld [vmem:[%s10 + $0x3e8] sm:$0xf]
    %v3936 = vld [vmem:[%s10 + $0x3ec] sm:$0xf]
    %v3937 = vld [vmem:[%s10 + $0x3f0] sm:$0xf]
    %v3938 = vld [vmem:[%s10 + $0x3f4] sm:$0xf]
    %v3939 = vld [vmem:[%s10 + $0x3f8] sm:$0xf]
    %v3940 = vld [vmem:[%s10 + $0x3fc] sm:$0xf]
    %v3941 = vld [vmem:[%s2 + $0xd] sm:$0x1]
    %v3942 = vlaneseq
    %v3943 = vshrl.u32 %v3942, 7
    %v3944 = vsub.s32 0, %v3943
    %v3945 = vrot.slane %v3941, %v3944
    %v4202 = vunpack.c.l.b16 %v3685
    %v4203 = vunpack.c.l.b16 %v3686
    %v4204 = vunpack.c.l.b16 %v3687
    %v4205 = vunpack.c.l.b16 %v3688
    %v4206 = vunpack.c.l.b16 %v3689
    %v4207 = vunpack.c.l.b16 %v3690
    %v4208 = vunpack.c.l.b16 %v3691
    %v4209 = vunpack.c.l.b16 %v3692
    %v4210 = vunpack.c.l.b16 %v3693
    %v4211 = vunpack.c.l.b16 %v3694
    %v4212 = vunpack.c.l.b16 %v3695
    %v4213 = vunpack.c.l.b16 %v3696
    %v4214 = vunpack.c.l.b16 %v3697
    %v4215 = vunpack.c.l.b16 %v3698
    %v4216 = vunpack.c.l.b16 %v3699
    %v4217 = vunpack.c.l.b16 %v3700
    %v4218 = vunpack.c.l.b16 %v3701
    %v4219 = vunpack.c.l.b16 %v3702
    %v4220 = vunpack.c.l.b16 %v3703
    %v4221 = vunpack.c.l.b16 %v3704
    %v4222 = vunpack.c.l.b16 %v3705
    %v4223 = vunpack.c.l.b16 %v3706
    %v4224 = vunpack.c.l.b16 %v3707
    %v4225 = vunpack.c.l.b16 %v3708
    %v4226 = vunpack.c.l.b16 %v3709
    %v4227 = vunpack.c.l.b16 %v3710
    %v4228 = vunpack.c.l.b16 %v3711
    %v4229 = vunpack.c.l.b16 %v3712
    %v4230 = vunpack.c.l.b16 %v3713
    %v4231 = vunpack.c.l.b16 %v3714
    %v4232 = vunpack.c.l.b16 %v3715
    %v4233 = vunpack.c.l.b16 %v3716
    %v4234 = vunpack.c.l.b16 %v3717
    %v4235 = vunpack.c.l.b16 %v3718
    %v4236 = vunpack.c.l.b16 %v3719
    %v4237 = vunpack.c.l.b16 %v3720
    %v4238 = vunpack.c.l.b16 %v3721
    %v4239 = vunpack.c.l.b16 %v3722
    %v4240 = vunpack.c.l.b16 %v3723
    %v4241 = vunpack.c.l.b16 %v3724
    %v4242 = vunpack.c.l.b16 %v3725
    %v4243 = vunpack.c.l.b16 %v3726
    %v4244 = vunpack.c.l.b16 %v3727
    %v4245 = vunpack.c.l.b16 %v3728
    %v4246 = vunpack.c.l.b16 %v3729
    %v4247 = vunpack.c.l.b16 %v3730
    %v4248 = vunpack.c.l.b16 %v3731
    %v4249 = vunpack.c.l.b16 %v3732
    %v4250 = vunpack.c.l.b16 %v3733
    %v4251 = vunpack.c.l.b16 %v3734
    %v4252 = vunpack.c.l.b16 %v3735
    %v4253 = vunpack.c.l.b16 %v3736
    %v4254 = vunpack.c.l.b16 %v3737
    %v4255 = vunpack.c.l.b16 %v3738
    %v4256 = vunpack.c.l.b16 %v3739
    %v4257 = vunpack.c.l.b16 %v3740
    %v4258 = vunpack.c.l.b16 %v3741
    %v4259 = vunpack.c.l.b16 %v3742
    %v4260 = vunpack.c.l.b16 %v3743
    %v4261 = vunpack.c.l.b16 %v3744
    %v4262 = vunpack.c.l.b16 %v3745
    %v4263 = vunpack.c.l.b16 %v3746
    %v4264 = vunpack.c.l.b16 %v3747
    %v4265 = vunpack.c.l.b16 %v3748
    %v4266 = vunpack.c.l.b16 %v3749
    %v4267 = vunpack.c.l.b16 %v3750
    %v4268 = vunpack.c.l.b16 %v3751
    %v4269 = vunpack.c.l.b16 %v3752
    %v4270 = vunpack.c.l.b16 %v3753
    %v4271 = vunpack.c.l.b16 %v3754
    %v4272 = vunpack.c.l.b16 %v3755
    %v4273 = vunpack.c.l.b16 %v3756
    %v4274 = vunpack.c.l.b16 %v3757
    %v4275 = vunpack.c.l.b16 %v3758
    %v4276 = vunpack.c.l.b16 %v3759
    %v4277 = vunpack.c.l.b16 %v3760
    %v4278 = vunpack.c.l.b16 %v3761
    %v4279 = vunpack.c.l.b16 %v3762
    %v4280 = vunpack.c.l.b16 %v3763
    %v4281 = vunpack.c.l.b16 %v3764
    %v4282 = vunpack.c.l.b16 %v3765
    %v4283 = vunpack.c.l.b16 %v3766
    %v4284 = vunpack.c.l.b16 %v3767
    %v4285 = vunpack.c.l.b16 %v3768
    %v4286 = vunpack.c.l.b16 %v3769
    %v4287 = vunpack.c.l.b16 %v3770
    %v4288 = vunpack.c.l.b16 %v3771
    %v4289 = vunpack.c.l.b16 %v3772
    %v4290 = vunpack.c.l.b16 %v3773
    %v4291 = vunpack.c.l.b16 %v3774
    %v4292 = vunpack.c.l.b16 %v3775
    %v4293 = vunpack.c.l.b16 %v3776
    %v4294 = vunpack.c.l.b16 %v3777
    %v4295 = vunpack.c.l.b16 %v3778
    %v4296 = vunpack.c.l.b16 %v3779
    %v4297 = vunpack.c.l.b16 %v3780
    %v4298 = vunpack.c.l.b16 %v3781
    %v4299 = vunpack.c.l.b16 %v3782
    %v4300 = vunpack.c.l.b16 %v3783
    %v4301 = vunpack.c.l.b16 %v3784
    %v4302 = vunpack.c.l.b16 %v3785
    %v4303 = vunpack.c.l.b16 %v3786
    %v4304 = vunpack.c.l.b16 %v3787
    %v4305 = vunpack.c.l.b16 %v3788
    %v4306 = vunpack.c.l.b16 %v3789
    %v4307 = vunpack.c.l.b16 %v3790
    %v4308 = vunpack.c.l.b16 %v3791
    %v4309 = vunpack.c.l.b16 %v3792
    %v4310 = vunpack.c.l.b16 %v3793
    %v4311 = vunpack.c.l.b16 %v3794
    %v4312 = vunpack.c.l.b16 %v3795
    %v4313 = vunpack.c.l.b16 %v3796
    %v4314 = vunpack.c.l.b16 %v3797
    %v4315 = vunpack.c.l.b16 %v3798
    %v4316 = vunpack.c.l.b16 %v3799
    %v4317 = vunpack.c.l.b16 %v3800
    %v4318 = vunpack.c.l.b16 %v3801
    %v4319 = vunpack.c.l.b16 %v3802
    %v4320 = vunpack.c.l.b16 %v3803
    %v4321 = vunpack.c.l.b16 %v3804
    %v4322 = vunpack.c.l.b16 %v3805
    %v4323 = vunpack.c.l.b16 %v3806
    %v4324 = vunpack.c.l.b16 %v3807
    %v4325 = vunpack.c.l.b16 %v3808
    %v4326 = vunpack.c.l.b16 %v3809
    %v4327 = vunpack.c.l.b16 %v3810
    %v4328 = vunpack.c.l.b16 %v3811
    %v4329 = vunpack.c.l.b16 %v3812
    %v4330 = vunpack.c.l.b16 %v3813
    %v4331 = vunpack.c.l.b16 %v3814
    %v4332 = vunpack.c.l.b16 %v3815
    %v4333 = vunpack.c.l.b16 %v3816
    %v4334 = vunpack.c.l.b16 %v3817
    %v4335 = vunpack.c.l.b16 %v3818
    %v4336 = vunpack.c.l.b16 %v3819
    %v4337 = vunpack.c.l.b16 %v3820
    %v4338 = vunpack.c.l.b16 %v3821
    %v4339 = vunpack.c.l.b16 %v3822
    %v4340 = vunpack.c.l.b16 %v3823
    %v4341 = vunpack.c.l.b16 %v3824
    %v4342 = vunpack.c.l.b16 %v3825
    %v4343 = vunpack.c.l.b16 %v3826
    %v4344 = vunpack.c.l.b16 %v3827
    %v4345 = vunpack.c.l.b16 %v3828
    %v4346 = vunpack.c.l.b16 %v3829
    %v4347 = vunpack.c.l.b16 %v3830
    %v4348 = vunpack.c.l.b16 %v3831
    %v4349 = vunpack.c.l.b16 %v3832
    %v4350 = vunpack.c.l.b16 %v3833
    %v4351 = vunpack.c.l.b16 %v3834
    %v4352 = vunpack.c.l.b16 %v3835
    %v4353 = vunpack.c.l.b16 %v3836
    %v4354 = vunpack.c.l.b16 %v3837
    %v4355 = vunpack.c.l.b16 %v3838
    %v4356 = vunpack.c.l.b16 %v3839
    %v4357 = vunpack.c.l.b16 %v3840
    %v4358 = vunpack.c.l.b16 %v3841
    %v4359 = vunpack.c.l.b16 %v3842
    %v4360 = vunpack.c.l.b16 %v3843
    %v4361 = vunpack.c.l.b16 %v3844
    %v4362 = vunpack.c.l.b16 %v3845
    %v4363 = vunpack.c.l.b16 %v3846
    %v4364 = vunpack.c.l.b16 %v3847
    %v4365 = vunpack.c.l.b16 %v3848
    %v4366 = vunpack.c.l.b16 %v3849
    %v4367 = vunpack.c.l.b16 %v3850
    %v4368 = vunpack.c.l.b16 %v3851
    %v4369 = vunpack.c.l.b16 %v3852
    %v4370 = vunpack.c.l.b16 %v3853
    %v4371 = vunpack.c.l.b16 %v3854
    %v4372 = vunpack.c.l.b16 %v3855
    %v4373 = vunpack.c.l.b16 %v3856
    %v4374 = vunpack.c.l.b16 %v3857
    %v4375 = vunpack.c.l.b16 %v3858
    %v4376 = vunpack.c.l.b16 %v3859
    %v4377 = vunpack.c.l.b16 %v3860
    %v4378 = vunpack.c.l.b16 %v3861
    %v4379 = vunpack.c.l.b16 %v3862
    %v4380 = vunpack.c.l.b16 %v3863
    %v4381 = vunpack.c.l.b16 %v3864
    %v4382 = vunpack.c.l.b16 %v3865
    %v4383 = vunpack.c.l.b16 %v3866
    %v4384 = vunpack.c.l.b16 %v3867
    %v4385 = vunpack.c.l.b16 %v3868
    %v4386 = vunpack.c.l.b16 %v3869
    %v4387 = vunpack.c.l.b16 %v3870
    %v4388 = vunpack.c.l.b16 %v3871
    %v4389 = vunpack.c.l.b16 %v3872
    %v4390 = vunpack.c.l.b16 %v3873
    %v4391 = vunpack.c.l.b16 %v3874
    %v4392 = vunpack.c.l.b16 %v3875
    %v4393 = vunpack.c.l.b16 %v3876
    %v4394 = vunpack.c.l.b16 %v3877
    %v4395 = vunpack.c.l.b16 %v3878
    %v4396 = vunpack.c.l.b16 %v3879
    %v4397 = vunpack.c.l.b16 %v3880
    %v4398 = vunpack.c.l.b16 %v3881
    %v4399 = vunpack.c.l.b16 %v3882
    %v4400 = vunpack.c.l.b16 %v3883
    %v4401 = vunpack.c.l.b16 %v3884
    %v4402 = vunpack.c.l.b16 %v3885
    %v4403 = vunpack.c.l.b16 %v3886
    %v4404 = vunpack.c.l.b16 %v3887
    %v4405 = vunpack.c.l.b16 %v3888
    %v4406 = vunpack.c.l.b16 %v3889
    %v4407 = vunpack.c.l.b16 %v3890
    %v4408 = vunpack.c.l.b16 %v3891
    %v4409 = vunpack.c.l.b16 %v3892
    %v4410 = vunpack.c.l.b16 %v3893
    %v4411 = vunpack.c.l.b16 %v3894
    %v4412 = vunpack.c.l.b16 %v3895
    %v4413 = vunpack.c.l.b16 %v3896
    %v4414 = vunpack.c.l.b16 %v3897
    %v4415 = vunpack.c.l.b16 %v3898
    %v4416 = vunpack.c.l.b16 %v3899
    %v4417 = vunpack.c.l.b16 %v3900
    %v4418 = vunpack.c.l.b16 %v3901
    %v4419 = vunpack.c.l.b16 %v3902
    %v4420 = vunpack.c.l.b16 %v3903
    %v4421 = vunpack.c.l.b16 %v3904
    %v4422 = vunpack.c.l.b16 %v3905
    %v4423 = vunpack.c.l.b16 %v3906
    %v4424 = vunpack.c.l.b16 %v3907
    %v4425 = vunpack.c.l.b16 %v3908
    %v4426 = vunpack.c.l.b16 %v3909
    %v4427 = vunpack.c.l.b16 %v3910
    %v4428 = vunpack.c.l.b16 %v3911
    %v4429 = vunpack.c.l.b16 %v3912
    %v4430 = vunpack.c.l.b16 %v3913
    %v4431 = vunpack.c.l.b16 %v3914
    %v4432 = vunpack.c.l.b16 %v3915
    %v4433 = vunpack.c.l.b16 %v3916
    %v4434 = vunpack.c.l.b16 %v3917
    %v4435 = vunpack.c.l.b16 %v3918
    %v4436 = vunpack.c.l.b16 %v3919
    %v4437 = vunpack.c.l.b16 %v3920
    %v4438 = vunpack.c.l.b16 %v3921
    %v4439 = vunpack.c.l.b16 %v3922
    %v4440 = vunpack.c.l.b16 %v3923
    %v4441 = vunpack.c.l.b16 %v3924
    %v4442 = vunpack.c.l.b16 %v3925
    %v4443 = vunpack.c.l.b16 %v3926
    %v4444 = vunpack.c.l.b16 %v3927
    %v4445 = vunpack.c.l.b16 %v3928
    %v4446 = vunpack.c.l.b16 %v3929
    %v4447 = vunpack.c.l.b16 %v3930
    %v4448 = vunpack.c.l.b16 %v3931
    %v4449 = vunpack.c.l.b16 %v3932
    %v4450 = vunpack.c.l.b16 %v3933
    %v4451 = vunpack.c.l.b16 %v3934
    %v4452 = vunpack.c.l.b16 %v3935
    %v4453 = vunpack.c.l.b16 %v3936
    %v4454 = vunpack.c.l.b16 %v3937
    %v4455 = vunpack.c.l.b16 %v3938
    %v4456 = vunpack.c.l.b16 %v3939
    %v4457 = vunpack.c.l.b16 %v3940
    %v4458 = vpack.c.b16 %v4203, %v4202
    %v4459 = vpack.c.b16 %v4205, %v4204
    %v4460 = vpack.c.b16 %v4207, %v4206
    %v4461 = vpack.c.b16 %v4209, %v4208
    %v4462 = vpack.c.b16 %v4211, %v4210
    %v4463 = vpack.c.b16 %v4213, %v4212
    %v4464 = vpack.c.b16 %v4215, %v4214
    %v4465 = vpack.c.b16 %v4217, %v4216
    %v4466 = vpack.c.b16 %v4219, %v4218
    %v4467 = vpack.c.b16 %v4221, %v4220
    %v4468 = vpack.c.b16 %v4223, %v4222
    %v4469 = vpack.c.b16 %v4225, %v4224
    %v4470 = vpack.c.b16 %v4227, %v4226
    %v4471 = vpack.c.b16 %v4229, %v4228
    %v4472 = vpack.c.b16 %v4231, %v4230
    %v4473 = vpack.c.b16 %v4233, %v4232
    %v4474 = vpack.c.b16 %v4235, %v4234
    %v4475 = vpack.c.b16 %v4237, %v4236
    %v4476 = vpack.c.b16 %v4239, %v4238
    %v4477 = vpack.c.b16 %v4241, %v4240
    %v4478 = vpack.c.b16 %v4243, %v4242
    %v4479 = vpack.c.b16 %v4245, %v4244
    %v4480 = vpack.c.b16 %v4247, %v4246
    %v4481 = vpack.c.b16 %v4249, %v4248
    %v4482 = vpack.c.b16 %v4251, %v4250
    %v4483 = vpack.c.b16 %v4253, %v4252
    %v4484 = vpack.c.b16 %v4255, %v4254
    %v4485 = vpack.c.b16 %v4257, %v4256
    %v4486 = vpack.c.b16 %v4259, %v4258
    %v4487 = vpack.c.b16 %v4261, %v4260
    %v4488 = vpack.c.b16 %v4263, %v4262
    %v4489 = vpack.c.b16 %v4265, %v4264
    %v4490 = vpack.c.b16 %v4267, %v4266
    %v4491 = vpack.c.b16 %v4269, %v4268
    %v4492 = vpack.c.b16 %v4271, %v4270
    %v4493 = vpack.c.b16 %v4273, %v4272
    %v4494 = vpack.c.b16 %v4275, %v4274
    %v4495 = vpack.c.b16 %v4277, %v4276
    %v4496 = vpack.c.b16 %v4279, %v4278
    %v4497 = vpack.c.b16 %v4281, %v4280
    %v4498 = vpack.c.b16 %v4283, %v4282
    %v4499 = vpack.c.b16 %v4285, %v4284
    %v4500 = vpack.c.b16 %v4287, %v4286
    %v4501 = vpack.c.b16 %v4289, %v4288
    %v4502 = vpack.c.b16 %v4291, %v4290
    %v4503 = vpack.c.b16 %v4293, %v4292
    %v4504 = vpack.c.b16 %v4295, %v4294
    %v4505 = vpack.c.b16 %v4297, %v4296
    %v4506 = vpack.c.b16 %v4299, %v4298
    %v4507 = vpack.c.b16 %v4301, %v4300
    %v4508 = vpack.c.b16 %v4303, %v4302
    %v4509 = vpack.c.b16 %v4305, %v4304
    %v4510 = vpack.c.b16 %v4307, %v4306
    %v4511 = vpack.c.b16 %v4309, %v4308
    %v4512 = vpack.c.b16 %v4311, %v4310
    %v4513 = vpack.c.b16 %v4313, %v4312
    %v4514 = vpack.c.b16 %v4315, %v4314
    %v4515 = vpack.c.b16 %v4317, %v4316
    %v4516 = vpack.c.b16 %v4319, %v4318
    %v4517 = vpack.c.b16 %v4321, %v4320
    %v4518 = vpack.c.b16 %v4323, %v4322
    %v4519 = vpack.c.b16 %v4325, %v4324
    %v4520 = vpack.c.b16 %v4327, %v4326
    %v4521 = vpack.c.b16 %v4329, %v4328
    %v4522 = vpack.c.b16 %v4331, %v4330
    %v4523 = vpack.c.b16 %v4333, %v4332
    %v4524 = vpack.c.b16 %v4335, %v4334
    %v4525 = vpack.c.b16 %v4337, %v4336
    %v4526 = vpack.c.b16 %v4339, %v4338
    %v4527 = vpack.c.b16 %v4341, %v4340
    %v4528 = vpack.c.b16 %v4343, %v4342
    %v4529 = vpack.c.b16 %v4345, %v4344
    %v4530 = vpack.c.b16 %v4347, %v4346
    %v4531 = vpack.c.b16 %v4349, %v4348
    %v4532 = vpack.c.b16 %v4351, %v4350
    %v4533 = vpack.c.b16 %v4353, %v4352
    %v4534 = vpack.c.b16 %v4355, %v4354
    %v4535 = vpack.c.b16 %v4357, %v4356
    %v4536 = vpack.c.b16 %v4359, %v4358
    %v4537 = vpack.c.b16 %v4361, %v4360
    %v4538 = vpack.c.b16 %v4363, %v4362
    %v4539 = vpack.c.b16 %v4365, %v4364
    %v4540 = vpack.c.b16 %v4367, %v4366
    %v4541 = vpack.c.b16 %v4369, %v4368
    %v4542 = vpack.c.b16 %v4371, %v4370
    %v4543 = vpack.c.b16 %v4373, %v4372
    %v4544 = vpack.c.b16 %v4375, %v4374
    %v4545 = vpack.c.b16 %v4377, %v4376
    %v4546 = vpack.c.b16 %v4379, %v4378
    %v4547 = vpack.c.b16 %v4381, %v4380
    %v4548 = vpack.c.b16 %v4383, %v4382
    %v4549 = vpack.c.b16 %v4385, %v4384
    %v4550 = vpack.c.b16 %v4387, %v4386
    %v4551 = vpack.c.b16 %v4389, %v4388
    %v4552 = vpack.c.b16 %v4391, %v4390
    %v4553 = vpack.c.b16 %v4393, %v4392
    %v4554 = vpack.c.b16 %v4395, %v4394
    %v4555 = vpack.c.b16 %v4397, %v4396
    %v4556 = vpack.c.b16 %v4399, %v4398
    %v4557 = vpack.c.b16 %v4401, %v4400
    %v4558 = vpack.c.b16 %v4403, %v4402
    %v4559 = vpack.c.b16 %v4405, %v4404
    %v4560 = vpack.c.b16 %v4407, %v4406
    %v4561 = vpack.c.b16 %v4409, %v4408
    %v4562 = vpack.c.b16 %v4411, %v4410
    %v4563 = vpack.c.b16 %v4413, %v4412
    %v4564 = vpack.c.b16 %v4415, %v4414
    %v4565 = vpack.c.b16 %v4417, %v4416
    %v4566 = vpack.c.b16 %v4419, %v4418
    %v4567 = vpack.c.b16 %v4421, %v4420
    %v4568 = vpack.c.b16 %v4423, %v4422
    %v4569 = vpack.c.b16 %v4425, %v4424
    %v4570 = vpack.c.b16 %v4427, %v4426
    %v4571 = vpack.c.b16 %v4429, %v4428
    %v4572 = vpack.c.b16 %v4431, %v4430
    %v4573 = vpack.c.b16 %v4433, %v4432
    %v4574 = vpack.c.b16 %v4435, %v4434
    %v4575 = vpack.c.b16 %v4437, %v4436
    %v4576 = vpack.c.b16 %v4439, %v4438
    %v4577 = vpack.c.b16 %v4441, %v4440
    %v4578 = vpack.c.b16 %v4443, %v4442
    %v4579 = vpack.c.b16 %v4445, %v4444
    %v4580 = vpack.c.b16 %v4447, %v4446
    %v4581 = vpack.c.b16 %v4449, %v4448
    %v4582 = vpack.c.b16 %v4451, %v4450
    %v4583 = vpack.c.b16 %v4453, %v4452
    %v4584 = vpack.c.b16 %v4455, %v4454
    %v4585 = vpack.c.b16 %v4457, %v4456
    %4714 = vmatprep.subr.bf16.mxu0 0
    %4715 = vmatpush1.bf16.msra.mxu0 %v4458
    %4716 = vmatprep.subr.bf16.mxu0 0
    %4717 = vmatpush1.bf16.msra.mxu0 %v4459
    %4718 = vmatprep.subr.bf16.mxu0 0
    %4719 = vmatpush1.bf16.msra.mxu0 %v4460
    %4720 = vmatprep.subr.bf16.mxu0 0
    %4721 = vmatpush1.bf16.msra.mxu0 %v4461
    %4722 = vmatprep.subr.bf16.mxu0 0
    %4723 = vmatpush1.bf16.msra.mxu0 %v4462
    %4724 = vmatprep.subr.bf16.mxu0 0
    %4725 = vmatpush1.bf16.msra.mxu0 %v4463
    %4726 = vmatprep.subr.bf16.mxu0 0
    %4727 = vmatpush1.bf16.msra.mxu0 %v4464
    %4728 = vmatprep.subr.bf16.mxu0 0
    %4729 = vmatpush1.bf16.msra.mxu0 %v4465
    %4730 = vmatprep.subr.bf16.mxu0 0
    %4731 = vmatpush1.bf16.msra.mxu0 %v4466
    %4732 = vmatprep.subr.bf16.mxu0 0
    %4733 = vmatpush1.bf16.msra.mxu0 %v4467
    %4734 = vmatprep.subr.bf16.mxu0 0
    %4735 = vmatpush1.bf16.msra.mxu0 %v4468
    %4736 = vmatprep.subr.bf16.mxu0 0
    %4737 = vmatpush1.bf16.msra.mxu0 %v4469
    %4738 = vmatprep.subr.bf16.mxu0 0
    %4739 = vmatpush1.bf16.msra.mxu0 %v4470
    %4740 = vmatprep.subr.bf16.mxu0 0
    %4741 = vmatpush1.bf16.msra.mxu0 %v4471
    %4742 = vmatprep.subr.bf16.mxu0 0
    %4743 = vmatpush1.bf16.msra.mxu0 %v4472
    %4744 = vmatprep.subr.bf16.mxu0 0
    %4745 = vmatpush1.bf16.msra.mxu0 %v4473
    %4746 = vmatprep.mubr.bf16.mxu0 %v3670
    %4747 = vmatmul.mubr.bf16.gmra.mrb[0].mxu0 %v3669
    %v4748 = vpop.f32.mrb[0].mxu0
    %v4749 = vadd.f32 %v3945, %v4748
    %v4750 = vpop.f32.mrb[0].mxu0
    %v4751 = vpop.f32.mrb[0].mxu0
    %v4752 = vpop.f32.mrb[0].mxu0
    %4753 = vdwg.mxu0
    %4754 = vmatprep.subr.bf16.mxu0 0
    %4755 = vmatpush1.bf16.msra.mxu0 %v4474
    %4756 = vmatprep.subr.bf16.mxu0 0
    %4757 = vmatpush1.bf16.msra.mxu0 %v4475
    %4758 = vmatprep.subr.bf16.mxu0 0
    %4759 = vmatpush1.bf16.msra.mxu0 %v4476
    %4760 = vmatprep.subr.bf16.mxu0 0
    %4761 = vmatpush1.bf16.msra.mxu0 %v4477
    %4762 = vmatprep.subr.bf16.mxu0 0
    %4763 = vmatpush1.bf16.msra.mxu0 %v4478
    %4764 = vmatprep.subr.bf16.mxu0 0
    %4765 = vmatpush1.bf16.msra.mxu0 %v4479
    %4766 = vmatprep.subr.bf16.mxu0 0
    %4767 = vmatpush1.bf16.msra.mxu0 %v4480
    %4768 = vmatprep.subr.bf16.mxu0 0
    %4769 = vmatpush1.bf16.msra.mxu0 %v4481
    %4770 = vmatprep.subr.bf16.mxu0 0
    %4771 = vmatpush1.bf16.msra.mxu0 %v4482
    %4772 = vmatprep.subr.bf16.mxu0 0
    %4773 = vmatpush1.bf16.msra.mxu0 %v4483
    %4774 = vmatprep.subr.bf16.mxu0 0
    %4775 = vmatpush1.bf16.msra.mxu0 %v4484
    %4776 = vmatprep.subr.bf16.mxu0 0
    %4777 = vmatpush1.bf16.msra.mxu0 %v4485
    %4778 = vmatprep.subr.bf16.mxu0 0
    %4779 = vmatpush1.bf16.msra.mxu0 %v4486
    %4780 = vmatprep.subr.bf16.mxu0 0
    %4781 = vmatpush1.bf16.msra.mxu0 %v4487
    %4782 = vmatprep.subr.bf16.mxu0 0
    %4783 = vmatpush1.bf16.msra.mxu0 %v4488
    %4784 = vmatprep.subr.bf16.mxu0 0
    %4785 = vmatpush1.bf16.msra.mxu0 %v4489
    %4786 = vmatprep.mubr.bf16.mxu0 %v3672
    %4787 = vmatmul.mubr.bf16.gmra.mrb[0].mxu0 %v3671
    %v4788 = vpop.f32.mrb[0].mxu0
    %v4789 = vadd.f32 %v4749, %v4788
    %v4790 = vpop.f32.mrb[0].mxu0
    %v4791 = vpop.f32.mrb[0].mxu0
    %v4792 = vpop.f32.mrb[0].mxu0
    %4793 = vdwg.mxu0
    %4794 = vmatprep.subr.bf16.mxu0 0
    %4795 = vmatpush1.bf16.msra.mxu0 %v4490
    %4796 = vmatprep.subr.bf16.mxu0 0
    %4797 = vmatpush1.bf16.msra.mxu0 %v4491
    %4798 = vmatprep.subr.bf16.mxu0 0
    %4799 = vmatpush1.bf16.msra.mxu0 %v4492
    %4800 = vmatprep.subr.bf16.mxu0 0
    %4801 = vmatpush1.bf16.msra.mxu0 %v4493
    %4802 = vmatprep.subr.bf16.mxu0 0
    %4803 = vmatpush1.bf16.msra.mxu0 %v4494
    %4804 = vmatprep.subr.bf16.mxu0 0
    %4805 = vmatpush1.bf16.msra.mxu0 %v4495
    %4806 = vmatprep.subr.bf16.mxu0 0
    %4807 = vmatpush1.bf16.msra.mxu0 %v4496
    %4808 = vmatprep.subr.bf16.mxu0 0
    %4809 = vmatpush1.bf16.msra.mxu0 %v4497
    %4810 = vmatprep.subr.bf16.mxu0 0
    %4811 = vmatpush1.bf16.msra.mxu0 %v4498
    %4812 = vmatprep.subr.bf16.mxu0 0
    %4813 = vmatpush1.bf16.msra.mxu0 %v4499
    %4814 = vmatprep.subr.bf16.mxu0 0
    %4815 = vmatpush1.bf16.msra.mxu0 %v4500
    %4816 = vmatprep.subr.bf16.mxu0 0
    %4817 = vmatpush1.bf16.msra.mxu0 %v4501
    %4818 = vmatprep.subr.bf16.mxu0 0
    %4819 = vmatpush1.bf16.msra.mxu0 %v4502
    %4820 = vmatprep.subr.bf16.mxu0 0
    %4821 = vmatpush1.bf16.msra.mxu0 %v4503
    %4822 = vmatprep.subr.bf16.mxu0 0
    %4823 = vmatpush1.bf16.msra.mxu0 %v4504
    %4824 = vmatprep.subr.bf16.mxu0 0
    %4825 = vmatpush1.bf16.msra.mxu0 %v4505
    %4826 = vmatprep.mubr.bf16.mxu0 %v3674
    %4827 = vmatmul.mubr.bf16.gmra.mrb[0].mxu0 %v3673
    %v4828 = vpop.f32.mrb[0].mxu0
    %v4829 = vadd.f32 %v4789, %v4828
    %v4830 = vpop.f32.mrb[0].mxu0
    %v4831 = vpop.f32.mrb[0].mxu0
    %v4832 = vpop.f32.mrb[0].mxu0
    %4833 = vdwg.mxu0
    %4834 = vmatprep.subr.bf16.mxu0 0
    %4835 = vmatpush1.bf16.msra.mxu0 %v4506
    %4836 = vmatprep.subr.bf16.mxu0 0
    %4837 = vmatpush1.bf16.msra.mxu0 %v4507
    %4838 = vmatprep.subr.bf16.mxu0 0
    %4839 = vmatpush1.bf16.msra.mxu0 %v4508
    %4840 = vmatprep.subr.bf16.mxu0 0
    %4841 = vmatpush1.bf16.msra.mxu0 %v4509
    %4842 = vmatprep.subr.bf16.mxu0 0
    %4843 = vmatpush1.bf16.msra.mxu0 %v4510
    %4844 = vmatprep.subr.bf16.mxu0 0
    %4845 = vmatpush1.bf16.msra.mxu0 %v4511
    %4846 = vmatprep.subr.bf16.mxu0 0
    %4847 = vmatpush1.bf16.msra.mxu0 %v4512
    %4848 = vmatprep.subr.bf16.mxu0 0
    %4849 = vmatpush1.bf16.msra.mxu0 %v4513
    %4850 = vmatprep.subr.bf16.mxu0 0
    %4851 = vmatpush1.bf16.msra.mxu0 %v4514
    %4852 = vmatprep.subr.bf16.mxu0 0
    %4853 = vmatpush1.bf16.msra.mxu0 %v4515
    %4854 = vmatprep.subr.bf16.mxu0 0
    %4855 = vmatpush1.bf16.msra.mxu0 %v4516
    %4856 = vmatprep.subr.bf16.mxu0 0
    %4857 = vmatpush1.bf16.msra.mxu0 %v4517
    %4858 = vmatprep.subr.bf16.mxu0 0
    %4859 = vmatpush1.bf16.msra.mxu0 %v4518
    %4860 = vmatprep.subr.bf16.mxu0 0
    %4861 = vmatpush1.bf16.msra.mxu0 %v4519
    %4862 = vmatprep.subr.bf16.mxu0 0
    %4863 = vmatpush1.bf16.msra.mxu0 %v4520
    %4864 = vmatprep.subr.bf16.mxu0 0
    %4865 = vmatpush1.bf16.msra.mxu0 %v4521
    %4866 = vmatprep.mubr.bf16.mxu0 %v3676
    %4867 = vmatmul.mubr.bf16.gmra.mrb[0].mxu0 %v3675
    %v4868 = vpop.f32.mrb[0].mxu0
    %v4869 = vadd.f32 %v4829, %v4868
    %v4870 = vpop.f32.mrb[0].mxu0
    %v4871 = vpop.f32.mrb[0].mxu0
    %v4872 = vpop.f32.mrb[0].mxu0
    %4873 = vdwg.mxu0
    %4874 = vmatprep.subr.bf16.mxu0 0
    %4875 = vmatpush1.bf16.msra.mxu0 %v4522
    %4876 = vmatprep.subr.bf16.mxu0 0
    %4877 = vmatpush1.bf16.msra.mxu0 %v4523
    %4878 = vmatprep.subr.bf16.mxu0 0
    %4879 = vmatpush1.bf16.msra.mxu0 %v4524
    %4880 = vmatprep.subr.bf16.mxu0 0
    %4881 = vmatpush1.bf16.msra.mxu0 %v4525
    %4882 = vmatprep.subr.bf16.mxu0 0
    %4883 = vmatpush1.bf16.msra.mxu0 %v4526
    %4884 = vmatprep.subr.bf16.mxu0 0
    %4885 = vmatpush1.bf16.msra.mxu0 %v4527
    %4886 = vmatprep.subr.bf16.mxu0 0
    %4887 = vmatpush1.bf16.msra.mxu0 %v4528
    %4888 = vmatprep.subr.bf16.mxu0 0
    %4889 = vmatpush1.bf16.msra.mxu0 %v4529
    %4890 = vmatprep.subr.bf16.mxu0 0
    %4891 = vmatpush1.bf16.msra.mxu0 %v4530
    %4892 = vmatprep.subr.bf16.mxu0 0
    %4893 = vmatpush1.bf16.msra.mxu0 %v4531
    %4894 = vmatprep.subr.bf16.mxu0 0
    %4895 = vmatpush1.bf16.msra.mxu0 %v4532
    %4896 = vmatprep.subr.bf16.mxu0 0
    %4897 = vmatpush1.bf16.msra.mxu0 %v4533
    %4898 = vmatprep.subr.bf16.mxu0 0
    %4899 = vmatpush1.bf16.msra.mxu0 %v4534
    %4900 = vmatprep.subr.bf16.mxu0 0
    %4901 = vmatpush1.bf16.msra.mxu0 %v4535
    %4902 = vmatprep.subr.bf16.mxu0 0
    %4903 = vmatpush1.bf16.msra.mxu0 %v4536
    %4904 = vmatprep.subr.bf16.mxu0 0
    %4905 = vmatpush1.bf16.msra.mxu0 %v4537
    %4906 = vmatprep.mubr.bf16.mxu0 %v3678
    %4907 = vmatmul.mubr.bf16.gmra.mrb[0].mxu0 %v3677
    %v4908 = vpop.f32.mrb[0].mxu0
    %v4909 = vadd.f32 %v4869, %v4908
    %v4910 = vpop.f32.mrb[0].mxu0
    %v4911 = vpop.f32.mrb[0].mxu0
    %v4912 = vpop.f32.mrb[0].mxu0
    %4913 = vdwg.mxu0
    %4914 = vmatprep.subr.bf16.mxu0 0
    %4915 = vmatpush1.bf16.msra.mxu0 %v4538
    %4916 = vmatprep.subr.bf16.mxu0 0
    %4917 = vmatpush1.bf16.msra.mxu0 %v4539
    %4918 = vmatprep.subr.bf16.mxu0 0
    %4919 = vmatpush1.bf16.msra.mxu0 %v4540
    %4920 = vmatprep.subr.bf16.mxu0 0
    %4921 = vmatpush1.bf16.msra.mxu0 %v4541
    %4922 = vmatprep.subr.bf16.mxu0 0
    %4923 = vmatpush1.bf16.msra.mxu0 %v4542
    %4924 = vmatprep.subr.bf16.mxu0 0
    %4925 = vmatpush1.bf16.msra.mxu0 %v4543
    %4926 = vmatprep.subr.bf16.mxu0 0
    %4927 = vmatpush1.bf16.msra.mxu0 %v4544
    %4928 = vmatprep.subr.bf16.mxu0 0
    %4929 = vmatpush1.bf16.msra.mxu0 %v4545
    %4930 = vmatprep.subr.bf16.mxu0 0
    %4931 = vmatpush1.bf16.msra.mxu0 %v4546
    %4932 = vmatprep.subr.bf16.mxu0 0
    %4933 = vmatpush1.bf16.msra.mxu0 %v4547
    %4934 = vmatprep.subr.bf16.mxu0 0
    %4935 = vmatpush1.bf16.msra.mxu0 %v4548
    %4936 = vmatprep.subr.bf16.mxu0 0
    %4937 = vmatpush1.bf16.msra.mxu0 %v4549
    %4938 = vmatprep.subr.bf16.mxu0 0
    %4939 = vmatpush1.bf16.msra.mxu0 %v4550
    %4940 = vmatprep.subr.bf16.mxu0 0
    %4941 = vmatpush1.bf16.msra.mxu0 %v4551
    %4942 = vmatprep.subr.bf16.mxu0 0
    %4943 = vmatpush1.bf16.msra.mxu0 %v4552
    %4944 = vmatprep.subr.bf16.mxu0 0
    %4945 = vmatpush1.bf16.msra.mxu0 %v4553
    %4946 = vmatprep.mubr.bf16.mxu0 %v3680
    %4947 = vmatmul.mubr.bf16.gmra.mrb[0].mxu0 %v3679
    %v4948 = vpop.f32.mrb[0].mxu0
    %v4949 = vadd.f32 %v4909, %v4948
    %v4950 = vpop.f32.mrb[0].mxu0
    %v4951 = vpop.f32.mrb[0].mxu0
    %v4952 = vpop.f32.mrb[0].mxu0
    %4953 = vdwg.mxu0
    %4954 = vmatprep.subr.bf16.mxu0 0
    %4955 = vmatpush1.bf16.msra.mxu0 %v4554
    %4956 = vmatprep.subr.bf16.mxu0 0
    %4957 = vmatpush1.bf16.msra.mxu0 %v4555
    %4958 = vmatprep.subr.bf16.mxu0 0
    %4959 = vmatpush1.bf16.msra.mxu0 %v4556
    %4960 = vmatprep.subr.bf16.mxu0 0
    %4961 = vmatpush1.bf16.msra.mxu0 %v4557
    %4962 = vmatprep.subr.bf16.mxu0 0
    %4963 = vmatpush1.bf16.msra.mxu0 %v4558
    %4964 = vmatprep.subr.bf16.mxu0 0
    %4965 = vmatpush1.bf16.msra.mxu0 %v4559
    %4966 = vmatprep.subr.bf16.mxu0 0
    %4967 = vmatpush1.bf16.msra.mxu0 %v4560
    %4968 = vmatprep.subr.bf16.mxu0 0
    %4969 = vmatpush1.bf16.msra.mxu0 %v4561
    %4970 = vmatprep.subr.bf16.mxu0 0
    %4971 = vmatpush1.bf16.msra.mxu0 %v4562
    %4972 = vmatprep.subr.bf16.mxu0 0
    %4973 = vmatpush1.bf16.msra.mxu0 %v4563
    %4974 = vmatprep.subr.bf16.mxu0 0
    %4975 = vmatpush1.bf16.msra.mxu0 %v4564
    %4976 = vmatprep.subr.bf16.mxu0 0
    %4977 = vmatpush1.bf16.msra.mxu0 %v4565
    %4978 = vmatprep.subr.bf16.mxu0 0
    %4979 = vmatpush1.bf16.msra.mxu0 %v4566
    %4980 = vmatprep.subr.bf16.mxu0 0
    %4981 = vmatpush1.bf16.msra.mxu0 %v4567
    %4982 = vmatprep.subr.bf16.mxu0 0
    %4983 = vmatpush1.bf16.msra.mxu0 %v4568
    %4984 = vmatprep.subr.bf16.mxu0 0
    %4985 = vmatpush1.bf16.msra.mxu0 %v4569
    %4986 = vmatprep.mubr.bf16.mxu0 %v3682
    %4987 = vmatmul.mubr.bf16.gmra.mrb[0].mxu0 %v3681
    %v4988 = vpop.f32.mrb[0].mxu0
    %v4989 = vadd.f32 %v4949, %v4988
    %v4990 = vpop.f32.mrb[0].mxu0
    %v4991 = vpop.f32.mrb[0].mxu0
    %v4992 = vpop.f32.mrb[0].mxu0
    %4993 = vdwg.mxu0
    %4994 = vmatprep.subr.bf16.mxu0 0
    %4995 = vmatpush1.bf16.msra.mxu0 %v4570
    %4996 = vmatprep.subr.bf16.mxu0 0
    %4997 = vmatpush1.bf16.msra.mxu0 %v4571
    %4998 = vmatprep.subr.bf16.mxu0 0
    %4999 = vmatpush1.bf16.msra.mxu0 %v4572
    %5000 = vmatprep.subr.bf16.mxu0 0
    %5001 = vmatpush1.bf16.msra.mxu0 %v4573
    %5002 = vmatprep.subr.bf16.mxu0 0
    %5003 = vmatpush1.bf16.msra.mxu0 %v4574
    %5004 = vmatprep.subr.bf16.mxu0 0
    %5005 = vmatpush1.bf16.msra.mxu0 %v4575
    %5006 = vmatprep.subr.bf16.mxu0 0
    %5007 = vmatpush1.bf16.msra.mxu0 %v4576
    %5008 = vmatprep.subr.bf16.mxu0 0
    %5009 = vmatpush1.bf16.msra.mxu0 %v4577
    %5010 = vmatprep.subr.bf16.mxu0 0
    %5011 = vmatpush1.bf16.msra.mxu0 %v4578
    %5012 = vmatprep.subr.bf16.mxu0 0
    %5013 = vmatpush1.bf16.msra.mxu0 %v4579
    %5014 = vmatprep.subr.bf16.mxu0 0
    %5015 = vmatpush1.bf16.msra.mxu0 %v4580
    %5016 = vmatprep.subr.bf16.mxu0 0
    %5017 = vmatpush1.bf16.msra.mxu0 %v4581
    %5018 = vmatprep.subr.bf16.mxu0 0
    %5019 = vmatpush1.bf16.msra.mxu0 %v4582
    %5020 = vmatprep.subr.bf16.mxu0 0
    %5021 = vmatpush1.bf16.msra.mxu0 %v4583
    %5022 = vmatprep.subr.bf16.mxu0 0
    %5023 = vmatpush1.bf16.msra.mxu0 %v4584
    %5024 = vmatprep.subr.bf16.mxu0 0
    %5025 = vmatpush1.bf16.msra.mxu0 %v4585
    %5026 = vmatprep.mubr.bf16.mxu0 %v3684
    %5027 = vmatmul.mubr.bf16.gmra.mrb[0].mxu0 %v3683
    %v5028 = vpop.f32.mrb[0].mxu0
    %v5029 = vadd.f32 %v4989, %v5028
    %v5030 = vpop.f32.mrb[0].mxu0
    %v5031 = vpop.f32.mrb[0].mxu0
    %v5032 = vpop.f32.mrb[0].mxu0
    %5033 = vdwg.mxu0
    %v5034 = vadd.f32 %v3042, %v5029
    %v5035 = vsel %vm778, %v5034, 0.0
    %5036 = vadd.xlane.f32.xlu0 %v5035
    %v5037 = vpop.xlane.xlu0 %5036
    %v5038 = vmul.f32 %v5037, %v826
    %v5039 = vsub.f32 %v5034, %v5038
    %v5040 = vmul.f32 %v5039, %v5039
    %v5041 = vsel %vm778, %v5040, 0.0
    %5042 = vadd.xlane.f32.xlu0 %v5041
    %v5043 = vpop.xlane.xlu0 %5042
    %v5044 = vmul.f32 %v5043, %v826
    %v5045 = vadd.f32 %v5044, 1e-05
    %v5046 = vrsqrt.pop %v5045
    %v5047 = vmul.f32 %v5039, %v5046
    %v5048 = vld [vmem:[%s2 + $0xe] sm:$0x1]
    %v5049 = vlaneseq
    %v5050 = vshrl.u32 %v5049, 7
    %v5051 = vsub.s32 0, %v5050
    %v5052 = vrot.slane %v5048, %v5051
    %v5053 = vmul.f32 %v5047, %v5052
    %v5054 = vld [vmem:[%s2 + $0xf] sm:$0x1]
    %v5055 = vlaneseq
    %v5056 = vshrl.u32 %v5055, 7
    %v5057 = vsub.s32 0, %v5056
    %v5058 = vrot.slane %v5054, %v5057
    %v5059 = vadd.f32 %v5053, %v5058
    %v5060 = vpack.c.bf16 %v5059, %v5059
    %v5061 = vld [vmem:[%s11] sm:$0xff]
    %v5062 = vld [vmem:[%s11 + $0x8] sm:$0xff]
    %v5063 = vld [vmem:[%s11 + $0x10] sm:$0xff]
    %v5064 = vld [vmem:[%s11 + $0x18] sm:$0xff]
    %v5065 = vld [vmem:[%s11 + $0x20] sm:$0xff]
    %v5066 = vld [vmem:[%s11 + $0x28] sm:$0xff]
    %v5067 = vld [vmem:[%s11 + $0x30] sm:$0xff]
    %v5068 = vld [vmem:[%s11 + $0x38] sm:$0xff]
    %v5069 = vld [vmem:[%s11 + $0x40] sm:$0xff]
    %v5070 = vld [vmem:[%s11 + $0x48] sm:$0xff]
    %v5071 = vld [vmem:[%s11 + $0x50] sm:$0xff]
    %v5072 = vld [vmem:[%s11 + $0x58] sm:$0xff]
    %v5073 = vld [vmem:[%s11 + $0x60] sm:$0xff]
    %v5074 = vld [vmem:[%s11 + $0x68] sm:$0xff]
    %v5075 = vld [vmem:[%s11 + $0x70] sm:$0xff]
    %v5076 = vld [vmem:[%s11 + $0x78] sm:$0xff]
    %v5077 = vld [vmem:[%s12] sm:$0xff]
    %v5079 = vlaneseq
    %v5080 = vshrl.u32 %v5079, 7
    %v5081 = vsub.s32 0, %v5080
    %v5082 = vrot.slane %v5077, %v5081
    %v5083 = vlaneseq
    %v5084 = vshrl.u32 %v5083, 7
    %v5085 = vsub.s32 1, %v5084
    %v5086 = vrot.slane %v5077, %v5085
    %v5087 = vlaneseq
    %v5088 = vshrl.u32 %v5087, 7
    %v5089 = vsub.s32 2, %v5088
    %v5090 = vrot.slane %v5077, %v5089
    %v5091 = vlaneseq
    %v5092 = vshrl.u32 %v5091, 7
    %v5093 = vsub.s32 3, %v5092
    %v5094 = vrot.slane %v5077, %v5093
    %v5095 = vlaneseq
    %v5096 = vshrl.u32 %v5095, 7
    %v5097 = vsub.s32 4, %v5096
    %v5098 = vrot.slane %v5077, %v5097
    %v5099 = vlaneseq
    %v5100 = vshrl.u32 %v5099, 7
    %v5101 = vsub.s32 5, %v5100
    %v5102 = vrot.slane %v5077, %v5101
    %v5103 = vlaneseq
    %v5104 = vshrl.u32 %v5103, 7
    %v5105 = vsub.s32 6, %v5104
    %v5106 = vrot.slane %v5077, %v5105
    %v5107 = vlaneseq
    %v5108 = vshrl.u32 %v5107, 7
    %v5109 = vsub.s32 7, %v5108
    %v5110 = vrot.slane %v5077, %v5109
    %v5135 = vunpack.c.l.b16 %v5061
    %v5136 = vunpack.c.h.b16 %v5061
    %v5137 = vunpack.c.l.b16 %v5062
    %v5138 = vunpack.c.h.b16 %v5062
    %v5139 = vunpack.c.l.b16 %v5063
    %v5140 = vunpack.c.h.b16 %v5063
    %v5141 = vunpack.c.l.b16 %v5064
    %v5142 = vunpack.c.h.b16 %v5064
    %v5143 = vunpack.c.l.b16 %v5065
    %v5144 = vunpack.c.h.b16 %v5065
    %v5145 = vunpack.c.l.b16 %v5066
    %v5146 = vunpack.c.h.b16 %v5066
    %v5147 = vunpack.c.l.b16 %v5067
    %v5148 = vunpack.c.h.b16 %v5067
    %v5149 = vunpack.c.l.b16 %v5068
    %v5150 = vunpack.c.h.b16 %v5068
    %v5151 = vunpack.c.l.b16 %v5069
    %v5152 = vunpack.c.h.b16 %v5069
    %v5153 = vunpack.c.l.b16 %v5070
    %v5154 = vunpack.c.h.b16 %v5070
    %v5155 = vunpack.c.l.b16 %v5071
    %v5156 = vunpack.c.h.b16 %v5071
    %v5157 = vunpack.c.l.b16 %v5072
    %v5158 = vunpack.c.h.b16 %v5072
    %v5159 = vunpack.c.l.b16 %v5073
    %v5160 = vunpack.c.h.b16 %v5073
    %v5161 = vunpack.c.l.b16 %v5074
    %v5162 = vunpack.c.h.b16 %v5074
    %v5163 = vunpack.c.l.b16 %v5075
    %v5164 = vunpack.c.h.b16 %v5075
    %v5165 = vunpack.c.l.b16 %v5076
    %v5166 = vunpack.c.h.b16 %v5076
    %v5167 = vpack.c.b16 %v5143, %v5135
    %v5168 = vpack.c.b16 %v5144, %v5136
    %v5169 = vpack.c.b16 %v5145, %v5137
    %v5170 = vpack.c.b16 %v5146, %v5138
    %v5171 = vpack.c.b16 %v5147, %v5139
    %v5172 = vpack.c.b16 %v5148, %v5140
    %v5173 = vpack.c.b16 %v5149, %v5141
    %v5174 = vpack.c.b16 %v5150, %v5142
    %v5175 = vpack.c.b16 %v5159, %v5151
    %v5176 = vpack.c.b16 %v5160, %v5152
    %v5177 = vpack.c.b16 %v5161, %v5153
    %v5178 = vpack.c.b16 %v5162, %v5154
    %v5179 = vpack.c.b16 %v5163, %v5155
    %v5180 = vpack.c.b16 %v5164, %v5156
    %v5181 = vpack.c.b16 %v5165, %v5157
    %v5182 = vpack.c.b16 %v5166, %v5158
    %v5200 = vsel %vm778, %v5060, 0
    %5202 = vmatprep.subr.bf16.mxu0 %v5168
    %5203 = vmatpush1.bf16.msra.mxu0 %v5167
    %5204 = vmatprep.subr.bf16.mxu0 %v5176
    %5205 = vmatpush1.bf16.msra.mxu0 %v5175
    %5206 = vmatprep.subr.bf16.mxu0 0
    %5207 = vmatpush1.bf16.msra.mxu0 0
    %5208 = vmatprep.subr.bf16.mxu0 0
    %5209 = vmatpush1.bf16.msra.mxu0 0
    %5210 = vmatprep.subr.bf16.mxu0 0
    %5211 = vmatpush1.bf16.msra.mxu0 0
    %5212 = vmatprep.subr.bf16.mxu0 0
    %5213 = vmatpush1.bf16.msra.mxu0 0
    %5214 = vmatprep.subr.bf16.mxu0 0
    %5215 = vmatpush1.bf16.msra.mxu0 0
    %5216 = vmatprep.subr.bf16.mxu0 0
    %5217 = vmatpush1.bf16.msra.mxu0 0
    %5218 = vmatprep.subr.bf16.mxu0 0
    %5219 = vmatpush1.bf16.msra.mxu0 0
    %5220 = vmatprep.subr.bf16.mxu0 0
    %5221 = vmatpush1.bf16.msra.mxu0 0
    %5222 = vmatprep.subr.bf16.mxu0 0
    %5223 = vmatpush1.bf16.msra.mxu0 0
    %5224 = vmatprep.subr.bf16.mxu0 0
    %5225 = vmatpush1.bf16.msra.mxu0 0
    %5226 = vmatprep.subr.bf16.mxu0 0
    %5227 = vmatpush1.bf16.msra.mxu0 0
    %5228 = vmatprep.subr.bf16.mxu0 0
    %5229 = vmatpush1.bf16.msra.mxu0 0
    %5230 = vmatprep.subr.bf16.mxu0 0
    %5231 = vmatpush1.bf16.msra.mxu0 0
    %5232 = vmatprep.subr.bf16.mxu0 0
    %5233 = vmatpush1.bf16.msra.mxu0 0
    %5234 = vmatprep.mubr.bf16.mxu0 0
    %5235 = vmatmul.mubr.bf16.gmra.mrb[0].mxu0 %v5200
    %v5236 = vpop.f32.mrb[0].mxu0
    %v5237 = vadd.f32 %v5082, %v5236
    %v5238 = vpop.f32.mrb[0].mxu0
    %v5239 = vadd.f32 %v5086, %v5238
    %v5240 = vpop.f32.mrb[0].mxu0
    %v5241 = vpop.f32.mrb[0].mxu0
    %5242 = vdwg.mxu0
    %5243 = vmatprep.subr.bf16.mxu0 %v5170
    %5244 = vmatpush1.bf16.msra.mxu0 %v5169
    %5245 = vmatprep.subr.bf16.mxu0 %v5178
    %5246 = vmatpush1.bf16.msra.mxu0 %v5177
    %5247 = vmatprep.subr.bf16.mxu0 0
    %5248 = vmatpush1.bf16.msra.mxu0 0
    %5249 = vmatprep.subr.bf16.mxu0 0
    %5250 = vmatpush1.bf16.msra.mxu0 0
    %5251 = vmatprep.subr.bf16.mxu0 0
    %5252 = vmatpush1.bf16.msra.mxu0 0
    %5253 = vmatprep.subr.bf16.mxu0 0
    %5254 = vmatpush1.bf16.msra.mxu0 0
    %5255 = vmatprep.subr.bf16.mxu0 0
    %5256 = vmatpush1.bf16.msra.mxu0 0
    %5257 = vmatprep.subr.bf16.mxu0 0
    %5258 = vmatpush1.bf16.msra.mxu0 0
    %5259 = vmatprep.subr.bf16.mxu0 0
    %5260 = vmatpush1.bf16.msra.mxu0 0
    %5261 = vmatprep.subr.bf16.mxu0 0
    %5262 = vmatpush1.bf16.msra.mxu0 0
    %5263 = vmatprep.subr.bf16.mxu0 0
    %5264 = vmatpush1.bf16.msra.mxu0 0
    %5265 = vmatprep.subr.bf16.mxu0 0
    %5266 = vmatpush1.bf16.msra.mxu0 0
    %5267 = vmatprep.subr.bf16.mxu0 0
    %5268 = vmatpush1.bf16.msra.mxu0 0
    %5269 = vmatprep.subr.bf16.mxu0 0
    %5270 = vmatpush1.bf16.msra.mxu0 0
    %5271 = vmatprep.subr.bf16.mxu0 0
    %5272 = vmatpush1.bf16.msra.mxu0 0
    %5273 = vmatprep.subr.bf16.mxu0 0
    %5274 = vmatpush1.bf16.msra.mxu0 0
    %5275 = vmatprep.mubr.bf16.mxu0 0
    %5276 = vmatmul.mubr.bf16.gmra.mrb[0].mxu0 %v5200
    %v5277 = vpop.f32.mrb[0].mxu0
    %v5278 = vadd.f32 %v5090, %v5277
    %v5279 = vpop.f32.mrb[0].mxu0
    %v5280 = vadd.f32 %v5094, %v5279
    %v5281 = vpop.f32.mrb[0].mxu0
    %v5282 = vpop.f32.mrb[0].mxu0
    %5283 = vdwg.mxu0
    %5284 = vmatprep.subr.bf16.mxu0 %v5172
    %5285 = vmatpush1.bf16.msra.mxu0 %v5171
    %5286 = vmatprep.subr.bf16.mxu0 %v5180
    %5287 = vmatpush1.bf16.msra.mxu0 %v5179
    %5288 = vmatprep.subr.bf16.mxu0 0
    %5289 = vmatpush1.bf16.msra.mxu0 0
    %5290 = vmatprep.subr.bf16.mxu0 0
    %5291 = vmatpush1.bf16.msra.mxu0 0
    %5292 = vmatprep.subr.bf16.mxu0 0
    %5293 = vmatpush1.bf16.msra.mxu0 0
    %5294 = vmatprep.subr.bf16.mxu0 0
    %5295 = vmatpush1.bf16.msra.mxu0 0
    %5296 = vmatprep.subr.bf16.mxu0 0
    %5297 = vmatpush1.bf16.msra.mxu0 0
    %5298 = vmatprep.subr.bf16.mxu0 0
    %5299 = vmatpush1.bf16.msra.mxu0 0
    %5300 = vmatprep.subr.bf16.mxu0 0
    %5301 = vmatpush1.bf16.msra.mxu0 0
    %5302 = vmatprep.subr.bf16.mxu0 0
    %5303 = vmatpush1.bf16.msra.mxu0 0
    %5304 = vmatprep.subr.bf16.mxu0 0
    %5305 = vmatpush1.bf16.msra.mxu0 0
    %5306 = vmatprep.subr.bf16.mxu0 0
    %5307 = vmatpush1.bf16.msra.mxu0 0
    %5308 = vmatprep.subr.bf16.mxu0 0
    %5309 = vmatpush1.bf16.msra.mxu0 0
    %5310 = vmatprep.subr.bf16.mxu0 0
    %5311 = vmatpush1.bf16.msra.mxu0 0
    %5312 = vmatprep.subr.bf16.mxu0 0
    %5313 = vmatpush1.bf16.msra.mxu0 0
    %5314 = vmatprep.subr.bf16.mxu0 0
    %5315 = vmatpush1.bf16.msra.mxu0 0
    %5316 = vmatprep.mubr.bf16.mxu0 0
    %5317 = vmatmul.mubr.bf16.gmra.mrb[0].mxu0 %v5200
    %v5318 = vpop.f32.mrb[0].mxu0
    %v5319 = vadd.f32 %v5098, %v5318
    %v5320 = vpop.f32.mrb[0].mxu0
    %v5321 = vadd.f32 %v5102, %v5320
    %v5322 = vpop.f32.mrb[0].mxu0
    %v5323 = vpop.f32.mrb[0].mxu0
    %5324 = vdwg.mxu0
    %5325 = vmatprep.subr.bf16.mxu0 %v5174
    %5326 = vmatpush1.bf16.msra.mxu0 %v5173
    %5327 = vmatprep.subr.bf16.mxu0 %v5182
    %5328 = vmatpush1.bf16.msra.mxu0 %v5181
    %5329 = vmatprep.subr.bf16.mxu0 0
    %5330 = vmatpush1.bf16.msra.mxu0 0
    %5331 = vmatprep.subr.bf16.mxu0 0
    %5332 = vmatpush1.bf16.msra.mxu0 0
    %5333 = vmatprep.subr.bf16.mxu0 0
    %5334 = vmatpush1.bf16.msra.mxu0 0
    %5335 = vmatprep.subr.bf16.mxu0 0
    %5336 = vmatpush1.bf16.msra.mxu0 0
    %5337 = vmatprep.subr.bf16.mxu0 0
    %5338 = vmatpush1.bf16.msra.mxu0 0
    %5339 = vmatprep.subr.bf16.mxu0 0
    %5340 = vmatpush1.bf16.msra.mxu0 0
    %5341 = vmatprep.subr.bf16.mxu0 0
    %5342 = vmatpush1.bf16.msra.mxu0 0
    %5343 = vmatprep.subr.bf16.mxu0 0
    %5344 = vmatpush1.bf16.msra.mxu0 0
    %5345 = vmatprep.subr.bf16.mxu0 0
    %5346 = vmatpush1.bf16.msra.mxu0 0
    %5347 = vmatprep.subr.bf16.mxu0 0
    %5348 = vmatpush1.bf16.msra.mxu0 0
    %5349 = vmatprep.subr.bf16.mxu0 0
    %5350 = vmatpush1.bf16.msra.mxu0 0
    %5351 = vmatprep.subr.bf16.mxu0 0
    %5352 = vmatpush1.bf16.msra.mxu0 0
    %5353 = vmatprep.subr.bf16.mxu0 0
    %5354 = vmatpush1.bf16.msra.mxu0 0
    %5355 = vmatprep.subr.bf16.mxu0 0
    %5356 = vmatpush1.bf16.msra.mxu0 0
    %5357 = vmatprep.mubr.bf16.mxu0 0
    %5358 = vmatmul.mubr.bf16.gmra.mrb[0].mxu0 %v5200
    %v5359 = vpop.f32.mrb[0].mxu0
    %v5360 = vadd.f32 %v5106, %v5359
    %v5361 = vpop.f32.mrb[0].mxu0
    %v5362 = vadd.f32 %v5110, %v5361
    %v5363 = vpop.f32.mrb[0].mxu0
    %v5364 = vpop.f32.mrb[0].mxu0
    %5365 = vdwg.mxu0
    %v5366 = vmax.f32 %v5237, 0.0
    %v5367 = vmax.f32 %v5239, 0.0
    %v5368 = vmax.f32 %v5278, 0.0
    %v5369 = vmax.f32 %v5280, 0.0
    %v5370 = vmax.f32 %v5319, 0.0
    %v5371 = vmax.f32 %v5321, 0.0
    %v5372 = vmax.f32 %v5360, 0.0
    %v5373 = vmax.f32 %v5362, 0.0
    %5374 = vst [vmem:[#allocation2] sm:$0xff] %v5366
    %5375 = vst [vmem:[#allocation2 + $0x8] sm:$0xff] %v5367
    %5376 = vst [vmem:[#allocation2 + $0x10] sm:$0xff] %v5368
    %5377 = vst [vmem:[#allocation2 + $0x18] sm:$0xff] %v5369
    %5378 = vst [vmem:[#allocation2 + $0x20] sm:$0xff] %v5370
    %5379 = vst [vmem:[#allocation2 + $0x28] sm:$0xff] %v5371
    %5380 = vst [vmem:[#allocation2 + $0x30] sm:$0xff] %v5372
    %5381 = vst [vmem:[#allocation2 + $0x38] sm:$0xff] %v5373
    // Predicated region
    $region54: #{tpu_custom_call.1} parent=1 // pred_check
      _
    $region55: #{tpu_custom_call.1} parent=1 // pred_check_branch
      %5383 = sbr.rel (0) target = $region57
    $region56: #{tpu_custom_call.1} parent=1 // pred_region
      %s5385 = ssub.s32 1024, 1024
      %5386 = vsyncadd [#allocation3], %s5385
      %s5388 = sshll.u32 [#allocation2], 4
      %s5389 = int_to_ptr.vmem [resolvable:$true] %s5388
      %5391 = dma.vmem_to_hbm [thread:$0]  %s5389, 1024, %s13, [#allocation3]
    $region57: #{tpu_custom_call.1} parent=1 // pred_fallthru
      _
    // Predicated region
    $region58: #{tpu_custom_call.1} parent=1 // pred_check
      _
    $region59: #{tpu_custom_call.1} parent=1 // pred_check_branch
      %5393 = sbr.rel (0) target = $region61
    $region60: #{tpu_custom_call.1} parent=1 // pred_region
      %5394 = dma.done [#allocation3], 1024
    $region61: #{tpu_custom_call.1} parent=1 // pred_fallthru
      _
    %5395 = vsyncpa [#allocation3], 1

</llo_original>
